<compile_context>
chip_gen: v6e
topology: v6e:2x2x1
jax: 0.10.0
libtpu: 0.0.40
codegen_flags: <defaults>
</compile_context>

<pallas_src>
import jax
import jax.numpy as jnp
from jax.experimental import pallas as pl
from jax.experimental.pallas import tpu as pltpu

BN_EPS = 1e-5
CIN_PAD = 8          # conv1 input channels zero-padded 3 -> 8
OUT_PAD = 128        # fc3 output zero-padded 9 -> 128 (lane-dense unmasked store)
FEAT = 1024
MAX_TILE_ROWS = 4096  # ~TB*TN rows of (rows, 1024) intermediate live per grid step


def _round_up(x, m):
    return ((x + m - 1) // m) * m


# ----------------------------------------------------------------------------
# Fused kernel: per-point MLP (8->64->128->1024) on a (TB, TN) tile, running max
# over point tiles, hoisted conv3 bias/ReLU + batched FC head in the epilogue.
# Grid = (B_pad // TB, num_n_tiles); N-tile axis last and "arbitrary".
# ----------------------------------------------------------------------------
def _stn3d_kernel(x_ref,
                  w1_ref, b1_ref, w2_ref, b2_ref, w3_ref, b3_ref,
                  w4_ref, b4_ref, w5_ref, b5_ref, w6_ref, b6_ref,
                  o_ref, maxacc_ref):
    nt = pl.program_id(1)
    cd = w1_ref.dtype                              # compute dtype (bf16 or f32)
    tb, tn, cin = x_ref.shape

    @pl.when(nt == 0)
    def _init():
        maxacc_ref[...] = jnp.full(maxacc_ref.shape, -jnp.inf, maxacc_ref.dtype)

    x = x_ref[...].reshape(tb * tn, cin)           # (TB*TN, 8), already compute dtype

    h = jnp.dot(x, w1_ref[...], preferred_element_type=jnp.float32) + b1_ref[...]
    h = jnp.maximum(h, 0.0).astype(cd)             # (TB*TN, 64)
    h = jnp.dot(h, w2_ref[...], preferred_element_type=jnp.float32) + b2_ref[...]
    h = jnp.maximum(h, 0.0).astype(cd)             # (TB*TN, 128)
    # Layer 3: raw matmul only — bias + ReLU hoisted to the epilogue (exact: max over
    # points commutes with a per-feature constant bias and with the monotone ReLU).
    h = jnp.dot(h, w3_ref[...], preferred_element_type=cd)   # (TB*TN, 1024) in cd

    # Per-batch-row running max over point tiles (2-D sublane reduces on static slices).
    pooled = jnp.concatenate(
        [jnp.max(h[i * tn:(i + 1) * tn, :], axis=0, keepdims=True) for i in range(tb)],
        axis=0)                                    # (TB, 1024)
    maxacc_ref[...] = jnp.maximum(maxacc_ref[...], pooled)

    @pl.when(nt == pl.num_programs(1) - 1)
    def _epilogue():
        # Hoisted conv3 bias + ReLU, then the batched FC head (M = TB).
        f = jnp.maximum(maxacc_ref[...].astype(jnp.float32) + b3_ref[...], 0.0)
        g = jnp.dot(f.astype(cd), w4_ref[...],
                    preferred_element_type=jnp.float32) + b4_ref[...]
        g = jnp.maximum(g, 0.0)                    # (TB, 512)
        g = jnp.dot(g.astype(cd), w5_ref[...],
                    preferred_element_type=jnp.float32) + b5_ref[...]
        g = jnp.maximum(g, 0.0)                    # (TB, 256)
        out = jnp.dot(g.astype(cd), w6_ref[...],
                      preferred_element_type=jnp.float32) + b6_ref[...]
        o_ref[...] = out.astype(o_ref.dtype)       # (TB, 128), identity folded in bias


# ----------------------------------------------------------------------------
# Parameter setup + eval-mode BatchNorm folding (plain JAX glue)
# ----------------------------------------------------------------------------
def fold_bn(w, b, gamma, beta, mean, var, eps=BN_EPS):
    """Fold eval-mode BatchNorm into a preceding (in, out) weight + (1, out) bias."""
    scale = gamma / jnp.sqrt(var + eps)
    return w * scale[None, :], ((b - mean) * scale + beta)[None, :]


def make_params(key):
    keys = jax.random.split(key, 17)

    def lin(k, din, dout):
        return jax.random.normal(k, (din, dout), jnp.float32) / jnp.sqrt(din)

    def bias(k, c, scale=0.1):
        return scale * jax.random.normal(k, (c,), jnp.float32)

    def bn(k, c):
        kg, kb, km, kv = jax.random.split(k, 4)
        gamma = 1.0 + 0.05 * jax.random.normal(kg, (c,), jnp.float32)
        beta = 0.1 * jax.random.normal(kb, (c,), jnp.float32)
        mean = 0.1 * jax.random.normal(km, (c,), jnp.float32)
        var = 1.0 + 0.1 * jnp.abs(jax.random.normal(kv, (c,), jnp.float32))
        return gamma, beta, mean, var

    p = {}
    p["w1"], p["b1"] = lin(keys[0], 3, 64),     bias(keys[6], 64)
    p["w2"], p["b2"] = lin(keys[1], 64, 128),   bias(keys[7], 128)
    p["w3"], p["b3"] = lin(keys[2], 128, 1024), bias(keys[8], 1024)
    p["w4"], p["b4"] = lin(keys[3], 1024, 512), bias(keys[9], 512)
    p["w5"], p["b5"] = lin(keys[4], 512, 256),  bias(keys[10], 256)
    p["w6"], p["b6"] = lin(keys[5], 256, 9),    bias(keys[11], 9)
    p["bn1"] = bn(keys[12], 64)
    p["bn2"] = bn(keys[13], 128)
    p["bn3"] = bn(keys[14], 1024)
    p["bn4"] = bn(keys[15], 512)
    p["bn5"] = bn(keys[16], 256)
    return p


# ----------------------------------------------------------------------------
# Forward wrapper
# ----------------------------------------------------------------------------
def stn3d_forward(x_ncl, p, *, tb=None, tn=None, compute_dtype=jnp.bfloat16):
    """x_ncl: (B, 3, N) float32 (PyTorch NCL). Returns (B, 3, 3) float32."""
    B, C, N = x_ncl.shape
    assert C == 3

    # Tile selection: tb batches the FC head (M = tb); tb*tn rows per grid step.
    if tb is None:
        tb = max(1, min(8, B))
    if tn is None:
        tn = max(128, (MAX_TILE_ROWS // tb) // 128 * 128)
        tn = min(tn, _round_up(N, 128))
    b_pad = _round_up(B, tb)
    n_pad = _round_up(N, tn)
    n_tiles = n_pad // tn

    # Channels-last, pad batch with zeros (rows discarded), pad points by repeating the
    # last point (exact under max pooling), pad channels 3 -> 8 with zeros (inert).
    x_bnc = jnp.transpose(x_ncl, (0, 2, 1))                              # (B, N, 3)
    x_bnc = jnp.pad(x_bnc, ((0, b_pad - B), (0, 0), (0, 0)))
    x_bnc = jnp.pad(x_bnc, ((0, 0), (0, n_pad - N), (0, 0)), mode="edge")
    x_pad = jnp.pad(x_bnc, ((0, 0), (0, 0), (0, CIN_PAD - 3))).astype(compute_dtype)

    # Fold eval-mode BN into conv/fc weights; pad conv1 K and fc3 output.
    w1, b1 = fold_bn(p["w1"], p["b1"], *p["bn1"])
    w1 = jnp.pad(w1, ((0, CIN_PAD - 3), (0, 0)))
    w2, b2 = fold_bn(p["w2"], p["b2"], *p["bn2"])
    w3, b3 = fold_bn(p["w3"], p["b3"], *p["bn3"])
    w4, b4 = fold_bn(p["w4"], p["b4"], *p["bn4"])
    w5, b5 = fold_bn(p["w5"], p["b5"], *p["bn5"])
    iden = jnp.array([1, 0, 0, 0, 1, 0, 0, 0, 1], jnp.float32)
    w6 = jnp.pad(p["w6"], ((0, 0), (0, OUT_PAD - 9)))
    b6 = jnp.pad(p["b6"] + iden, (0, OUT_PAD - 9))[None, :]

    ws = [w.astype(compute_dtype) for w in (w1, w2, w3, w4, w5, w6)]
    bs = [b1, b2, b3, b4, b5, b6]                 # biases stay f32 (VPU epilogues)

    def const(arr):                               # resident block, index (0, 0)
        return pl.BlockSpec(arr.shape, lambda b, k: (0,) * arr.ndim)

    args = []
    in_specs = [pl.BlockSpec((tb, tn, CIN_PAD), lambda b, k: (b, k, 0))]
    for w, bia in zip(ws, bs):
        args += [w, bia]
        in_specs += [const(w), const(bia)]

    out = pl.pallas_call(
        _stn3d_kernel,
        out_shape=jax.ShapeDtypeStruct((b_pad, OUT_PAD), jnp.float32),
        grid=(b_pad // tb, n_tiles),
        in_specs=in_specs,
        out_specs=pl.BlockSpec((tb, OUT_PAD), lambda b, k: (b, 0)),
        scratch_shapes=[pltpu.VMEM((tb, FEAT), compute_dtype)],
        compiler_params=pltpu.CompilerParams(
            dimension_semantics=("parallel", "arbitrary"),
            vmem_limit_bytes=48 * 1024 * 1024),
    )(x_pad, *args)

    return out[:B, :9].reshape(B, 3, 3)


# ----------------------------------------------------------------------------
# Pure-JAX reference with identical (eval-mode BN) semantics, full f32 precision.
# ----------------------------------------------------------------------------
def stn3d_reference(x_ncl, p):
    hi = jax.lax.Precision.HIGHEST

    def bn_apply(h, bn):
        gamma, beta, mean, var = bn
        return (h - mean) / jnp.sqrt(var + BN_EPS) * gamma + beta

    x = jnp.transpose(x_ncl, (0, 2, 1))                              # (B, N, 3)
    h = jax.nn.relu(bn_apply(jnp.dot(x, p["w1"], precision=hi) + p["b1"], p["bn1"]))
    h = jax.nn.relu(bn_apply(jnp.dot(h, p["w2"], precision=hi) + p["b2"], p["bn2"]))
    h = jax.nn.relu(bn_apply(jnp.dot(h, p["w3"], precision=hi) + p["b3"], p["bn3"]))
    f = jnp.max(h, axis=1)                                           # (B, 1024)
    f = jax.nn.relu(bn_apply(jnp.dot(f, p["w4"], precision=hi) + p["b4"], p["bn4"]))
    f = jax.nn.relu(bn_apply(jnp.dot(f, p["w5"], precision=hi) + p["b5"], p["bn5"]))
    f = jnp.dot(f, p["w6"], precision=hi) + p["b6"]
    iden = jnp.array([1, 0, 0, 0, 1, 0, 0, 0, 1], jnp.float32)
    return (f + iden[None, :]).reshape(-1, 3, 3)


if __name__ == "__main__":
    key = jax.random.PRNGKey(0)
    k_x1, k_x2, k_p = jax.random.split(key, 3)
    params = make_params(k_p)

    # Case 1: aligned small shape; explicit small tiles exercise the multi-tile
    # running max, the init/epilogue phases and the batched (M=2) FC head.
    B, N = 2, 256
    x = jax.random.normal(k_x1, (B, 3, N), jnp.float32)
    ref = jax.block_until_ready(stn3d_reference(x, params))

    out_f32 = jax.block_until_ready(
        stn3d_forward(x, params, tb=2, tn=128, compute_dtype=jnp.float32))
    assert out_f32.shape == (B, 3, 3), out_f32.shape
    assert jnp.allclose(out_f32, ref, atol=1e-3, rtol=1e-3), \
        float(jnp.max(jnp.abs(out_f32 - ref)))

    out_bf16 = jax.block_until_ready(stn3d_forward(x, params))   # default bf16 path
    assert out_bf16.shape == (B, 3, 3), out_bf16.shape
    assert jnp.allclose(out_bf16, ref, atol=5e-2, rtol=5e-2), \
        float(jnp.max(jnp.abs(out_bf16 - ref)))

    # Case 2: ragged batch / point count -> exercises batch zero-padding and the
    # max-invariant edge padding of the points axis.
    B2, N2 = 3, 200
    x2 = jax.random.normal(k_x2, (B2, 3, N2), jnp.float32)
    ref2 = jax.block_until_ready(stn3d_reference(x2, params))
    out2 = jax.block_until_ready(stn3d_forward(x2, params, tb=2, tn=128))
    assert out2.shape == (B2, 3, 3), out2.shape
    assert jnp.allclose(out2, ref2, atol=5e-2, rtol=5e-2), \
        float(jnp.max(jnp.abs(out2 - ref2)))

    print("KERNEL_OK")
</pallas_src>

<mosaic_0001>
module attributes {stable_mosaic.version = 11 : i64} {
  func.func @_stn3d_kernel(%arg0: i32, %arg1: i32, %arg2: memref<2x128x8xf32, #tpu.memory_space<vmem>>, %arg3: memref<8x64xf32, #tpu.memory_space<vmem>>, %arg4: memref<1x64xf32, #tpu.memory_space<vmem>>, %arg5: memref<64x128xf32, #tpu.memory_space<vmem>>, %arg6: memref<1x128xf32, #tpu.memory_space<vmem>>, %arg7: memref<128x1024xf32, #tpu.memory_space<vmem>>, %arg8: memref<1x1024xf32, #tpu.memory_space<vmem>>, %arg9: memref<1024x512xf32, #tpu.memory_space<vmem>>, %arg10: memref<1x512xf32, #tpu.memory_space<vmem>>, %arg11: memref<512x256xf32, #tpu.memory_space<vmem>>, %arg12: memref<1x256xf32, #tpu.memory_space<vmem>>, %arg13: memref<256x128xf32, #tpu.memory_space<vmem>>, %arg14: memref<1x128xf32, #tpu.memory_space<vmem>>, %arg15: memref<2x128xf32, #tpu.memory_space<vmem>>, %arg16: memref<2x1024xf32, #tpu.memory_space<vmem>>) attributes {dimension_semantics = [#tpu.dimension_semantics<parallel>, #tpu.dimension_semantics<arbitrary>], iteration_bounds = array<i64: 1, 2>, scalar_prefetch = 0 : i64, scratch_operands = 1 : i64, tpu.core_type = #tpu.core_type<tc>, window_params = [{transform_indices = @transform_0, window_bounds = array<i64: 2, 128, 8>}, {pipeline_mode = #tpu.pipeline_mode<synchronous>, transform_indices = @transform_1, window_bounds = array<i64: 8, 64>}, {pipeline_mode = #tpu.pipeline_mode<synchronous>, transform_indices = @transform_2, window_bounds = array<i64: 1, 64>}, {pipeline_mode = #tpu.pipeline_mode<synchronous>, transform_indices = @transform_3, window_bounds = array<i64: 64, 128>}, {pipeline_mode = #tpu.pipeline_mode<synchronous>, transform_indices = @transform_4, window_bounds = array<i64: 1, 128>}, {pipeline_mode = #tpu.pipeline_mode<synchronous>, transform_indices = @transform_5, window_bounds = array<i64: 128, 1024>}, {pipeline_mode = #tpu.pipeline_mode<synchronous>, transform_indices = @transform_6, window_bounds = array<i64: 1, 1024>}, {pipeline_mode = #tpu.pipeline_mode<synchronous>, transform_indices = @transform_7, window_bounds = array<i64: 1024, 512>}, {pipeline_mode = #tpu.pipeline_mode<synchronous>, transform_indices = @transform_8, window_bounds = array<i64: 1, 512>}, {pipeline_mode = #tpu.pipeline_mode<synchronous>, transform_indices = @transform_9, window_bounds = array<i64: 512, 256>}, {pipeline_mode = #tpu.pipeline_mode<synchronous>, transform_indices = @transform_10, window_bounds = array<i64: 1, 256>}, {pipeline_mode = #tpu.pipeline_mode<synchronous>, transform_indices = @transform_11, window_bounds = array<i64: 256, 128>}, {pipeline_mode = #tpu.pipeline_mode<synchronous>, transform_indices = @transform_12, window_bounds = array<i64: 1, 128>}, {transform_indices = @transform_13, window_bounds = array<i64: 2, 128>}]} {
    %c0_i32 = arith.constant 0 : i32
    %0 = arith.cmpi eq, %arg1, %c0_i32 : i32
    %1 = arith.extui %0 : i1 to i32
    %c0_i32_0 = arith.constant 0 : i32
    %2 = arith.cmpi ne, %1, %c0_i32_0 : i32
    scf.if %2 {
      %cst_24 = arith.constant 0xFF800000 : f32
      %34 = vector.broadcast %cst_24 : f32 to vector<2x1024xf32>
      %c0_25 = arith.constant 0 : index
      %c0_26 = arith.constant 0 : index
      %35 = vector.load %arg16[%c0_25, %c0_26] : memref<2x1024xf32, #tpu.memory_space<vmem>>, vector<2x1024xf32>
      tpu.vector_store %arg16[%c0_25, %c0_26], %34 {strides = array<i32>} : memref<2x1024xf32, #tpu.memory_space<vmem>>, vector<2x1024xf32>,
    } else {
    }
    %c0 = arith.constant 0 : index
    %c0_1 = arith.constant 0 : index
    %c0_2 = arith.constant 0 : index
    %3 = vector.load %arg2[%c0, %c0_1, %c0_2] : memref<2x128x8xf32, #tpu.memory_space<vmem>>, vector<2x128x8xf32>
    %4 = vector.shape_cast %3 : vector<2x128x8xf32> to vector<256x8xf32>
    %c0_3 = arith.constant 0 : index
    %c0_4 = arith.constant 0 : index
    %5 = vector.load %arg3[%c0_3, %c0_4] : memref<8x64xf32, #tpu.memory_space<vmem>>, vector<8x64xf32>
    %cst = arith.constant dense<0.000000e+00> : vector<256x64xf32>
    %6 = tpu.matmul %4, %5, %cst {dimension_numbers = #tpu.dot_dimension_numbers<[1], [0], [0], [1], [0, 0, 1, 1], [], []>} : vector<256x8xf32>, vector<8x64xf32>, vector<256x64xf32> -> vector<256x64xf32>
    %c0_5 = arith.constant 0 : index
    %c0_6 = arith.constant 0 : index
    %7 = vector.load %arg4[%c0_5, %c0_6] : memref<1x64xf32, #tpu.memory_space<vmem>>, vector<1x64xf32>
    %8 = vector.broadcast %7 : vector<1x64xf32> to vector<256x64xf32>
    %9 = arith.addf %6, %8 : vector<256x64xf32>
    %cst_7 = arith.constant 0.000000e+00 : f32
    %10 = vector.broadcast %cst_7 : f32 to vector<256x64xf32>
    %11 = arith.maximumf %9, %10 : vector<256x64xf32>
    %c0_8 = arith.constant 0 : index
    %c0_9 = arith.constant 0 : index
    %12 = vector.load %arg5[%c0_8, %c0_9] : memref<64x128xf32, #tpu.memory_space<vmem>>, vector<64x128xf32>
    %cst_10 = arith.constant dense<0.000000e+00> : vector<256x128xf32>
    %13 = tpu.matmul %11, %12, %cst_10 {dimension_numbers = #tpu.dot_dimension_numbers<[1], [0], [0], [1], [0, 0, 1, 1], [], []>} : vector<256x64xf32>, vector<64x128xf32>, vector<256x128xf32> -> vector<256x128xf32>
    %c0_11 = arith.constant 0 : index
    %c0_12 = arith.constant 0 : index
    %14 = vector.load %arg6[%c0_11, %c0_12] : memref<1x128xf32, #tpu.memory_space<vmem>>, vector<1x128xf32>
    %15 = vector.broadcast %14 : vector<1x128xf32> to vector<256x128xf32>
    %16 = arith.addf %13, %15 : vector<256x128xf32>
    %cst_13 = arith.constant 0.000000e+00 : f32
    %17 = vector.broadcast %cst_13 : f32 to vector<256x128xf32>
    %18 = arith.maximumf %16, %17 : vector<256x128xf32>
    %c0_14 = arith.constant 0 : index
    %c0_15 = arith.constant 0 : index
    %19 = vector.load %arg7[%c0_14, %c0_15] : memref<128x1024xf32, #tpu.memory_space<vmem>>, vector<128x1024xf32>
    %cst_16 = arith.constant dense<0.000000e+00> : vector<256x1024xf32>
    %20 = tpu.matmul %18, %19, %cst_16 {dimension_numbers = #tpu.dot_dimension_numbers<[1], [0], [0], [1], [0, 0, 1, 1], [], []>} : vector<256x128xf32>, vector<128x1024xf32>, vector<256x1024xf32> -> vector<256x1024xf32>
    %21 = vector.extract_strided_slice %20 {offsets = [0, 0], sizes = [128, 1024], strides = [1, 1]} : vector<256x1024xf32> to vector<128x1024xf32>
    %cst_17 = arith.constant dense<0xFF800000> : vector<1024xf32>
    %22 = vector.multi_reduction <maximumf>, %21, %cst_17 [0] : vector<128x1024xf32> to vector<1024xf32>
    %23 = vector.shape_cast %22 : vector<1024xf32> to vector<1x1024xf32>
    %24 = vector.extract_strided_slice %20 {offsets = [128, 0], sizes = [128, 1024], strides = [1, 1]} : vector<256x1024xf32> to vector<128x1024xf32>
    %cst_18 = arith.constant dense<0xFF800000> : vector<1024xf32>
    %25 = vector.multi_reduction <maximumf>, %24, %cst_18 [0] : vector<128x1024xf32> to vector<1024xf32>
    %26 = vector.shape_cast %25 : vector<1024xf32> to vector<1x1024xf32>
    %27 = tpu.concatenate %23, %26 in 0 : vector<1x1024xf32>, vector<1x1024xf32> -> vector<2x1024xf32>
    %c0_19 = arith.constant 0 : index
    %c0_20 = arith.constant 0 : index
    %28 = vector.load %arg16[%c0_19, %c0_20] : memref<2x1024xf32, #tpu.memory_space<vmem>>, vector<2x1024xf32>
    %29 = arith.maximumf %28, %27 : vector<2x1024xf32>
    %c0_21 = arith.constant 0 : index
    %c0_22 = arith.constant 0 : index
    %30 = vector.load %arg16[%c0_21, %c0_22] : memref<2x1024xf32, #tpu.memory_space<vmem>>, vector<2x1024xf32>
    tpu.vector_store %arg16[%c0_21, %c0_22], %29 {strides = array<i32>} : memref<2x1024xf32, #tpu.memory_space<vmem>>, vector<2x1024xf32>,
    %c1_i32 = arith.constant 1 : i32
    %31 = arith.cmpi eq, %arg1, %c1_i32 : i32
    %32 = arith.extui %31 : i1 to i32
    %c0_i32_23 = arith.constant 0 : i32
    %33 = arith.cmpi ne, %32, %c0_i32_23 : i32
    scf.if %33 {
      %c0_24 = arith.constant 0 : index
      %c0_25 = arith.constant 0 : index
      %34 = vector.load %arg16[%c0_24, %c0_25] : memref<2x1024xf32, #tpu.memory_space<vmem>>, vector<2x1024xf32>
      %c0_26 = arith.constant 0 : index
      %c0_27 = arith.constant 0 : index
      %35 = vector.load %arg8[%c0_26, %c0_27] : memref<1x1024xf32, #tpu.memory_space<vmem>>, vector<1x1024xf32>
      %36 = vector.broadcast %35 : vector<1x1024xf32> to vector<2x1024xf32>
      %37 = arith.addf %34, %36 : vector<2x1024xf32>
      %cst_28 = arith.constant 0.000000e+00 : f32
      %38 = vector.broadcast %cst_28 : f32 to vector<2x1024xf32>
      %39 = arith.maximumf %37, %38 : vector<2x1024xf32>
      %c0_29 = arith.constant 0 : index
      %c0_30 = arith.constant 0 : index
      %40 = vector.load %arg9[%c0_29, %c0_30] : memref<1024x512xf32, #tpu.memory_space<vmem>>, vector<1024x512xf32>
      %cst_31 = arith.constant dense<0.000000e+00> : vector<2x512xf32>
      %41 = tpu.matmul %39, %40, %cst_31 {dimension_numbers = #tpu.dot_dimension_numbers<[1], [0], [0], [1], [0, 0, 1, 1], [], []>} : vector<2x1024xf32>, vector<1024x512xf32>, vector<2x512xf32> -> vector<2x512xf32>
      %c0_32 = arith.constant 0 : index
      %c0_33 = arith.constant 0 : index
      %42 = vector.load %arg10[%c0_32, %c0_33] : memref<1x512xf32, #tpu.memory_space<vmem>>, vector<1x512xf32>
      %43 = vector.broadcast %42 : vector<1x512xf32> to vector<2x512xf32>
      %44 = arith.addf %41, %43 : vector<2x512xf32>
      %cst_34 = arith.constant 0.000000e+00 : f32
      %45 = vector.broadcast %cst_34 : f32 to vector<2x512xf32>
      %46 = arith.maximumf %44, %45 : vector<2x512xf32>
      %c0_35 = arith.constant 0 : index
      %c0_36 = arith.constant 0 : index
      %47 = vector.load %arg11[%c0_35, %c0_36] : memref<512x256xf32, #tpu.memory_space<vmem>>, vector<512x256xf32>
      %cst_37 = arith.constant dense<0.000000e+00> : vector<2x256xf32>
      %48 = tpu.matmul %46, %47, %cst_37 {dimension_numbers = #tpu.dot_dimension_numbers<[1], [0], [0], [1], [0, 0, 1, 1], [], []>} : vector<2x512xf32>, vector<512x256xf32>, vector<2x256xf32> -> vector<2x256xf32>
      %c0_38 = arith.constant 0 : index
      %c0_39 = arith.constant 0 : index
      %49 = vector.load %arg12[%c0_38, %c0_39] : memref<1x256xf32, #tpu.memory_space<vmem>>, vector<1x256xf32>
      %50 = vector.broadcast %49 : vector<1x256xf32> to vector<2x256xf32>
      %51 = arith.addf %48, %50 : vector<2x256xf32>
      %cst_40 = arith.constant 0.000000e+00 : f32
      %52 = vector.broadcast %cst_40 : f32 to vector<2x256xf32>
      %53 = arith.maximumf %51, %52 : vector<2x256xf32>
      %c0_41 = arith.constant 0 : index
      %c0_42 = arith.constant 0 : index
      %54 = vector.load %arg13[%c0_41, %c0_42] : memref<256x128xf32, #tpu.memory_space<vmem>>, vector<256x128xf32>
      %cst_43 = arith.constant dense<0.000000e+00> : vector<2x128xf32>
      %55 = tpu.matmul %53, %54, %cst_43 {dimension_numbers = #tpu.dot_dimension_numbers<[1], [0], [0], [1], [0, 0, 1, 1], [], []>} : vector<2x256xf32>, vector<256x128xf32>, vector<2x128xf32> -> vector<2x128xf32>
      %c0_44 = arith.constant 0 : index
      %c0_45 = arith.constant 0 : index
      %56 = vector.load %arg14[%c0_44, %c0_45] : memref<1x128xf32, #tpu.memory_space<vmem>>, vector<1x128xf32>
      %57 = vector.broadcast %56 : vector<1x128xf32> to vector<2x128xf32>
      %58 = arith.addf %55, %57 : vector<2x128xf32>
      %c0_46 = arith.constant 0 : index
      %c0_47 = arith.constant 0 : index
      %59 = vector.load %arg15[%c0_46, %c0_47] : memref<2x128xf32, #tpu.memory_space<vmem>>, vector<2x128xf32>
      tpu.vector_store %arg15[%c0_46, %c0_47], %58 {strides = array<i32>} : memref<2x128xf32, #tpu.memory_space<vmem>>, vector<2x128xf32>,
    } else {
    }
    return
  }
  func.func @transform_0(%arg0: i32, %arg1: i32) -> (i32, i32, i32) {
    %c0_i32 = arith.constant 0 : i32
    %c0_i32_0 = arith.constant 0 : i32
    return %arg0, %arg1, %c0_i32 : i32, i32, i32
  }
  func.func @transform_1(%arg0: i32, %arg1: i32) -> (i32, i32) {
    %c0_i32 = arith.constant 0 : i32
    %c0_i32_0 = arith.constant 0 : i32
    %c0_i32_1 = arith.constant 0 : i32
    return %c0_i32, %c0_i32_0 : i32, i32
  }
  func.func @transform_2(%arg0: i32, %arg1: i32) -> (i32, i32) {
    %c0_i32 = arith.constant 0 : i32
    %c0_i32_0 = arith.constant 0 : i32
    %c0_i32_1 = arith.constant 0 : i32
    return %c0_i32, %c0_i32_0 : i32, i32
  }
  func.func @transform_3(%arg0: i32, %arg1: i32) -> (i32, i32) {
    %c0_i32 = arith.constant 0 : i32
    %c0_i32_0 = arith.constant 0 : i32
    %c0_i32_1 = arith.constant 0 : i32
    return %c0_i32, %c0_i32_0 : i32, i32
  }
  func.func @transform_4(%arg0: i32, %arg1: i32) -> (i32, i32) {
    %c0_i32 = arith.constant 0 : i32
    %c0_i32_0 = arith.constant 0 : i32
    %c0_i32_1 = arith.constant 0 : i32
    return %c0_i32, %c0_i32_0 : i32, i32
  }
  func.func @transform_5(%arg0: i32, %arg1: i32) -> (i32, i32) {
    %c0_i32 = arith.constant 0 : i32
    %c0_i32_0 = arith.constant 0 : i32
    %c0_i32_1 = arith.constant 0 : i32
    return %c0_i32, %c0_i32_0 : i32, i32
  }
  func.func @transform_6(%arg0: i32, %arg1: i32) -> (i32, i32) {
    %c0_i32 = arith.constant 0 : i32
    %c0_i32_0 = arith.constant 0 : i32
    %c0_i32_1 = arith.constant 0 : i32
    return %c0_i32, %c0_i32_0 : i32, i32
  }
  func.func @transform_7(%arg0: i32, %arg1: i32) -> (i32, i32) {
    %c0_i32 = arith.constant 0 : i32
    %c0_i32_0 = arith.constant 0 : i32
    %c0_i32_1 = arith.constant 0 : i32
    return %c0_i32, %c0_i32_0 : i32, i32
  }
  func.func @transform_8(%arg0: i32, %arg1: i32) -> (i32, i32) {
    %c0_i32 = arith.constant 0 : i32
    %c0_i32_0 = arith.constant 0 : i32
    %c0_i32_1 = arith.constant 0 : i32
    return %c0_i32, %c0_i32_0 : i32, i32
  }
  func.func @transform_9(%arg0: i32, %arg1: i32) -> (i32, i32) {
    %c0_i32 = arith.constant 0 : i32
    %c0_i32_0 = arith.constant 0 : i32
    %c0_i32_1 = arith.constant 0 : i32
    return %c0_i32, %c0_i32_0 : i32, i32
  }
  func.func @transform_10(%arg0: i32, %arg1: i32) -> (i32, i32) {
    %c0_i32 = arith.constant 0 : i32
    %c0_i32_0 = arith.constant 0 : i32
    %c0_i32_1 = arith.constant 0 : i32
    return %c0_i32, %c0_i32_0 : i32, i32
  }
  func.func @transform_11(%arg0: i32, %arg1: i32) -> (i32, i32) {
    %c0_i32 = arith.constant 0 : i32
    %c0_i32_0 = arith.constant 0 : i32
    %c0_i32_1 = arith.constant 0 : i32
    return %c0_i32, %c0_i32_0 : i32, i32
  }
  func.func @transform_12(%arg0: i32, %arg1: i32) -> (i32, i32) {
    %c0_i32 = arith.constant 0 : i32
    %c0_i32_0 = arith.constant 0 : i32
    %c0_i32_1 = arith.constant 0 : i32
    return %c0_i32, %c0_i32_0 : i32, i32
  }
  func.func @transform_13(%arg0: i32, %arg1: i32) -> (i32, i32) {
    %c0_i32 = arith.constant 0 : i32
    %c0_i32_0 = arith.constant 0 : i32
    return %arg0, %c0_i32 : i32, i32
  }
}

</mosaic_0001>

<llo_original>
// kernel: tpu_custom_call.1
$region0: #{tpu_custom_call.1}
  #allocation0 [shape = 'u32[]', space=smem, size = 0x4, offset = 0x4, fixed_abs, tag = 'smem constant byte address 0x4 - core index']
  #allocation1 [shape = 'u32[144,128]{1,0:T(1,128)}', space=vmem, size = 0x12000, scoped, tag = 'internal scratch']
  #allocation2 [shape = 'f32[2,1024]{1,0:T(2,128)}', space=vmem, size = 0x2000, scoped, tag = 'scratch operand']
  %s0 = inlined_call_operand.vmem [shape: f32[2,256,8], index: 0, kind: input, shape index: {}]
  %s1 = inlined_call_operand.hbm [shape: f32[8,64], index: 1, kind: input, shape index: {}]
  %s2 = inlined_call_operand.hbm [shape: f32[1,64], index: 2, kind: input, shape index: {}]
  %s3 = inlined_call_operand.hbm [shape: f32[64,128], index: 3, kind: input, shape index: {}]
  %s4 = inlined_call_operand.hbm [shape: f32[1,128], index: 4, kind: input, shape index: {}]
  %s5 = inlined_call_operand.hbm [shape: f32[128,1024], index: 5, kind: input, shape index: {}]
  %s6 = inlined_call_operand.hbm [shape: f32[1,1024], index: 6, kind: input, shape index: {}]
  %s7 = inlined_call_operand.hbm [shape: f32[1024,512], index: 7, kind: input, shape index: {}]
  %s8 = inlined_call_operand.hbm [shape: f32[1,512], index: 8, kind: input, shape index: {}]
  %s9 = inlined_call_operand.hbm [shape: f32[512,256], index: 9, kind: input, shape index: {}]
  %s10 = inlined_call_operand.hbm [shape: f32[1,256], index: 10, kind: input, shape index: {}]
  %s11 = inlined_call_operand.hbm [shape: f32[256,128], index: 11, kind: input, shape index: {}]
  %s12 = inlined_call_operand.hbm [shape: f32[1,128], index: 12, kind: input, shape index: {}]
  %s13 = inlined_call_operand.hbm [shape: f32[2,128], index: 13, kind: output, shape index: {}]
  %s14 = sld [smem:[#allocation0]]
  $region179: #{tpu_custom_call.1} parent=0
    _
  %s16 = ssub.s32 1, %s14
  %s17 = scalar_select 0, %s16, %s14
  $region1: #{tpu_custom_call.1} parent=0
    #allocation3 [shape = 'u8[262144]{0}', space=vmem, size = 0x40000, scoped, tag = 'input window, operand 0']
    #allocation4 [shape = 'u8[4096]{0}', space=vmem, size = 0x1000, scoped, tag = 'input window, operand 1, single buffered']
    #allocation5 [shape = 's32[2]{0}', space=sflag, size = 0x8, scoped, tag = 'scoped memory for tpu_custom_call.1']
    #allocation6 [shape = 's32[2]{0}', space=sflag, size = 0x8, scoped, tag = 'scoped memory for tpu_custom_call.1']
    #allocation7 [shape = 'u8[512]{0}', space=vmem, size = 0x400, scoped, tag = 'input window, operand 2, single buffered']
    #allocation8 [shape = 's32[1]{0}', space=sflag, size = 0x4, scoped, tag = 'scoped memory for tpu_custom_call.1']
    #allocation9 [shape = 'u8[32768]{0}', space=vmem, size = 0x8000, scoped, tag = 'input window, operand 3, single buffered']
    #allocation10 [shape = 'u8[512]{0}', space=vmem, size = 0x400, scoped, tag = 'input window, operand 4, single buffered']
    #allocation11 [shape = 's32[1]{0}', space=sflag, size = 0x4, scoped, tag = 'scoped memory for tpu_custom_call.1']
    #allocation12 [shape = 'u8[524288]{0}', space=vmem, size = 0x80000, scoped, tag = 'input window, operand 5, single buffered']
    #allocation13 [shape = 'u8[4096]{0}', space=vmem, size = 0x1000, scoped, tag = 'input window, operand 6, single buffered']
    #allocation14 [shape = 's32[1]{0}', space=sflag, size = 0x4, scoped, tag = 'scoped memory for tpu_custom_call.1']
    #allocation15 [shape = 'u8[2097152]{0}', space=vmem, size = 0x200000, scoped, tag = 'input window, operand 7, single buffered']
    #allocation16 [shape = 'u8[2048]{0}', space=vmem, size = 0x800, scoped, tag = 'input window, operand 8, single buffered']
    #allocation17 [shape = 's32[1]{0}', space=sflag, size = 0x4, scoped, tag = 'scoped memory for tpu_custom_call.1']
    #allocation18 [shape = 'u8[524288]{0}', space=vmem, size = 0x80000, scoped, tag = 'input window, operand 9, single buffered']
    #allocation19 [shape = 'u8[1024]{0}', space=vmem, size = 0x400, scoped, tag = 'input window, operand 10, single buffered']
    #allocation20 [shape = 's32[1]{0}', space=sflag, size = 0x4, scoped, tag = 'scoped memory for tpu_custom_call.1']
    #allocation21 [shape = 'u8[131072]{0}', space=vmem, size = 0x20000, scoped, tag = 'input window, operand 11, single buffered']
    #allocation22 [shape = 'u8[512]{0}', space=vmem, size = 0x400, scoped, tag = 'input window, operand 12, single buffered']
    #allocation23 [shape = 's32[1]{0}', space=sflag, size = 0x4, scoped, tag = 'scoped memory for tpu_custom_call.1']
    #allocation24 [shape = 'u8[1024]{0}', space=vmem, size = 0x400, scoped, tag = 'output window, operand 0, single buffered']
    %18 = vsyncpa [#allocation5], 0
    %19 = vsyncpa [#allocation8], 0
    %20 = vsyncpa [#allocation11], 0
    %21 = vsyncpa [#allocation14], 0
    %22 = vsyncpa [#allocation17], 0
    %23 = vsyncpa [#allocation20], 0
    %24 = vsyncpa [#allocation23], 0
    %25 = vsyncpa [#allocation6], 0
    loop: start=0, step=1, limit=4
    $region2: #{tpu_custom_call.1} parent=1 // loop_pre_header
      _
    $region3: #{tpu_custom_call.1} parent=1 // loop_header
      %s27 = sphi 0, %s31
      %p28 = scmp.ge.s32.totalorder %s27, 4
      %s34 = sphi 0, %s46
      %s35 = sphi 0, %s42
      %s36 = sphi 0, %s34
      %s37 = sphi 0, %s35
      %s38 = sphi 0, %s36
      %s39 = sphi 0, %s37
      %s51 = sphi 0, %s53
      %s54 = sphi 0, %s51
      %s55 = sphi 0, %s54
      %s71 = sphi 0, %s55
      %s75 = sphi 0, %s75
      %s77 = sphi 0, %s75
      %s78 = sphi 0, %s77
      %s92 = sphi 0, %s78
      %s96 = sphi 0, %s96
      %s98 = sphi 0, %s96
      %s99 = sphi 0, %s98
      %s113 = sphi 0, %s99
      %s117 = sphi 0, %s117
      %s119 = sphi 0, %s117
      %s120 = sphi 0, %s119
      %s134 = sphi 0, %s120
      %s138 = sphi 0, %s138
      %s140 = sphi 0, %s138
      %s141 = sphi 0, %s140
      %s155 = sphi 0, %s141
      %s159 = sphi 0, %s159
      %s161 = sphi 0, %s159
      %s162 = sphi 0, %s161
      %s176 = sphi 0, %s162
      %s180 = sphi 0, %s180
      %s182 = sphi 0, %s180
      %s183 = sphi 0, %s182
      %s197 = sphi 0, %s183
      %s201 = sphi 0, %s201
      %s203 = sphi 0, %s201
      %s204 = sphi 0, %s203
      %s218 = sphi 0, %s204
      %s222 = sphi 0, %s222
      %s224 = sphi 0, %s222
      %s225 = sphi 0, %s224
      %s239 = sphi 0, %s225
      %s243 = sphi 0, %s243
      %s245 = sphi 0, %s243
      %s246 = sphi 0, %s245
      %s260 = sphi 0, %s246
      %s264 = sphi 0, %s264
      %s266 = sphi 0, %s264
      %s267 = sphi 0, %s266
      %s281 = sphi 0, %s267
      %s285 = sphi 0, %s285
      %s287 = sphi 0, %s285
      %s288 = sphi 0, %s287
      %s302 = sphi 0, %s288
      %s306 = sphi 0, %s306
      %s308 = sphi 0, %s306
      %s309 = sphi 0, %s308
      %s323 = sphi 0, %s309
      %s329 = sphi 0, %s331
      %s332 = sphi 0, %s329
      %s333 = sphi 0, %s332
      %s349 = sphi 0, %s333
    $region4: #{tpu_custom_call.1} parent=1 // loop_header_branch
      %30 = sbr.rel (%p28) target = $region8
    $region5: #{tpu_custom_call.1} parent=1 // loop_body
      %s32 = ssub.s32 %s27, 1
      %s33 = ssub.s32 %s27, 2
      %s40 = sadd.s32 1, %s35
      %p41 = scmp.ge.s32.totalorder %s40, 2
      %s42 = scalar_select %p41, 0, %s40
      %s43 = sadd.s32 1, %s34
      %s44 = scalar_select %p41, %s43, %s34
      %p45 = scmp.ge.s32.totalorder %s44, 1
      %s46 = scalar_select %p45, 0, %s44
      %s47 = ssub.s32 %s34, %s46
      %s48 = ssub.s32 %s35, %s42
      %s49 = sor.u32 %s47, %s48
      %p50 = scmp.eq.s32.totalorder %s49, 0
      %s52 = sadd.s32 %s51, 1
      %s53 = scalar_select %p50, %s51, %s52
      %p56 = pneg %p50
      %p57 = scmp.eq.s32.totalorder %s27, 1
      %p58 = por %p56, %p57
      %p59 = scmp.ne.s32.totalorder %s51, %s54
      %p60 = scmp.eq.s32.totalorder %s27, 0
      %p61 = por %p59, %p60
      %p62 = scmp.ne.s32.totalorder %s51, %s54
      %p63 = scmp.eq.s32.totalorder %s32, 1
      %p64 = por %p62, %p63
      %p65 = scmp.ne.s32.totalorder %s54, %s55
      %p66 = scmp.eq.s32.totalorder %s32, 0
      %p67 = por %p65, %p66
      %p68 = scmp.ne.s32.totalorder %s54, %s55
      %p69 = scmp.eq.s32.totalorder %s33, 1
      %p70 = por %p68, %p69
      %p72 = scmp.ne.s32.totalorder %s55, %s71
      %p73 = scmp.eq.s32.totalorder %s33, 0
      %p74 = por %p72, %p73
      %s76 = sadd.s32 %s75, 1
      %p79 = scmp.eq.s32.totalorder %s27, 1
      %p80 = scmp.ne.s32.totalorder %s75, %s77
      %p81 = scmp.eq.s32.totalorder %s27, 0
      %p82 = por %p80, %p81
      %p83 = scmp.ne.s32.totalorder %s75, %s77
      %p84 = scmp.eq.s32.totalorder %s32, 1
      %p85 = por %p83, %p84
      %p86 = scmp.ne.s32.totalorder %s77, %s78
      %p87 = scmp.eq.s32.totalorder %s32, 0
      %p88 = por %p86, %p87
      %p89 = scmp.ne.s32.totalorder %s77, %s78
      %p90 = scmp.eq.s32.totalorder %s33, 1
      %p91 = por %p89, %p90
      %p93 = scmp.ne.s32.totalorder %s78, %s92
      %p94 = scmp.eq.s32.totalorder %s33, 0
      %p95 = por %p93, %p94
      %s97 = sadd.s32 %s96, 1
      %p100 = scmp.eq.s32.totalorder %s27, 1
      %p101 = scmp.ne.s32.totalorder %s96, %s98
      %p102 = scmp.eq.s32.totalorder %s27, 0
      %p103 = por %p101, %p102
      %p104 = scmp.ne.s32.totalorder %s96, %s98
      %p105 = scmp.eq.s32.totalorder %s32, 1
      %p106 = por %p104, %p105
      %p107 = scmp.ne.s32.totalorder %s98, %s99
      %p108 = scmp.eq.s32.totalorder %s32, 0
      %p109 = por %p107, %p108
      %p110 = scmp.ne.s32.totalorder %s98, %s99
      %p111 = scmp.eq.s32.totalorder %s33, 1
      %p112 = por %p110, %p111
      %p114 = scmp.ne.s32.totalorder %s99, %s113
      %p115 = scmp.eq.s32.totalorder %s33, 0
      %p116 = por %p114, %p115
      %s118 = sadd.s32 %s117, 1
      %p121 = scmp.eq.s32.totalorder %s27, 1
      %p122 = scmp.ne.s32.totalorder %s117, %s119
      %p123 = scmp.eq.s32.totalorder %s27, 0
      %p124 = por %p122, %p123
      %p125 = scmp.ne.s32.totalorder %s117, %s119
      %p126 = scmp.eq.s32.totalorder %s32, 1
      %p127 = por %p125, %p126
      %p128 = scmp.ne.s32.totalorder %s119, %s120
      %p129 = scmp.eq.s32.totalorder %s32, 0
      %p130 = por %p128, %p129
      %p131 = scmp.ne.s32.totalorder %s119, %s120
      %p132 = scmp.eq.s32.totalorder %s33, 1
      %p133 = por %p131, %p132
      %p135 = scmp.ne.s32.totalorder %s120, %s134
      %p136 = scmp.eq.s32.totalorder %s33, 0
      %p137 = por %p135, %p136
      %s139 = sadd.s32 %s138, 1
      %p142 = scmp.eq.s32.totalorder %s27, 1
      %p143 = scmp.ne.s32.totalorder %s138, %s140
      %p144 = scmp.eq.s32.totalorder %s27, 0
      %p145 = por %p143, %p144
      %p146 = scmp.ne.s32.totalorder %s138, %s140
      %p147 = scmp.eq.s32.totalorder %s32, 1
      %p148 = por %p146, %p147
      %p149 = scmp.ne.s32.totalorder %s140, %s141
      %p150 = scmp.eq.s32.totalorder %s32, 0
      %p151 = por %p149, %p150
      %p152 = scmp.ne.s32.totalorder %s140, %s141
      %p153 = scmp.eq.s32.totalorder %s33, 1
      %p154 = por %p152, %p153
      %p156 = scmp.ne.s32.totalorder %s141, %s155
      %p157 = scmp.eq.s32.totalorder %s33, 0
      %p158 = por %p156, %p157
      %s160 = sadd.s32 %s159, 1
      %p163 = scmp.eq.s32.totalorder %s27, 1
      %p164 = scmp.ne.s32.totalorder %s159, %s161
      %p165 = scmp.eq.s32.totalorder %s27, 0
      %p166 = por %p164, %p165
      %p167 = scmp.ne.s32.totalorder %s159, %s161
      %p168 = scmp.eq.s32.totalorder %s32, 1
      %p169 = por %p167, %p168
      %p170 = scmp.ne.s32.totalorder %s161, %s162
      %p171 = scmp.eq.s32.totalorder %s32, 0
      %p172 = por %p170, %p171
      %p173 = scmp.ne.s32.totalorder %s161, %s162
      %p174 = scmp.eq.s32.totalorder %s33, 1
      %p175 = por %p173, %p174
      %p177 = scmp.ne.s32.totalorder %s162, %s176
      %p178 = scmp.eq.s32.totalorder %s33, 0
      %p179 = por %p177, %p178
      %s181 = sadd.s32 %s180, 1
      %p184 = scmp.eq.s32.totalorder %s27, 1
      %p185 = scmp.ne.s32.totalorder %s180, %s182
      %p186 = scmp.eq.s32.totalorder %s27, 0
      %p187 = por %p185, %p186
      %p188 = scmp.ne.s32.totalorder %s180, %s182
      %p189 = scmp.eq.s32.totalorder %s32, 1
      %p190 = por %p188, %p189
      %p191 = scmp.ne.s32.totalorder %s182, %s183
      %p192 = scmp.eq.s32.totalorder %s32, 0
      %p193 = por %p191, %p192
      %p194 = scmp.ne.s32.totalorder %s182, %s183
      %p195 = scmp.eq.s32.totalorder %s33, 1
      %p196 = por %p194, %p195
      %p198 = scmp.ne.s32.totalorder %s183, %s197
      %p199 = scmp.eq.s32.totalorder %s33, 0
      %p200 = por %p198, %p199
      %s202 = sadd.s32 %s201, 1
      %p205 = scmp.eq.s32.totalorder %s27, 1
      %p206 = scmp.ne.s32.totalorder %s201, %s203
      %p207 = scmp.eq.s32.totalorder %s27, 0
      %p208 = por %p206, %p207
      %p209 = scmp.ne.s32.totalorder %s201, %s203
      %p210 = scmp.eq.s32.totalorder %s32, 1
      %p211 = por %p209, %p210
      %p212 = scmp.ne.s32.totalorder %s203, %s204
      %p213 = scmp.eq.s32.totalorder %s32, 0
      %p214 = por %p212, %p213
      %p215 = scmp.ne.s32.totalorder %s203, %s204
      %p216 = scmp.eq.s32.totalorder %s33, 1
      %p217 = por %p215, %p216
      %p219 = scmp.ne.s32.totalorder %s204, %s218
      %p220 = scmp.eq.s32.totalorder %s33, 0
      %p221 = por %p219, %p220
      %s223 = sadd.s32 %s222, 1
      %p226 = scmp.eq.s32.totalorder %s27, 1
      %p227 = scmp.ne.s32.totalorder %s222, %s224
      %p228 = scmp.eq.s32.totalorder %s27, 0
      %p229 = por %p227, %p228
      %p230 = scmp.ne.s32.totalorder %s222, %s224
      %p231 = scmp.eq.s32.totalorder %s32, 1
      %p232 = por %p230, %p231
      %p233 = scmp.ne.s32.totalorder %s224, %s225
      %p234 = scmp.eq.s32.totalorder %s32, 0
      %p235 = por %p233, %p234
      %p236 = scmp.ne.s32.totalorder %s224, %s225
      %p237 = scmp.eq.s32.totalorder %s33, 1
      %p238 = por %p236, %p237
      %p240 = scmp.ne.s32.totalorder %s225, %s239
      %p241 = scmp.eq.s32.totalorder %s33, 0
      %p242 = por %p240, %p241
      %s244 = sadd.s32 %s243, 1
      %p247 = scmp.eq.s32.totalorder %s27, 1
      %p248 = scmp.ne.s32.totalorder %s243, %s245
      %p249 = scmp.eq.s32.totalorder %s27, 0
      %p250 = por %p248, %p249
      %p251 = scmp.ne.s32.totalorder %s243, %s245
      %p252 = scmp.eq.s32.totalorder %s32, 1
      %p253 = por %p251, %p252
      %p254 = scmp.ne.s32.totalorder %s245, %s246
      %p255 = scmp.eq.s32.totalorder %s32, 0
      %p256 = por %p254, %p255
      %p257 = scmp.ne.s32.totalorder %s245, %s246
      %p258 = scmp.eq.s32.totalorder %s33, 1
      %p259 = por %p257, %p258
      %p261 = scmp.ne.s32.totalorder %s246, %s260
      %p262 = scmp.eq.s32.totalorder %s33, 0
      %p263 = por %p261, %p262
      %s265 = sadd.s32 %s264, 1
      %p268 = scmp.eq.s32.totalorder %s27, 1
      %p269 = scmp.ne.s32.totalorder %s264, %s266
      %p270 = scmp.eq.s32.totalorder %s27, 0
      %p271 = por %p269, %p270
      %p272 = scmp.ne.s32.totalorder %s264, %s266
      %p273 = scmp.eq.s32.totalorder %s32, 1
      %p274 = por %p272, %p273
      %p275 = scmp.ne.s32.totalorder %s266, %s267
      %p276 = scmp.eq.s32.totalorder %s32, 0
      %p277 = por %p275, %p276
      %p278 = scmp.ne.s32.totalorder %s266, %s267
      %p279 = scmp.eq.s32.totalorder %s33, 1
      %p280 = por %p278, %p279
      %p282 = scmp.ne.s32.totalorder %s267, %s281
      %p283 = scmp.eq.s32.totalorder %s33, 0
      %p284 = por %p282, %p283
      %s286 = sadd.s32 %s285, 1
      %p289 = scmp.eq.s32.totalorder %s27, 1
      %p290 = scmp.ne.s32.totalorder %s285, %s287
      %p291 = scmp.eq.s32.totalorder %s27, 0
      %p292 = por %p290, %p291
      %p293 = scmp.ne.s32.totalorder %s285, %s287
      %p294 = scmp.eq.s32.totalorder %s32, 1
      %p295 = por %p293, %p294
      %p296 = scmp.ne.s32.totalorder %s287, %s288
      %p297 = scmp.eq.s32.totalorder %s32, 0
      %p298 = por %p296, %p297
      %p299 = scmp.ne.s32.totalorder %s287, %s288
      %p300 = scmp.eq.s32.totalorder %s33, 1
      %p301 = por %p299, %p300
      %p303 = scmp.ne.s32.totalorder %s288, %s302
      %p304 = scmp.eq.s32.totalorder %s33, 0
      %p305 = por %p303, %p304
      %s307 = sadd.s32 %s306, 1
      %p310 = scmp.eq.s32.totalorder %s27, 1
      %p311 = scmp.ne.s32.totalorder %s306, %s308
      %p312 = scmp.eq.s32.totalorder %s27, 0
      %p313 = por %p311, %p312
      %p314 = scmp.ne.s32.totalorder %s306, %s308
      %p315 = scmp.eq.s32.totalorder %s32, 1
      %p316 = por %p314, %p315
      %p317 = scmp.ne.s32.totalorder %s308, %s309
      %p318 = scmp.eq.s32.totalorder %s32, 0
      %p319 = por %p317, %p318
      %p320 = scmp.ne.s32.totalorder %s308, %s309
      %p321 = scmp.eq.s32.totalorder %s33, 1
      %p322 = por %p320, %p321
      %p324 = scmp.ne.s32.totalorder %s309, %s323
      %p325 = scmp.eq.s32.totalorder %s33, 0
      %p326 = por %p324, %p325
      %s327 = ssub.s32 %s34, %s46
      %p328 = scmp.eq.s32.totalorder %s327, 0
      %s330 = sadd.s32 %s329, 1
      %s331 = scalar_select %p328, %s329, %s330
      %p334 = pneg %p328
      %p335 = scmp.eq.s32.totalorder %s27, 1
      %p336 = por %p334, %p335
      %p337 = scmp.ne.s32.totalorder %s329, %s332
      %p338 = scmp.eq.s32.totalorder %s27, 0
      %p339 = por %p337, %p338
      %p340 = scmp.ne.s32.totalorder %s329, %s332
      %p341 = scmp.eq.s32.totalorder %s32, 1
      %p342 = por %p340, %p341
      %p343 = scmp.ne.s32.totalorder %s332, %s333
      %p344 = scmp.eq.s32.totalorder %s32, 0
      %p345 = por %p343, %p344
      %p346 = scmp.ne.s32.totalorder %s332, %s333
      %p347 = scmp.eq.s32.totalorder %s33, 1
      %p348 = por %p346, %p347
      %p350 = scmp.ne.s32.totalorder %s333, %s349
      %p351 = scmp.eq.s32.totalorder %s33, 0
      %p352 = por %p350, %p351
      %p353 = scmp.le.s32.totalorder 1, %s27
      %p354 = scmp.lt.s32.totalorder %s27, 3
      %p355 = pnand %p353, %p354
      %p356 = pneg %p355
      // Predicated region
      $region9: #{tpu_custom_call.1} parent=5 // pred_check
        _
      $region10: #{tpu_custom_call.1} parent=5 // pred_check_branch
        %358 = sbr.rel (%p355) target = $region12
      $region11: #{tpu_custom_call.1} parent=5 // pred_region
        %s359 = ssub.s32 %s27, 1
        // Predicated region
        $region13: #{tpu_custom_call.1} parent=11 // pred_check
          %p360 = pneg %p88
        $region14: #{tpu_custom_call.1} parent=11 // pred_check_branch
          %362 = sbr.rel (%p360) target = $region16
        $region15: #{tpu_custom_call.1} parent=11 // pred_region
          %s364 = ssub.s32 128, 128
          %365 = vsyncadd [#allocation5], %s364
          %s367 = sshll.u32 [#allocation4], 4
          %s368 = int_to_ptr.vmem [resolvable:$true] %s367
          %370 = dma.hbm_to_vmem [thread:$0]  %s1, 128, %s368, [#allocation5]
        $region16: #{tpu_custom_call.1} parent=11 // pred_fallthru
          _
        // Predicated region
        $region17: #{tpu_custom_call.1} parent=11 // pred_check
          %p371 = pneg %p109
        $region18: #{tpu_custom_call.1} parent=11 // pred_check_branch
          %373 = sbr.rel (%p371) target = $region20
        $region19: #{tpu_custom_call.1} parent=11 // pred_region
          %s375 = ssub.s32 16, 16
          %376 = vsyncadd [#allocation8], %s375
          %s378 = sshll.u32 [#allocation7], 4
          %s379 = int_to_ptr.vmem [resolvable:$true] %s378
          %381 = dma.hbm_to_vmem [thread:$0]  %s2, 16, %s379, [#allocation8]
        $region20: #{tpu_custom_call.1} parent=11 // pred_fallthru
          _
        // Predicated region
        $region21: #{tpu_custom_call.1} parent=11 // pred_check
          %p382 = pneg %p130
        $region22: #{tpu_custom_call.1} parent=11 // pred_check_branch
          %384 = sbr.rel (%p382) target = $region24
        $region23: #{tpu_custom_call.1} parent=11 // pred_region
          %s386 = ssub.s32 1024, 1024
          %387 = vsyncadd [#allocation8], %s386
          %s388 = sshll.u32 [#allocation9], 4
          %s389 = int_to_ptr.vmem [resolvable:$true] %s388
          %394 = dma.hbm_to_vmem [thread:$0]  %s3, 1024, %s389, [#allocation8], 128, 128, 8
        $region24: #{tpu_custom_call.1} parent=11 // pred_fallthru
          _
        // Predicated region
        $region25: #{tpu_custom_call.1} parent=11 // pred_check
          %p395 = pneg %p151
        $region26: #{tpu_custom_call.1} parent=11 // pred_check_branch
          %397 = sbr.rel (%p395) target = $region28
        $region27: #{tpu_custom_call.1} parent=11 // pred_region
          %s399 = ssub.s32 16, 16
          %400 = vsyncadd [#allocation11], %s399
          %s402 = sshll.u32 [#allocation10], 4
          %s403 = int_to_ptr.vmem [resolvable:$true] %s402
          %405 = dma.hbm_to_vmem [thread:$0]  %s4, 16, %s403, [#allocation11]
        $region28: #{tpu_custom_call.1} parent=11 // pred_fallthru
          _
        // Predicated region
        $region29: #{tpu_custom_call.1} parent=11 // pred_check
          %p406 = pneg %p172
        $region30: #{tpu_custom_call.1} parent=11 // pred_check_branch
          %408 = sbr.rel (%p406) target = $region32
        $region31: #{tpu_custom_call.1} parent=11 // pred_region
          %s410 = ssub.s32 16384, 16384
          %411 = vsyncadd [#allocation11], %s410
          %s412 = sshll.u32 [#allocation12], 4
          %s413 = int_to_ptr.vmem [resolvable:$true] %s412
          %418 = dma.hbm_to_vmem [thread:$0]  %s5, 16384, %s413, [#allocation11], 1024, 1024, 64
        $region32: #{tpu_custom_call.1} parent=11 // pred_fallthru
          _
        // Predicated region
        $region33: #{tpu_custom_call.1} parent=11 // pred_check
          %p419 = pneg %p193
        $region34: #{tpu_custom_call.1} parent=11 // pred_check_branch
          %421 = sbr.rel (%p419) target = $region36
        $region35: #{tpu_custom_call.1} parent=11 // pred_region
          %s423 = ssub.s32 128, 128
          %424 = vsyncadd [#allocation14], %s423
          %s426 = sshll.u32 [#allocation13], 4
          %s427 = int_to_ptr.vmem [resolvable:$true] %s426
          %429 = dma.hbm_to_vmem [thread:$0]  %s6, 128, %s427, [#allocation14]
        $region36: #{tpu_custom_call.1} parent=11 // pred_fallthru
          _
        // Predicated region
        $region37: #{tpu_custom_call.1} parent=11 // pred_check
          %p430 = pneg %p214
        $region38: #{tpu_custom_call.1} parent=11 // pred_check_branch
          %432 = sbr.rel (%p430) target = $region40
        $region39: #{tpu_custom_call.1} parent=11 // pred_region
          %s434 = ssub.s32 65536, 65536
          %435 = vsyncadd [#allocation14], %s434
          %s436 = sshll.u32 [#allocation15], 4
          %s437 = int_to_ptr.vmem [resolvable:$true] %s436
          %442 = dma.hbm_to_vmem [thread:$0]  %s7, 65536, %s437, [#allocation14], 512, 512, 32
        $region40: #{tpu_custom_call.1} parent=11 // pred_fallthru
          _
        // Predicated region
        $region41: #{tpu_custom_call.1} parent=11 // pred_check
          %p443 = pneg %p235
        $region42: #{tpu_custom_call.1} parent=11 // pred_check_branch
          %445 = sbr.rel (%p443) target = $region44
        $region43: #{tpu_custom_call.1} parent=11 // pred_region
          %s447 = ssub.s32 64, 64
          %448 = vsyncadd [#allocation17], %s447
          %s450 = sshll.u32 [#allocation16], 4
          %s451 = int_to_ptr.vmem [resolvable:$true] %s450
          %453 = dma.hbm_to_vmem [thread:$0]  %s8, 64, %s451, [#allocation17]
        $region44: #{tpu_custom_call.1} parent=11 // pred_fallthru
          _
        // Predicated region
        $region45: #{tpu_custom_call.1} parent=11 // pred_check
          %p454 = pneg %p256
        $region46: #{tpu_custom_call.1} parent=11 // pred_check_branch
          %456 = sbr.rel (%p454) target = $region48
        $region47: #{tpu_custom_call.1} parent=11 // pred_region
          %s458 = ssub.s32 16384, 16384
          %459 = vsyncadd [#allocation17], %s458
          %s460 = sshll.u32 [#allocation18], 4
          %s461 = int_to_ptr.vmem [resolvable:$true] %s460
          %466 = dma.hbm_to_vmem [thread:$0]  %s9, 16384, %s461, [#allocation17], 256, 256, 16
        $region48: #{tpu_custom_call.1} parent=11 // pred_fallthru
          _
        // Predicated region
        $region49: #{tpu_custom_call.1} parent=11 // pred_check
          %p467 = pneg %p277
        $region50: #{tpu_custom_call.1} parent=11 // pred_check_branch
          %469 = sbr.rel (%p467) target = $region52
        $region51: #{tpu_custom_call.1} parent=11 // pred_region
          %s471 = ssub.s32 32, 32
          %472 = vsyncadd [#allocation20], %s471
          %s474 = sshll.u32 [#allocation19], 4
          %s475 = int_to_ptr.vmem [resolvable:$true] %s474
          %477 = dma.hbm_to_vmem [thread:$0]  %s10, 32, %s475, [#allocation20]
        $region52: #{tpu_custom_call.1} parent=11 // pred_fallthru
          _
        // Predicated region
        $region53: #{tpu_custom_call.1} parent=11 // pred_check
          %p478 = pneg %p298
        $region54: #{tpu_custom_call.1} parent=11 // pred_check_branch
          %480 = sbr.rel (%p478) target = $region56
        $region55: #{tpu_custom_call.1} parent=11 // pred_region
          %s482 = ssub.s32 4096, 4096
          %483 = vsyncadd [#allocation20], %s482
          %s484 = sshll.u32 [#allocation21], 4
          %s485 = int_to_ptr.vmem [resolvable:$true] %s484
          %490 = dma.hbm_to_vmem [thread:$0]  %s11, 4096, %s485, [#allocation20], 128, 128, 8
        $region56: #{tpu_custom_call.1} parent=11 // pred_fallthru
          _
        // Predicated region
        $region57: #{tpu_custom_call.1} parent=11 // pred_check
          %p491 = pneg %p319
        $region58: #{tpu_custom_call.1} parent=11 // pred_check_branch
          %493 = sbr.rel (%p491) target = $region60
        $region59: #{tpu_custom_call.1} parent=11 // pred_region
          %s495 = ssub.s32 16, 16
          %496 = vsyncadd [#allocation23], %s495
          %s498 = sshll.u32 [#allocation22], 4
          %s499 = int_to_ptr.vmem [resolvable:$true] %s498
          %501 = dma.hbm_to_vmem [thread:$0]  %s12, 16, %s499, [#allocation23]
        $region60: #{tpu_custom_call.1} parent=11 // pred_fallthru
          _
      $region12: #{tpu_custom_call.1} parent=5 // pred_fallthru
        _
      %p502 = scmp.lt.s32.totalorder %s27, 2
      // Predicated region
      $region61: #{tpu_custom_call.1} parent=5 // pred_check
        %p503 = pneg %p502
      $region62: #{tpu_custom_call.1} parent=5 // pred_check_branch
        %505 = sbr.rel (%p503) target = $region64
      $region63: #{tpu_custom_call.1} parent=5 // pred_region
        // Predicated region
        $region65: #{tpu_custom_call.1} parent=63 // pred_check
          %p506 = pneg %p61
        $region66: #{tpu_custom_call.1} parent=63 // pred_check_branch
          %508 = sbr.rel (%p506) target = $region68
        $region67: #{tpu_custom_call.1} parent=63 // pred_region
          %s509 = sand.u32 %s51, 1
          %s510 = sand.u32 %s51, 1
          %s511 = smul.addr %s510, 256
          %s512 = scalar_lea.vmem [#allocation3], %s511
          %s513 = smul.u32 2, %s34
          %s514 = smul.u32 16, %s35
          %s515 = smul.addr %s513, 32
          %s516 = sadd.s32 %s514, %s515
          %s517 = smul.addr %s516, 8
          %s518 = scalar_lea.vmem %s0, %s517
          // Predicated region
          $region69: #{tpu_custom_call.1} parent=67 // pred_check
            _
          $region70: #{tpu_custom_call.1} parent=67 // pred_check_branch
            %520 = sbr.rel (0) target = $region72
          $region71: #{tpu_custom_call.1} parent=67 // pred_region
            // Predicated region
            $region73: #{tpu_custom_call.1} parent=71 // pred_check
              _
            $region74: #{tpu_custom_call.1} parent=71 // pred_check_branch
              %522 = sbr.rel (0) target = $region76
            $region75: #{tpu_custom_call.1} parent=71 // pred_region
              // Predicated region
              $region88: #{tpu_custom_call.1} parent=75 // pred_check
                _
              $region89: #{tpu_custom_call.1} parent=75 // pred_check_branch
                %600 = sbr.rel (0) target = $region91
              $region90: #{tpu_custom_call.1} parent=75 // pred_region
                loop: start=0, step=1, limit=1
                $region92: #{tpu_custom_call.1} parent=90 // loop_pre_header
                  _
                $region93: #{tpu_custom_call.1} parent=90 // loop_header
                  %s602 = sphi 0, %s606
                  %p603 = scmp.ge.s32.totalorder %s602, 1
                  %s607 = sphi %s518, %s518
                  %s608 = sphi %s512, %s512
                $region94: #{tpu_custom_call.1} parent=90 // loop_header_branch
                  %605 = sbr.rel (%p603) target = $region98
                $region95: #{tpu_custom_call.1} parent=90 // loop_body
                  %v609 = vld [vmem:[%s607] sm:$0xff]
                  %610 = vst [vmem:[%s608] sm:$0xff] %v609
                  %v611 = vld [vmem:[%s607 + $0x8] sm:$0xff]
                  %612 = vst [vmem:[%s608 + $0x8] sm:$0xff] %v611
                  %v613 = vld [vmem:[%s607 + $0x10] sm:$0xff]
                  %614 = vst [vmem:[%s608 + $0x10] sm:$0xff] %v613
                  %v615 = vld [vmem:[%s607 + $0x18] sm:$0xff]
                  %616 = vst [vmem:[%s608 + $0x18] sm:$0xff] %v615
                  %v617 = vld [vmem:[%s607 + $0x20] sm:$0xff]
                  %618 = vst [vmem:[%s608 + $0x20] sm:$0xff] %v617
                  %v619 = vld [vmem:[%s607 + $0x28] sm:$0xff]
                  %620 = vst [vmem:[%s608 + $0x28] sm:$0xff] %v619
                  %v621 = vld [vmem:[%s607 + $0x30] sm:$0xff]
                  %622 = vst [vmem:[%s608 + $0x30] sm:$0xff] %v621
                  %v623 = vld [vmem:[%s607 + $0x38] sm:$0xff]
                  %624 = vst [vmem:[%s608 + $0x38] sm:$0xff] %v623
                  %v625 = vld [vmem:[%s607 + $0x40] sm:$0xff]
                  %626 = vst [vmem:[%s608 + $0x40] sm:$0xff] %v625
                  %v627 = vld [vmem:[%s607 + $0x48] sm:$0xff]
                  %628 = vst [vmem:[%s608 + $0x48] sm:$0xff] %v627
                  %v629 = vld [vmem:[%s607 + $0x50] sm:$0xff]
                  %630 = vst [vmem:[%s608 + $0x50] sm:$0xff] %v629
                  %v631 = vld [vmem:[%s607 + $0x58] sm:$0xff]
                  %632 = vst [vmem:[%s608 + $0x58] sm:$0xff] %v631
                  %v633 = vld [vmem:[%s607 + $0x60] sm:$0xff]
                  %634 = vst [vmem:[%s608 + $0x60] sm:$0xff] %v633
                  %v635 = vld [vmem:[%s607 + $0x68] sm:$0xff]
                  %636 = vst [vmem:[%s608 + $0x68] sm:$0xff] %v635
                  %v637 = vld [vmem:[%s607 + $0x70] sm:$0xff]
                  %638 = vst [vmem:[%s608 + $0x70] sm:$0xff] %v637
                  %v639 = vld [vmem:[%s607 + $0x78] sm:$0xff]
                  %640 = vst [vmem:[%s608 + $0x78] sm:$0xff] %v639
                  %v641 = vld [vmem:[%s607 + $0x100] sm:$0xff]
                  %642 = vst [vmem:[%s608 + $0x80] sm:$0xff] %v641
                  %v643 = vld [vmem:[%s607 + $0x108] sm:$0xff]
                  %644 = vst [vmem:[%s608 + $0x88] sm:$0xff] %v643
                  %v645 = vld [vmem:[%s607 + $0x110] sm:$0xff]
                  %646 = vst [vmem:[%s608 + $0x90] sm:$0xff] %v645
                  %v647 = vld [vmem:[%s607 + $0x118] sm:$0xff]
                  %648 = vst [vmem:[%s608 + $0x98] sm:$0xff] %v647
                  %v649 = vld [vmem:[%s607 + $0x120] sm:$0xff]
                  %650 = vst [vmem:[%s608 + $0xa0] sm:$0xff] %v649
                  %v651 = vld [vmem:[%s607 + $0x128] sm:$0xff]
                  %652 = vst [vmem:[%s608 + $0xa8] sm:$0xff] %v651
                  %v653 = vld [vmem:[%s607 + $0x130] sm:$0xff]
                  %654 = vst [vmem:[%s608 + $0xb0] sm:$0xff] %v653
                  %v655 = vld [vmem:[%s607 + $0x138] sm:$0xff]
                  %656 = vst [vmem:[%s608 + $0xb8] sm:$0xff] %v655
                  %v657 = vld [vmem:[%s607 + $0x140] sm:$0xff]
                  %658 = vst [vmem:[%s608 + $0xc0] sm:$0xff] %v657
                  %v659 = vld [vmem:[%s607 + $0x148] sm:$0xff]
                  %660 = vst [vmem:[%s608 + $0xc8] sm:$0xff] %v659
                  %v661 = vld [vmem:[%s607 + $0x150] sm:$0xff]
                  %662 = vst [vmem:[%s608 + $0xd0] sm:$0xff] %v661
                  %v663 = vld [vmem:[%s607 + $0x158] sm:$0xff]
                  %664 = vst [vmem:[%s608 + $0xd8] sm:$0xff] %v663
                  %v665 = vld [vmem:[%s607 + $0x160] sm:$0xff]
                  %666 = vst [vmem:[%s608 + $0xe0] sm:$0xff] %v665
                  %v667 = vld [vmem:[%s607 + $0x168] sm:$0xff]
                  %668 = vst [vmem:[%s608 + $0xe8] sm:$0xff] %v667
                  %v669 = vld [vmem:[%s607 + $0x170] sm:$0xff]
                  %670 = vst [vmem:[%s608 + $0xf0] sm:$0xff] %v669
                  %v671 = vld [vmem:[%s607 + $0x178] sm:$0xff]
                  %672 = vst [vmem:[%s608 + $0xf8] sm:$0xff] %v671
                $region96: #{tpu_custom_call.1} parent=90 // loop_footer
                  %s606 = sadd.s32 1, %s602
                $region97: #{tpu_custom_call.1} parent=90 // loop_footer_branch
                  %601 = sbr.rel target = $region93
                $region98: #{tpu_custom_call.1} parent=90 // loop_exit
                  _
              $region91: #{tpu_custom_call.1} parent=75 // pred_fallthru
                _
              // Predicated region
              $region99: #{tpu_custom_call.1} parent=75 // pred_check
                _
              $region100: #{tpu_custom_call.1} parent=75 // pred_check_branch
                %674 = sbr.rel target = $region102
              $region101: #{tpu_custom_call.1} parent=75 // pred_region
                _
              $region102: #{tpu_custom_call.1} parent=75 // pred_fallthru
                _
            $region76: #{tpu_custom_call.1} parent=71 // pred_fallthru
              _
            // Predicated region
            $region77: #{tpu_custom_call.1} parent=71 // pred_check
              _
            $region78: #{tpu_custom_call.1} parent=71 // pred_check_branch
              %524 = sbr.rel target = $region80
            $region79: #{tpu_custom_call.1} parent=71 // pred_region
              %s526 = ssub.s32 256, 1
              loop: start=0, step=1, limit=1
              $region81: #{tpu_custom_call.1} parent=79 // loop_pre_header
                _
              $region82: #{tpu_custom_call.1} parent=79 // loop_header
                %s528 = sphi 0, %s532
                %p529 = scmp.ge.s32.totalorder %s528, 1
                %s533 = sphi %s518, %s518
                %s534 = sphi %s512, %s512
              $region83: #{tpu_custom_call.1} parent=79 // loop_header_branch
                %531 = sbr.rel (%p529) target = $region87
              $region84: #{tpu_custom_call.1} parent=79 // loop_body
                %v535 = vld [vmem:[%s533] sm:%s526]
                %536 = vst [vmem:[%s534] sm:%s526] %v535
                %v537 = vld [vmem:[%s533 + $0x8] sm:%s526]
                %538 = vst [vmem:[%s534 + $0x8] sm:%s526] %v537
                %v539 = vld [vmem:[%s533 + $0x10] sm:%s526]
                %540 = vst [vmem:[%s534 + $0x10] sm:%s526] %v539
                %v541 = vld [vmem:[%s533 + $0x18] sm:%s526]
                %542 = vst [vmem:[%s534 + $0x18] sm:%s526] %v541
                %v543 = vld [vmem:[%s533 + $0x20] sm:%s526]
                %544 = vst [vmem:[%s534 + $0x20] sm:%s526] %v543
                %v545 = vld [vmem:[%s533 + $0x28] sm:%s526]
                %546 = vst [vmem:[%s534 + $0x28] sm:%s526] %v545
                %v547 = vld [vmem:[%s533 + $0x30] sm:%s526]
                %548 = vst [vmem:[%s534 + $0x30] sm:%s526] %v547
                %v549 = vld [vmem:[%s533 + $0x38] sm:%s526]
                %550 = vst [vmem:[%s534 + $0x38] sm:%s526] %v549
                %v551 = vld [vmem:[%s533 + $0x40] sm:%s526]
                %552 = vst [vmem:[%s534 + $0x40] sm:%s526] %v551
                %v553 = vld [vmem:[%s533 + $0x48] sm:%s526]
                %554 = vst [vmem:[%s534 + $0x48] sm:%s526] %v553
                %v555 = vld [vmem:[%s533 + $0x50] sm:%s526]
                %556 = vst [vmem:[%s534 + $0x50] sm:%s526] %v555
                %v557 = vld [vmem:[%s533 + $0x58] sm:%s526]
                %558 = vst [vmem:[%s534 + $0x58] sm:%s526] %v557
                %v559 = vld [vmem:[%s533 + $0x60] sm:%s526]
                %560 = vst [vmem:[%s534 + $0x60] sm:%s526] %v559
                %v561 = vld [vmem:[%s533 + $0x68] sm:%s526]
                %562 = vst [vmem:[%s534 + $0x68] sm:%s526] %v561
                %v563 = vld [vmem:[%s533 + $0x70] sm:%s526]
                %564 = vst [vmem:[%s534 + $0x70] sm:%s526] %v563
                %v565 = vld [vmem:[%s533 + $0x78] sm:%s526]
                %566 = vst [vmem:[%s534 + $0x78] sm:%s526] %v565
                %v567 = vld [vmem:[%s533 + $0x100] sm:%s526]
                %568 = vst [vmem:[%s534 + $0x80] sm:%s526] %v567
                %v569 = vld [vmem:[%s533 + $0x108] sm:%s526]
                %570 = vst [vmem:[%s534 + $0x88] sm:%s526] %v569
                %v571 = vld [vmem:[%s533 + $0x110] sm:%s526]
                %572 = vst [vmem:[%s534 + $0x90] sm:%s526] %v571
                %v573 = vld [vmem:[%s533 + $0x118] sm:%s526]
                %574 = vst [vmem:[%s534 + $0x98] sm:%s526] %v573
                %v575 = vld [vmem:[%s533 + $0x120] sm:%s526]
                %576 = vst [vmem:[%s534 + $0xa0] sm:%s526] %v575
                %v577 = vld [vmem:[%s533 + $0x128] sm:%s526]
                %578 = vst [vmem:[%s534 + $0xa8] sm:%s526] %v577
                %v579 = vld [vmem:[%s533 + $0x130] sm:%s526]
                %580 = vst [vmem:[%s534 + $0xb0] sm:%s526] %v579
                %v581 = vld [vmem:[%s533 + $0x138] sm:%s526]
                %582 = vst [vmem:[%s534 + $0xb8] sm:%s526] %v581
                %v583 = vld [vmem:[%s533 + $0x140] sm:%s526]
                %584 = vst [vmem:[%s534 + $0xc0] sm:%s526] %v583
                %v585 = vld [vmem:[%s533 + $0x148] sm:%s526]
                %586 = vst [vmem:[%s534 + $0xc8] sm:%s526] %v585
                %v587 = vld [vmem:[%s533 + $0x150] sm:%s526]
                %588 = vst [vmem:[%s534 + $0xd0] sm:%s526] %v587
                %v589 = vld [vmem:[%s533 + $0x158] sm:%s526]
                %590 = vst [vmem:[%s534 + $0xd8] sm:%s526] %v589
                %v591 = vld [vmem:[%s533 + $0x160] sm:%s526]
                %592 = vst [vmem:[%s534 + $0xe0] sm:%s526] %v591
                %v593 = vld [vmem:[%s533 + $0x168] sm:%s526]
                %594 = vst [vmem:[%s534 + $0xe8] sm:%s526] %v593
                %v595 = vld [vmem:[%s533 + $0x170] sm:%s526]
                %596 = vst [vmem:[%s534 + $0xf0] sm:%s526] %v595
                %v597 = vld [vmem:[%s533 + $0x178] sm:%s526]
                %598 = vst [vmem:[%s534 + $0xf8] sm:%s526] %v597
              $region85: #{tpu_custom_call.1} parent=79 // loop_footer
                %s532 = sadd.s32 1, %s528
              $region86: #{tpu_custom_call.1} parent=79 // loop_footer_branch
                %527 = sbr.rel target = $region82
              $region87: #{tpu_custom_call.1} parent=79 // loop_exit
                _
            $region80: #{tpu_custom_call.1} parent=71 // pred_fallthru
              _
          $region72: #{tpu_custom_call.1} parent=67 // pred_fallthru
            _
          %675 = vnop
        $region68: #{tpu_custom_call.1} parent=63 // pred_fallthru
          _
      $region64: #{tpu_custom_call.1} parent=5 // pred_fallthru
        _
      %p676 = scmp.le.s32.totalorder 1, %s27
      %p677 = scmp.lt.s32.totalorder %s27, 3
      %p678 = pnand %p676, %p677
      %p679 = pneg %p678
      // Predicated region
      $region103: #{tpu_custom_call.1} parent=5 // pred_check
        _
      $region104: #{tpu_custom_call.1} parent=5 // pred_check_branch
        %681 = sbr.rel (%p678) target = $region106
      $region105: #{tpu_custom_call.1} parent=5 // pred_region
        %s682 = ssub.s32 %s27, 1
        %s683 = sand.u32 %s54, 1
        %s684 = sand.u32 %s54, 1
        %s685 = smul.addr %s684, 256
        %s686 = scalar_lea.vmem [#allocation3], %s685
        // Predicated region
        $region107: #{tpu_custom_call.1} parent=105 // pred_check
          %p687 = pneg %p67
        $region108: #{tpu_custom_call.1} parent=105 // pred_check_branch
          %689 = sbr.rel (%p687) target = $region110
        $region109: #{tpu_custom_call.1} parent=105 // pred_region
          _
        $region110: #{tpu_custom_call.1} parent=105 // pred_fallthru
          _
        // Predicated region
        $region111: #{tpu_custom_call.1} parent=105 // pred_check
          %p690 = pneg %p88
        $region112: #{tpu_custom_call.1} parent=105 // pred_check_branch
          %692 = sbr.rel (%p690) target = $region114
        $region113: #{tpu_custom_call.1} parent=105 // pred_region
          %693 = dma.done [#allocation5], 128
        $region114: #{tpu_custom_call.1} parent=105 // pred_fallthru
          _
        // Predicated region
        $region115: #{tpu_custom_call.1} parent=105 // pred_check
          %p694 = pneg %p109
        $region116: #{tpu_custom_call.1} parent=105 // pred_check_branch
          %696 = sbr.rel (%p694) target = $region118
        $region117: #{tpu_custom_call.1} parent=105 // pred_region
          %697 = dma.done [#allocation8], 16
        $region118: #{tpu_custom_call.1} parent=105 // pred_fallthru
          _
        // Predicated region
        $region119: #{tpu_custom_call.1} parent=105 // pred_check
          %p698 = pneg %p130
        $region120: #{tpu_custom_call.1} parent=105 // pred_check_branch
          %700 = sbr.rel (%p698) target = $region122
        $region121: #{tpu_custom_call.1} parent=105 // pred_region
          %701 = dma.done [#allocation8], 1024
        $region122: #{tpu_custom_call.1} parent=105 // pred_fallthru
          _
        // Predicated region
        $region123: #{tpu_custom_call.1} parent=105 // pred_check
          %p702 = pneg %p151
        $region124: #{tpu_custom_call.1} parent=105 // pred_check_branch
          %704 = sbr.rel (%p702) target = $region126
        $region125: #{tpu_custom_call.1} parent=105 // pred_region
          %705 = dma.done [#allocation11], 16
        $region126: #{tpu_custom_call.1} parent=105 // pred_fallthru
          _
        // Predicated region
        $region127: #{tpu_custom_call.1} parent=105 // pred_check
          %p706 = pneg %p172
        $region128: #{tpu_custom_call.1} parent=105 // pred_check_branch
          %708 = sbr.rel (%p706) target = $region130
        $region129: #{tpu_custom_call.1} parent=105 // pred_region
          %709 = dma.done [#allocation11], 16384
        $region130: #{tpu_custom_call.1} parent=105 // pred_fallthru
          _
        // Predicated region
        $region131: #{tpu_custom_call.1} parent=105 // pred_check
          %p710 = pneg %p193
        $region132: #{tpu_custom_call.1} parent=105 // pred_check_branch
          %712 = sbr.rel (%p710) target = $region134
        $region133: #{tpu_custom_call.1} parent=105 // pred_region
          %713 = dma.done [#allocation14], 128
        $region134: #{tpu_custom_call.1} parent=105 // pred_fallthru
          _
        // Predicated region
        $region135: #{tpu_custom_call.1} parent=105 // pred_check
          %p714 = pneg %p214
        $region136: #{tpu_custom_call.1} parent=105 // pred_check_branch
          %716 = sbr.rel (%p714) target = $region138
        $region137: #{tpu_custom_call.1} parent=105 // pred_region
          %717 = dma.done [#allocation14], 65536
        $region138: #{tpu_custom_call.1} parent=105 // pred_fallthru
          _
        // Predicated region
        $region139: #{tpu_custom_call.1} parent=105 // pred_check
          %p718 = pneg %p235
        $region140: #{tpu_custom_call.1} parent=105 // pred_check_branch
          %720 = sbr.rel (%p718) target = $region142
        $region141: #{tpu_custom_call.1} parent=105 // pred_region
          %721 = dma.done [#allocation17], 64
        $region142: #{tpu_custom_call.1} parent=105 // pred_fallthru
          _
        // Predicated region
        $region143: #{tpu_custom_call.1} parent=105 // pred_check
          %p722 = pneg %p256
        $region144: #{tpu_custom_call.1} parent=105 // pred_check_branch
          %724 = sbr.rel (%p722) target = $region146
        $region145: #{tpu_custom_call.1} parent=105 // pred_region
          %725 = dma.done [#allocation17], 16384
        $region146: #{tpu_custom_call.1} parent=105 // pred_fallthru
          _
        // Predicated region
        $region147: #{tpu_custom_call.1} parent=105 // pred_check
          %p726 = pneg %p277
        $region148: #{tpu_custom_call.1} parent=105 // pred_check_branch
          %728 = sbr.rel (%p726) target = $region150
        $region149: #{tpu_custom_call.1} parent=105 // pred_region
          %729 = dma.done [#allocation20], 32
        $region150: #{tpu_custom_call.1} parent=105 // pred_fallthru
          _
        // Predicated region
        $region151: #{tpu_custom_call.1} parent=105 // pred_check
          %p730 = pneg %p298
        $region152: #{tpu_custom_call.1} parent=105 // pred_check_branch
          %732 = sbr.rel (%p730) target = $region154
        $region153: #{tpu_custom_call.1} parent=105 // pred_region
          %733 = dma.done [#allocation20], 4096
        $region154: #{tpu_custom_call.1} parent=105 // pred_fallthru
          _
        // Predicated region
        $region155: #{tpu_custom_call.1} parent=105 // pred_check
          %p734 = pneg %p319
        $region156: #{tpu_custom_call.1} parent=105 // pred_check_branch
          %736 = sbr.rel (%p734) target = $region158
        $region157: #{tpu_custom_call.1} parent=105 // pred_region
          %737 = dma.done [#allocation23], 16
        $region158: #{tpu_custom_call.1} parent=105 // pred_fallthru
          _
        %s738 = sand.u32 %s54, 1
        %s739 = sand.u32 %s54, 1
        %s740 = smul.addr %s739, 256
        %s741 = scalar_lea.vmem [#allocation3], %s740
        %p742 = pneg %p67
        %p743 = pneg %p64
        %p744 = pneg %p88
        %p745 = pneg %p85
        %p746 = pneg %p109
        %p747 = pneg %p106
        %p748 = pneg %p130
        %p749 = pneg %p127
        %p750 = pneg %p151
        %p751 = pneg %p148
        %p752 = pneg %p172
        %p753 = pneg %p169
        %p754 = pneg %p193
        %p755 = pneg %p190
        %p756 = pneg %p214
        %p757 = pneg %p211
        %p758 = pneg %p235
        %p759 = pneg %p232
        %p760 = pneg %p256
        %p761 = pneg %p253
        %p762 = pneg %p277
        %p763 = pneg %p274
        %p764 = pneg %p298
        %p765 = pneg %p295
        %p766 = pneg %p319
        %p767 = pneg %p316
        %p768 = pneg %p345
        %p769 = pneg %p342
        %s770 = smul.u32 2, %s36
        %s771 = smul.u32 16, %s37
        %p772 = scmp.eq.s32.totalorder %s37, 0
        // Predicated region
        $region159: #{tpu_custom_call.1} parent=105 // pred_check
          %p773 = pneg %p772
        $region160: #{tpu_custom_call.1} parent=105 // pred_check_branch
          %775 = sbr.rel (%p773) target = $region162
        $region161: #{tpu_custom_call.1} parent=105 // pred_region
          %776 = vst [vmem:[#allocation2] sm:$0xff] -inf
          %777 = vst [vmem:[#allocation2 + $0x8] sm:$0xff] -inf
        $region162: #{tpu_custom_call.1} parent=105 // pred_fallthru
          _
        %v778 = vld [vmem:[%s686] sm:$0xff]
        %v779 = vld [vmem:[%s686 + $0x8] sm:$0xff]
        %v780 = vld [vmem:[%s686 + $0x10] sm:$0xff]
        %v781 = vld [vmem:[%s686 + $0x18] sm:$0xff]
        %v782 = vld [vmem:[%s686 + $0x20] sm:$0xff]
        %v783 = vld [vmem:[%s686 + $0x28] sm:$0xff]
        %v784 = vld [vmem:[%s686 + $0x30] sm:$0xff]
        %v785 = vld [vmem:[%s686 + $0x38] sm:$0xff]
        %v786 = vld [vmem:[%s686 + $0x40] sm:$0xff]
        %v787 = vld [vmem:[%s686 + $0x48] sm:$0xff]
        %v788 = vld [vmem:[%s686 + $0x50] sm:$0xff]
        %v789 = vld [vmem:[%s686 + $0x58] sm:$0xff]
        %v790 = vld [vmem:[%s686 + $0x60] sm:$0xff]
        %v791 = vld [vmem:[%s686 + $0x68] sm:$0xff]
        %v792 = vld [vmem:[%s686 + $0x70] sm:$0xff]
        %v793 = vld [vmem:[%s686 + $0x78] sm:$0xff]
        %v794 = vld [vmem:[%s686 + $0x80] sm:$0xff]
        %v795 = vld [vmem:[%s686 + $0x88] sm:$0xff]
        %v796 = vld [vmem:[%s686 + $0x90] sm:$0xff]
        %v797 = vld [vmem:[%s686 + $0x98] sm:$0xff]
        %v798 = vld [vmem:[%s686 + $0xa0] sm:$0xff]
        %v799 = vld [vmem:[%s686 + $0xa8] sm:$0xff]
        %v800 = vld [vmem:[%s686 + $0xb0] sm:$0xff]
        %v801 = vld [vmem:[%s686 + $0xb8] sm:$0xff]
        %v802 = vld [vmem:[%s686 + $0xc0] sm:$0xff]
        %v803 = vld [vmem:[%s686 + $0xc8] sm:$0xff]
        %v804 = vld [vmem:[%s686 + $0xd0] sm:$0xff]
        %v805 = vld [vmem:[%s686 + $0xd8] sm:$0xff]
        %v806 = vld [vmem:[%s686 + $0xe0] sm:$0xff]
        %v807 = vld [vmem:[%s686 + $0xe8] sm:$0xff]
        %v808 = vld [vmem:[%s686 + $0xf0] sm:$0xff]
        %v809 = vld [vmem:[%s686 + $0xf8] sm:$0xff]
        %v810 = vld [vmem:[#allocation4] sm:$0xff]
        %v811 = vld [vmem:[#allocation7] sm:$0x1]
        %v813 = vlaneseq
        %v814 = vshrl.u32 %v813, 7
        %v815 = vsub.s32 0, %v814
        %v816 = vrot.slane %v811, %v815
        %vm818 = vcmask 64512
        %v820 = vsel %vm818, %v778, 0
        %v823 = vsel %vm818, %v779, 0
        %v826 = vsel %vm818, %v780, 0
        %v829 = vsel %vm818, %v781, 0
        %v832 = vsel %vm818, %v782, 0
        %v835 = vsel %vm818, %v783, 0
        %v838 = vsel %vm818, %v784, 0
        %v841 = vsel %vm818, %v785, 0
        %v844 = vsel %vm818, %v786, 0
        %v847 = vsel %vm818, %v787, 0
        %v850 = vsel %vm818, %v788, 0
        %v853 = vsel %vm818, %v789, 0
        %v856 = vsel %vm818, %v790, 0
        %v859 = vsel %vm818, %v791, 0
        %v862 = vsel %vm818, %v792, 0
        %v865 = vsel %vm818, %v793, 0
        %v868 = vsel %vm818, %v794, 0
        %v871 = vsel %vm818, %v795, 0
        %v874 = vsel %vm818, %v796, 0
        %v877 = vsel %vm818, %v797, 0
        %v880 = vsel %vm818, %v798, 0
        %v883 = vsel %vm818, %v799, 0
        %v886 = vsel %vm818, %v800, 0
        %v889 = vsel %vm818, %v801, 0
        %v892 = vsel %vm818, %v802, 0
        %v895 = vsel %vm818, %v803, 0
        %v898 = vsel %vm818, %v804, 0
        %v901 = vsel %vm818, %v805, 0
        %v904 = vsel %vm818, %v806, 0
        %v907 = vsel %vm818, %v807, 0
        %v910 = vsel %vm818, %v808, 0
        %v913 = vsel %vm818, %v809, 0
        %915 = vmatprep.subr.mxu0 0.0
        %916 = vmatpush1.msra.mxu0 0.0
        %917 = vmatprep.subr.mxu0 0.0
        %918 = vmatpush1.msra.mxu0 0.0
        %919 = vmatprep.subr.mxu0 0.0
        %920 = vmatpush1.msra.mxu0 0.0
        %921 = vmatprep.subr.mxu0 0.0
        %922 = vmatpush1.msra.mxu0 0.0
        %923 = vmatprep.subr.mxu0 0.0
        %924 = vmatpush1.msra.mxu0 0.0
        %925 = vmatprep.subr.mxu0 0.0
        %926 = vmatpush1.msra.mxu0 0.0
        %927 = vmatprep.subr.mxu0 0.0
        %928 = vmatpush1.msra.mxu0 0.0
        %929 = vmatprep.subr.mxu0 0.0
        %930 = vmatpush1.msra.mxu0 0.0
        %931 = vmatprep.subr.mxu0 0.0
        %932 = vmatpush1.msra.mxu0 0.0
        %933 = vmatprep.subr.mxu0 0.0
        %934 = vmatpush1.msra.mxu0 0.0
        %935 = vmatprep.subr.mxu0 0.0
        %936 = vmatpush1.msra.mxu0 0.0
        %937 = vmatprep.subr.mxu0 0.0
        %938 = vmatpush1.msra.mxu0 0.0
        %939 = vmatprep.subr.mxu0 0.0
        %940 = vmatpush1.msra.mxu0 0.0
        %941 = vmatprep.subr.mxu0 0.0
        %942 = vmatpush1.msra.mxu0 0.0
        %943 = vmatprep.subr.mxu0 0.0
        %944 = vmatpush1.msra.mxu0 0.0
        %945 = vmatprep.subr.mxu0 0.0
        %946 = vmatpush1.msra.mxu0 %v810
        %947 = vmatprep.subr.mxu0 0.0
        %948 = vmatpush2.msra.mxu0 0.0
        %949 = vmatprep.subr.mxu0 0.0
        %950 = vmatpush2.msra.mxu0 0.0
        %951 = vmatprep.subr.mxu0 0.0
        %952 = vmatpush2.msra.mxu0 0.0
        %953 = vmatprep.subr.mxu0 0.0
        %954 = vmatpush2.msra.mxu0 0.0
        %955 = vmatprep.subr.mxu0 0.0
        %956 = vmatpush2.msra.mxu0 0.0
        %957 = vmatprep.subr.mxu0 0.0
        %958 = vmatpush2.msra.mxu0 0.0
        %959 = vmatprep.subr.mxu0 0.0
        %960 = vmatpush2.msra.mxu0 0.0
        %961 = vmatprep.subr.mxu0 0.0
        %962 = vmatpush2.msra.mxu0 0.0
        %963 = vmatprep.subr.mxu0 0.0
        %964 = vmatpush2.msra.mxu0 0.0
        %965 = vmatprep.subr.mxu0 0.0
        %966 = vmatpush2.msra.mxu0 0.0
        %967 = vmatprep.subr.mxu0 0.0
        %968 = vmatpush2.msra.mxu0 0.0
        %969 = vmatprep.subr.mxu0 0.0
        %970 = vmatpush2.msra.mxu0 0.0
        %971 = vmatprep.subr.mxu0 0.0
        %972 = vmatpush2.msra.mxu0 0.0
        %973 = vmatprep.subr.mxu0 0.0
        %974 = vmatpush2.msra.mxu0 0.0
        %975 = vmatprep.subr.mxu0 0.0
        %976 = vmatpush2.msra.mxu0 0.0
        %977 = vmatprep.subr.mxu0 0.0
        %978 = vmatpush2.msra.mxu0 0.0
        %979 = vmatprep.mubr.f32.mxu0 0.0
        %980 = vmatmul.mubr.f32.gmra.mxu0 %v820
        %v981 = vpop.f32.mrf.mxu0
        %v982 = vadd.f32 %v816, %v981
        %v983 = vpop.f32.mrf.mxu0
        %984 = vmatprep.mubr.f32.mxu0 0.0
        %985 = vmatmul.mubr.f32.gmra.mxu0 %v823
        %v986 = vpop.f32.mrf.mxu0
        %v987 = vadd.f32 %v816, %v986
        %v988 = vpop.f32.mrf.mxu0
        %989 = vmatprep.mubr.f32.mxu0 0.0
        %990 = vmatmul.mubr.f32.gmra.mxu0 %v826
        %v991 = vpop.f32.mrf.mxu0
        %v992 = vadd.f32 %v816, %v991
        %v993 = vpop.f32.mrf.mxu0
        %994 = vmatprep.mubr.f32.mxu0 0.0
        %995 = vmatmul.mubr.f32.gmra.mxu0 %v829
        %v996 = vpop.f32.mrf.mxu0
        %v997 = vadd.f32 %v816, %v996
        %v998 = vpop.f32.mrf.mxu0
        %999 = vmatprep.mubr.f32.mxu0 0.0
        %1000 = vmatmul.mubr.f32.gmra.mxu0 %v832
        %v1001 = vpop.f32.mrf.mxu0
        %v1002 = vadd.f32 %v816, %v1001
        %v1003 = vpop.f32.mrf.mxu0
        %1004 = vmatprep.mubr.f32.mxu0 0.0
        %1005 = vmatmul.mubr.f32.gmra.mxu0 %v835
        %v1006 = vpop.f32.mrf.mxu0
        %v1007 = vadd.f32 %v816, %v1006
        %v1008 = vpop.f32.mrf.mxu0
        %1009 = vmatprep.mubr.f32.mxu0 0.0
        %1010 = vmatmul.mubr.f32.gmra.mxu0 %v838
        %v1011 = vpop.f32.mrf.mxu0
        %v1012 = vadd.f32 %v816, %v1011
        %v1013 = vpop.f32.mrf.mxu0
        %1014 = vmatprep.mubr.f32.mxu0 0.0
        %1015 = vmatmul.mubr.f32.gmra.mxu0 %v841
        %v1016 = vpop.f32.mrf.mxu0
        %v1017 = vadd.f32 %v816, %v1016
        %v1018 = vpop.f32.mrf.mxu0
        %1019 = vmatprep.mubr.f32.mxu0 0.0
        %1020 = vmatmul.mubr.f32.gmra.mxu0 %v844
        %v1021 = vpop.f32.mrf.mxu0
        %v1022 = vadd.f32 %v816, %v1021
        %v1023 = vpop.f32.mrf.mxu0
        %1024 = vmatprep.mubr.f32.mxu0 0.0
        %1025 = vmatmul.mubr.f32.gmra.mxu0 %v847
        %v1026 = vpop.f32.mrf.mxu0
        %v1027 = vadd.f32 %v816, %v1026
        %v1028 = vpop.f32.mrf.mxu0
        %1029 = vmatprep.mubr.f32.mxu0 0.0
        %1030 = vmatmul.mubr.f32.gmra.mxu0 %v850
        %v1031 = vpop.f32.mrf.mxu0
        %v1032 = vadd.f32 %v816, %v1031
        %v1033 = vpop.f32.mrf.mxu0
        %1034 = vmatprep.mubr.f32.mxu0 0.0
        %1035 = vmatmul.mubr.f32.gmra.mxu0 %v853
        %v1036 = vpop.f32.mrf.mxu0
        %v1037 = vadd.f32 %v816, %v1036
        %v1038 = vpop.f32.mrf.mxu0
        %1039 = vmatprep.mubr.f32.mxu0 0.0
        %1040 = vmatmul.mubr.f32.gmra.mxu0 %v856
        %v1041 = vpop.f32.mrf.mxu0
        %v1042 = vadd.f32 %v816, %v1041
        %v1043 = vpop.f32.mrf.mxu0
        %1044 = vmatprep.mubr.f32.mxu0 0.0
        %1045 = vmatmul.mubr.f32.gmra.mxu0 %v859
        %v1046 = vpop.f32.mrf.mxu0
        %v1047 = vadd.f32 %v816, %v1046
        %v1048 = vpop.f32.mrf.mxu0
        %1049 = vmatprep.mubr.f32.mxu0 0.0
        %1050 = vmatmul.mubr.f32.gmra.mxu0 %v862
        %v1051 = vpop.f32.mrf.mxu0
        %v1052 = vadd.f32 %v816, %v1051
        %v1053 = vpop.f32.mrf.mxu0
        %1054 = vmatprep.mubr.f32.mxu0 0.0
        %1055 = vmatmul.mubr.f32.gmra.mxu0 %v865
        %v1056 = vpop.f32.mrf.mxu0
        %v1057 = vadd.f32 %v816, %v1056
        %v1058 = vpop.f32.mrf.mxu0
        %1059 = vmatprep.mubr.f32.mxu0 0.0
        %1060 = vmatmul.mubr.f32.gmra.mxu0 %v868
        %v1061 = vpop.f32.mrf.mxu0
        %v1062 = vadd.f32 %v816, %v1061
        %v1063 = vpop.f32.mrf.mxu0
        %1064 = vmatprep.mubr.f32.mxu0 0.0
        %1065 = vmatmul.mubr.f32.gmra.mxu0 %v871
        %v1066 = vpop.f32.mrf.mxu0
        %v1067 = vadd.f32 %v816, %v1066
        %v1068 = vpop.f32.mrf.mxu0
        %1069 = vmatprep.mubr.f32.mxu0 0.0
        %1070 = vmatmul.mubr.f32.gmra.mxu0 %v874
        %v1071 = vpop.f32.mrf.mxu0
        %v1072 = vadd.f32 %v816, %v1071
        %v1073 = vpop.f32.mrf.mxu0
        %1074 = vmatprep.mubr.f32.mxu0 0.0
        %1075 = vmatmul.mubr.f32.gmra.mxu0 %v877
        %v1076 = vpop.f32.mrf.mxu0
        %v1077 = vadd.f32 %v816, %v1076
        %v1078 = vpop.f32.mrf.mxu0
        %1079 = vmatprep.mubr.f32.mxu0 0.0
        %1080 = vmatmul.mubr.f32.gmra.mxu0 %v880
        %v1081 = vpop.f32.mrf.mxu0
        %v1082 = vadd.f32 %v816, %v1081
        %v1083 = vpop.f32.mrf.mxu0
        %1084 = vmatprep.mubr.f32.mxu0 0.0
        %1085 = vmatmul.mubr.f32.gmra.mxu0 %v883
        %v1086 = vpop.f32.mrf.mxu0
        %v1087 = vadd.f32 %v816, %v1086
        %v1088 = vpop.f32.mrf.mxu0
        %1089 = vmatprep.mubr.f32.mxu0 0.0
        %1090 = vmatmul.mubr.f32.gmra.mxu0 %v886
        %v1091 = vpop.f32.mrf.mxu0
        %v1092 = vadd.f32 %v816, %v1091
        %v1093 = vpop.f32.mrf.mxu0
        %1094 = vmatprep.mubr.f32.mxu0 0.0
        %1095 = vmatmul.mubr.f32.gmra.mxu0 %v889
        %v1096 = vpop.f32.mrf.mxu0
        %v1097 = vadd.f32 %v816, %v1096
        %v1098 = vpop.f32.mrf.mxu0
        %1099 = vmatprep.mubr.f32.mxu0 0.0
        %1100 = vmatmul.mubr.f32.gmra.mxu0 %v892
        %v1101 = vpop.f32.mrf.mxu0
        %v1102 = vadd.f32 %v816, %v1101
        %v1103 = vpop.f32.mrf.mxu0
        %1104 = vmatprep.mubr.f32.mxu0 0.0
        %1105 = vmatmul.mubr.f32.gmra.mxu0 %v895
        %v1106 = vpop.f32.mrf.mxu0
        %v1107 = vadd.f32 %v816, %v1106
        %v1108 = vpop.f32.mrf.mxu0
        %1109 = vmatprep.mubr.f32.mxu0 0.0
        %1110 = vmatmul.mubr.f32.gmra.mxu0 %v898
        %v1111 = vpop.f32.mrf.mxu0
        %v1112 = vadd.f32 %v816, %v1111
        %v1113 = vpop.f32.mrf.mxu0
        %1114 = vmatprep.mubr.f32.mxu0 0.0
        %1115 = vmatmul.mubr.f32.gmra.mxu0 %v901
        %v1116 = vpop.f32.mrf.mxu0
        %v1117 = vadd.f32 %v816, %v1116
        %v1118 = vpop.f32.mrf.mxu0
        %1119 = vmatprep.mubr.f32.mxu0 0.0
        %1120 = vmatmul.mubr.f32.gmra.mxu0 %v904
        %v1121 = vpop.f32.mrf.mxu0
        %v1122 = vadd.f32 %v816, %v1121
        %v1123 = vpop.f32.mrf.mxu0
        %1124 = vmatprep.mubr.f32.mxu0 0.0
        %1125 = vmatmul.mubr.f32.gmra.mxu0 %v907
        %v1126 = vpop.f32.mrf.mxu0
        %v1127 = vadd.f32 %v816, %v1126
        %v1128 = vpop.f32.mrf.mxu0
        %1129 = vmatprep.mubr.f32.mxu0 0.0
        %1130 = vmatmul.mubr.f32.gmra.mxu0 %v910
        %v1131 = vpop.f32.mrf.mxu0
        %v1132 = vadd.f32 %v816, %v1131
        %v1133 = vpop.f32.mrf.mxu0
        %1134 = vmatprep.mubr.f32.mxu0 0.0
        %1135 = vmatmul.mubr.f32.gmra.mxu0 %v913
        %v1136 = vpop.f32.mrf.mxu0
        %v1137 = vadd.f32 %v816, %v1136
        %v1138 = vpop.f32.mrf.mxu0
        %1139 = vdwg.mxu0
        %v1140 = vmax.f32 %v982, 0.0
        %v1141 = vmax.f32 %v987, 0.0
        %v1142 = vmax.f32 %v992, 0.0
        %v1143 = vmax.f32 %v997, 0.0
        %v1144 = vmax.f32 %v1002, 0.0
        %v1145 = vmax.f32 %v1007, 0.0
        %v1146 = vmax.f32 %v1012, 0.0
        %v1147 = vmax.f32 %v1017, 0.0
        %v1148 = vmax.f32 %v1022, 0.0
        %v1149 = vmax.f32 %v1027, 0.0
        %v1150 = vmax.f32 %v1032, 0.0
        %v1151 = vmax.f32 %v1037, 0.0
        %v1152 = vmax.f32 %v1042, 0.0
        %v1153 = vmax.f32 %v1047, 0.0
        %v1154 = vmax.f32 %v1052, 0.0
        %v1155 = vmax.f32 %v1057, 0.0
        %v1156 = vmax.f32 %v1062, 0.0
        %v1157 = vmax.f32 %v1067, 0.0
        %v1158 = vmax.f32 %v1072, 0.0
        %v1159 = vmax.f32 %v1077, 0.0
        %v1160 = vmax.f32 %v1082, 0.0
        %v1161 = vmax.f32 %v1087, 0.0
        %v1162 = vmax.f32 %v1092, 0.0
        %v1163 = vmax.f32 %v1097, 0.0
        %v1164 = vmax.f32 %v1102, 0.0
        %v1165 = vmax.f32 %v1107, 0.0
        %v1166 = vmax.f32 %v1112, 0.0
        %v1167 = vmax.f32 %v1117, 0.0
        %v1168 = vmax.f32 %v1122, 0.0
        %v1169 = vmax.f32 %v1127, 0.0
        %v1170 = vmax.f32 %v1132, 0.0
        %v1171 = vmax.f32 %v1137, 0.0
        %v1172 = vld [vmem:[#allocation9] sm:$0xff]
        %v1173 = vld [vmem:[#allocation9 + $0x8] sm:$0xff]
        %v1174 = vld [vmem:[#allocation9 + $0x10] sm:$0xff]
        %v1175 = vld [vmem:[#allocation9 + $0x18] sm:$0xff]
        %v1176 = vld [vmem:[#allocation9 + $0x20] sm:$0xff]
        %v1177 = vld [vmem:[#allocation9 + $0x28] sm:$0xff]
        %v1178 = vld [vmem:[#allocation9 + $0x30] sm:$0xff]
        %v1179 = vld [vmem:[#allocation9 + $0x38] sm:$0xff]
        %v1180 = vld [vmem:[#allocation10] sm:$0x1]
        %v1182 = vlaneseq
        %v1183 = vshrl.u32 %v1182, 7
        %v1184 = vsub.s32 0, %v1183
        %v1185 = vrot.slane %v1180, %v1184
        %vm1187 = vcmask 523264
        %v1189 = vsel %vm1187, %v1140, 0
        %v1192 = vsel %vm1187, %v1141, 0
        %v1195 = vsel %vm1187, %v1142, 0
        %v1198 = vsel %vm1187, %v1143, 0
        %v1201 = vsel %vm1187, %v1144, 0
        %v1204 = vsel %vm1187, %v1145, 0
        %v1207 = vsel %vm1187, %v1146, 0
        %v1210 = vsel %vm1187, %v1147, 0
        %v1213 = vsel %vm1187, %v1148, 0
        %v1216 = vsel %vm1187, %v1149, 0
        %v1219 = vsel %vm1187, %v1150, 0
        %v1222 = vsel %vm1187, %v1151, 0
        %v1225 = vsel %vm1187, %v1152, 0
        %v1228 = vsel %vm1187, %v1153, 0
        %v1231 = vsel %vm1187, %v1154, 0
        %v1234 = vsel %vm1187, %v1155, 0
        %v1237 = vsel %vm1187, %v1156, 0
        %v1240 = vsel %vm1187, %v1157, 0
        %v1243 = vsel %vm1187, %v1158, 0
        %v1246 = vsel %vm1187, %v1159, 0
        %v1249 = vsel %vm1187, %v1160, 0
        %v1252 = vsel %vm1187, %v1161, 0
        %v1255 = vsel %vm1187, %v1162, 0
        %v1258 = vsel %vm1187, %v1163, 0
        %v1261 = vsel %vm1187, %v1164, 0
        %v1264 = vsel %vm1187, %v1165, 0
        %v1267 = vsel %vm1187, %v1166, 0
        %v1270 = vsel %vm1187, %v1167, 0
        %v1273 = vsel %vm1187, %v1168, 0
        %v1276 = vsel %vm1187, %v1169, 0
        %v1279 = vsel %vm1187, %v1170, 0
        %v1282 = vsel %vm1187, %v1171, 0
        %1284 = vmatprep.subr.mxu0 0.0
        %1285 = vmatpush1.msra.mxu0 0.0
        %1286 = vmatprep.subr.mxu0 0.0
        %1287 = vmatpush1.msra.mxu0 0.0
        %1288 = vmatprep.subr.mxu0 0.0
        %1289 = vmatpush1.msra.mxu0 0.0
        %1290 = vmatprep.subr.mxu0 0.0
        %1291 = vmatpush1.msra.mxu0 0.0
        %1292 = vmatprep.subr.mxu0 0.0
        %1293 = vmatpush1.msra.mxu0 0.0
        %1294 = vmatprep.subr.mxu0 0.0
        %1295 = vmatpush1.msra.mxu0 0.0
        %1296 = vmatprep.subr.mxu0 0.0
        %1297 = vmatpush1.msra.mxu0 0.0
        %1298 = vmatprep.subr.mxu0 0.0
        %1299 = vmatpush1.msra.mxu0 0.0
        %1300 = vmatprep.subr.mxu0 0.0
        %1301 = vmatpush1.msra.mxu0 %v1179
        %1302 = vmatprep.subr.mxu0 0.0
        %1303 = vmatpush1.msra.mxu0 %v1178
        %1304 = vmatprep.subr.mxu0 0.0
        %1305 = vmatpush1.msra.mxu0 %v1177
        %1306 = vmatprep.subr.mxu0 0.0
        %1307 = vmatpush1.msra.mxu0 %v1176
        %1308 = vmatprep.subr.mxu0 0.0
        %1309 = vmatpush1.msra.mxu0 %v1175
        %1310 = vmatprep.subr.mxu0 0.0
        %1311 = vmatpush1.msra.mxu0 %v1174
        %1312 = vmatprep.subr.mxu0 0.0
        %1313 = vmatpush1.msra.mxu0 %v1173
        %1314 = vmatprep.subr.mxu0 0.0
        %1315 = vmatpush1.msra.mxu0 %v1172
        %1316 = vmatprep.subr.mxu0 0.0
        %1317 = vmatpush2.msra.mxu0 0.0
        %1318 = vmatprep.subr.mxu0 0.0
        %1319 = vmatpush2.msra.mxu0 0.0
        %1320 = vmatprep.subr.mxu0 0.0
        %1321 = vmatpush2.msra.mxu0 0.0
        %1322 = vmatprep.subr.mxu0 0.0
        %1323 = vmatpush2.msra.mxu0 0.0
        %1324 = vmatprep.subr.mxu0 0.0
        %1325 = vmatpush2.msra.mxu0 0.0
        %1326 = vmatprep.subr.mxu0 0.0
        %1327 = vmatpush2.msra.mxu0 0.0
        %1328 = vmatprep.subr.mxu0 0.0
        %1329 = vmatpush2.msra.mxu0 0.0
        %1330 = vmatprep.subr.mxu0 0.0
        %1331 = vmatpush2.msra.mxu0 0.0
        %1332 = vmatprep.subr.mxu0 0.0
        %1333 = vmatpush2.msra.mxu0 0.0
        %1334 = vmatprep.subr.mxu0 0.0
        %1335 = vmatpush2.msra.mxu0 0.0
        %1336 = vmatprep.subr.mxu0 0.0
        %1337 = vmatpush2.msra.mxu0 0.0
        %1338 = vmatprep.subr.mxu0 0.0
        %1339 = vmatpush2.msra.mxu0 0.0
        %1340 = vmatprep.subr.mxu0 0.0
        %1341 = vmatpush2.msra.mxu0 0.0
        %1342 = vmatprep.subr.mxu0 0.0
        %1343 = vmatpush2.msra.mxu0 0.0
        %1344 = vmatprep.subr.mxu0 0.0
        %1345 = vmatpush2.msra.mxu0 0.0
        %1346 = vmatprep.subr.mxu0 0.0
        %1347 = vmatpush2.msra.mxu0 0.0
        %1348 = vmatprep.mubr.f32.mxu0 0.0
        %1349 = vmatmul.mubr.f32.gmra.mxu0 %v1189
        %v1350 = vpop.f32.mrf.mxu0
        %v1351 = vadd.f32 %v1185, %v1350
        %v1352 = vpop.f32.mrf.mxu0
        %1353 = vmatprep.mubr.f32.mxu0 0.0
        %1354 = vmatmul.mubr.f32.gmra.mxu0 %v1192
        %v1355 = vpop.f32.mrf.mxu0
        %v1356 = vadd.f32 %v1185, %v1355
        %v1357 = vpop.f32.mrf.mxu0
        %1358 = vmatprep.mubr.f32.mxu0 0.0
        %1359 = vmatmul.mubr.f32.gmra.mxu0 %v1195
        %v1360 = vpop.f32.mrf.mxu0
        %v1361 = vadd.f32 %v1185, %v1360
        %v1362 = vpop.f32.mrf.mxu0
        %1363 = vmatprep.mubr.f32.mxu0 0.0
        %1364 = vmatmul.mubr.f32.gmra.mxu0 %v1198
        %v1365 = vpop.f32.mrf.mxu0
        %v1366 = vadd.f32 %v1185, %v1365
        %v1367 = vpop.f32.mrf.mxu0
        %1368 = vmatprep.mubr.f32.mxu0 0.0
        %1369 = vmatmul.mubr.f32.gmra.mxu0 %v1201
        %v1370 = vpop.f32.mrf.mxu0
        %v1371 = vadd.f32 %v1185, %v1370
        %v1372 = vpop.f32.mrf.mxu0
        %1373 = vmatprep.mubr.f32.mxu0 0.0
        %1374 = vmatmul.mubr.f32.gmra.mxu0 %v1204
        %v1375 = vpop.f32.mrf.mxu0
        %v1376 = vadd.f32 %v1185, %v1375
        %v1377 = vpop.f32.mrf.mxu0
        %1378 = vmatprep.mubr.f32.mxu0 0.0
        %1379 = vmatmul.mubr.f32.gmra.mxu0 %v1207
        %v1380 = vpop.f32.mrf.mxu0
        %v1381 = vadd.f32 %v1185, %v1380
        %v1382 = vpop.f32.mrf.mxu0
        %1383 = vmatprep.mubr.f32.mxu0 0.0
        %1384 = vmatmul.mubr.f32.gmra.mxu0 %v1210
        %v1385 = vpop.f32.mrf.mxu0
        %v1386 = vadd.f32 %v1185, %v1385
        %v1387 = vpop.f32.mrf.mxu0
        %1388 = vmatprep.mubr.f32.mxu0 0.0
        %1389 = vmatmul.mubr.f32.gmra.mxu0 %v1213
        %v1390 = vpop.f32.mrf.mxu0
        %v1391 = vadd.f32 %v1185, %v1390
        %v1392 = vpop.f32.mrf.mxu0
        %1393 = vmatprep.mubr.f32.mxu0 0.0
        %1394 = vmatmul.mubr.f32.gmra.mxu0 %v1216
        %v1395 = vpop.f32.mrf.mxu0
        %v1396 = vadd.f32 %v1185, %v1395
        %v1397 = vpop.f32.mrf.mxu0
        %1398 = vmatprep.mubr.f32.mxu0 0.0
        %1399 = vmatmul.mubr.f32.gmra.mxu0 %v1219
        %v1400 = vpop.f32.mrf.mxu0
        %v1401 = vadd.f32 %v1185, %v1400
        %v1402 = vpop.f32.mrf.mxu0
        %1403 = vmatprep.mubr.f32.mxu0 0.0
        %1404 = vmatmul.mubr.f32.gmra.mxu0 %v1222
        %v1405 = vpop.f32.mrf.mxu0
        %v1406 = vadd.f32 %v1185, %v1405
        %v1407 = vpop.f32.mrf.mxu0
        %1408 = vmatprep.mubr.f32.mxu0 0.0
        %1409 = vmatmul.mubr.f32.gmra.mxu0 %v1225
        %v1410 = vpop.f32.mrf.mxu0
        %v1411 = vadd.f32 %v1185, %v1410
        %v1412 = vpop.f32.mrf.mxu0
        %1413 = vmatprep.mubr.f32.mxu0 0.0
        %1414 = vmatmul.mubr.f32.gmra.mxu0 %v1228
        %v1415 = vpop.f32.mrf.mxu0
        %v1416 = vadd.f32 %v1185, %v1415
        %v1417 = vpop.f32.mrf.mxu0
        %1418 = vmatprep.mubr.f32.mxu0 0.0
        %1419 = vmatmul.mubr.f32.gmra.mxu0 %v1231
        %v1420 = vpop.f32.mrf.mxu0
        %v1421 = vadd.f32 %v1185, %v1420
        %v1422 = vpop.f32.mrf.mxu0
        %1423 = vmatprep.mubr.f32.mxu0 0.0
        %1424 = vmatmul.mubr.f32.gmra.mxu0 %v1234
        %v1425 = vpop.f32.mrf.mxu0
        %v1426 = vadd.f32 %v1185, %v1425
        %v1427 = vpop.f32.mrf.mxu0
        %1428 = vmatprep.mubr.f32.mxu0 0.0
        %1429 = vmatmul.mubr.f32.gmra.mxu0 %v1237
        %v1430 = vpop.f32.mrf.mxu0
        %v1431 = vadd.f32 %v1185, %v1430
        %v1432 = vpop.f32.mrf.mxu0
        %1433 = vmatprep.mubr.f32.mxu0 0.0
        %1434 = vmatmul.mubr.f32.gmra.mxu0 %v1240
        %v1435 = vpop.f32.mrf.mxu0
        %v1436 = vadd.f32 %v1185, %v1435
        %v1437 = vpop.f32.mrf.mxu0
        %1438 = vmatprep.mubr.f32.mxu0 0.0
        %1439 = vmatmul.mubr.f32.gmra.mxu0 %v1243
        %v1440 = vpop.f32.mrf.mxu0
        %v1441 = vadd.f32 %v1185, %v1440
        %v1442 = vpop.f32.mrf.mxu0
        %1443 = vmatprep.mubr.f32.mxu0 0.0
        %1444 = vmatmul.mubr.f32.gmra.mxu0 %v1246
        %v1445 = vpop.f32.mrf.mxu0
        %v1446 = vadd.f32 %v1185, %v1445
        %v1447 = vpop.f32.mrf.mxu0
        %1448 = vmatprep.mubr.f32.mxu0 0.0
        %1449 = vmatmul.mubr.f32.gmra.mxu0 %v1249
        %v1450 = vpop.f32.mrf.mxu0
        %v1451 = vadd.f32 %v1185, %v1450
        %v1452 = vpop.f32.mrf.mxu0
        %1453 = vmatprep.mubr.f32.mxu0 0.0
        %1454 = vmatmul.mubr.f32.gmra.mxu0 %v1252
        %v1455 = vpop.f32.mrf.mxu0
        %v1456 = vadd.f32 %v1185, %v1455
        %v1457 = vpop.f32.mrf.mxu0
        %1458 = vmatprep.mubr.f32.mxu0 0.0
        %1459 = vmatmul.mubr.f32.gmra.mxu0 %v1255
        %v1460 = vpop.f32.mrf.mxu0
        %v1461 = vadd.f32 %v1185, %v1460
        %v1462 = vpop.f32.mrf.mxu0
        %1463 = vmatprep.mubr.f32.mxu0 0.0
        %1464 = vmatmul.mubr.f32.gmra.mxu0 %v1258
        %v1465 = vpop.f32.mrf.mxu0
        %v1466 = vadd.f32 %v1185, %v1465
        %v1467 = vpop.f32.mrf.mxu0
        %1468 = vmatprep.mubr.f32.mxu0 0.0
        %1469 = vmatmul.mubr.f32.gmra.mxu0 %v1261
        %v1470 = vpop.f32.mrf.mxu0
        %v1471 = vadd.f32 %v1185, %v1470
        %v1472 = vpop.f32.mrf.mxu0
        %1473 = vmatprep.mubr.f32.mxu0 0.0
        %1474 = vmatmul.mubr.f32.gmra.mxu0 %v1264
        %v1475 = vpop.f32.mrf.mxu0
        %v1476 = vadd.f32 %v1185, %v1475
        %v1477 = vpop.f32.mrf.mxu0
        %1478 = vmatprep.mubr.f32.mxu0 0.0
        %1479 = vmatmul.mubr.f32.gmra.mxu0 %v1267
        %v1480 = vpop.f32.mrf.mxu0
        %v1481 = vadd.f32 %v1185, %v1480
        %v1482 = vpop.f32.mrf.mxu0
        %1483 = vmatprep.mubr.f32.mxu0 0.0
        %1484 = vmatmul.mubr.f32.gmra.mxu0 %v1270
        %v1485 = vpop.f32.mrf.mxu0
        %v1486 = vadd.f32 %v1185, %v1485
        %v1487 = vpop.f32.mrf.mxu0
        %1488 = vmatprep.mubr.f32.mxu0 0.0
        %1489 = vmatmul.mubr.f32.gmra.mxu0 %v1273
        %v1490 = vpop.f32.mrf.mxu0
        %v1491 = vadd.f32 %v1185, %v1490
        %v1492 = vpop.f32.mrf.mxu0
        %1493 = vmatprep.mubr.f32.mxu0 0.0
        %1494 = vmatmul.mubr.f32.gmra.mxu0 %v1276
        %v1495 = vpop.f32.mrf.mxu0
        %v1496 = vadd.f32 %v1185, %v1495
        %v1497 = vpop.f32.mrf.mxu0
        %1498 = vmatprep.mubr.f32.mxu0 0.0
        %1499 = vmatmul.mubr.f32.gmra.mxu0 %v1279
        %v1500 = vpop.f32.mrf.mxu0
        %v1501 = vadd.f32 %v1185, %v1500
        %v1502 = vpop.f32.mrf.mxu0
        %1503 = vmatprep.mubr.f32.mxu0 0.0
        %1504 = vmatmul.mubr.f32.gmra.mxu0 %v1282
        %v1505 = vpop.f32.mrf.mxu0
        %v1506 = vadd.f32 %v1185, %v1505
        %v1507 = vpop.f32.mrf.mxu0
        %1508 = vdwg.mxu0
        %v1509 = vmax.f32 %v1351, 0.0
        %v1510 = vmax.f32 %v1356, 0.0
        %v1511 = vmax.f32 %v1361, 0.0
        %v1512 = vmax.f32 %v1366, 0.0
        %v1513 = vmax.f32 %v1371, 0.0
        %v1514 = vmax.f32 %v1376, 0.0
        %v1515 = vmax.f32 %v1381, 0.0
        %v1516 = vmax.f32 %v1386, 0.0
        %v1517 = vmax.f32 %v1391, 0.0
        %v1518 = vmax.f32 %v1396, 0.0
        %v1519 = vmax.f32 %v1401, 0.0
        %v1520 = vmax.f32 %v1406, 0.0
        %v1521 = vmax.f32 %v1411, 0.0
        %v1522 = vmax.f32 %v1416, 0.0
        %v1523 = vmax.f32 %v1421, 0.0
        %v1524 = vmax.f32 %v1426, 0.0
        %v1525 = vmax.f32 %v1431, 0.0
        %v1526 = vmax.f32 %v1436, 0.0
        %v1527 = vmax.f32 %v1441, 0.0
        %v1528 = vmax.f32 %v1446, 0.0
        %v1529 = vmax.f32 %v1451, 0.0
        %v1530 = vmax.f32 %v1456, 0.0
        %v1531 = vmax.f32 %v1461, 0.0
        %v1532 = vmax.f32 %v1466, 0.0
        %v1533 = vmax.f32 %v1471, 0.0
        %v1534 = vmax.f32 %v1476, 0.0
        %v1535 = vmax.f32 %v1481, 0.0
        %v1536 = vmax.f32 %v1486, 0.0
        %v1537 = vmax.f32 %v1491, 0.0
        %v1538 = vmax.f32 %v1496, 0.0
        %v1539 = vmax.f32 %v1501, 0.0
        %v1540 = vmax.f32 %v1506, 0.0
        %v1541 = vld [vmem:[#allocation12] sm:$0xff]
        %v1542 = vld [vmem:[#allocation12 + $0x8] sm:$0xff]
        %v1543 = vld [vmem:[#allocation12 + $0x10] sm:$0xff]
        %v1544 = vld [vmem:[#allocation12 + $0x18] sm:$0xff]
        %v1545 = vld [vmem:[#allocation12 + $0x20] sm:$0xff]
        %v1546 = vld [vmem:[#allocation12 + $0x28] sm:$0xff]
        %v1547 = vld [vmem:[#allocation12 + $0x30] sm:$0xff]
        %v1548 = vld [vmem:[#allocation12 + $0x38] sm:$0xff]
        %v1549 = vld [vmem:[#allocation12 + $0x40] sm:$0xff]
        %v1550 = vld [vmem:[#allocation12 + $0x48] sm:$0xff]
        %v1551 = vld [vmem:[#allocation12 + $0x50] sm:$0xff]
        %v1552 = vld [vmem:[#allocation12 + $0x58] sm:$0xff]
        %v1553 = vld [vmem:[#allocation12 + $0x60] sm:$0xff]
        %v1554 = vld [vmem:[#allocation12 + $0x68] sm:$0xff]
        %v1555 = vld [vmem:[#allocation12 + $0x70] sm:$0xff]
        %v1556 = vld [vmem:[#allocation12 + $0x78] sm:$0xff]
        %v1557 = vld [vmem:[#allocation12 + $0x80] sm:$0xff]
        %v1558 = vld [vmem:[#allocation12 + $0x88] sm:$0xff]
        %v1559 = vld [vmem:[#allocation12 + $0x90] sm:$0xff]
        %v1560 = vld [vmem:[#allocation12 + $0x98] sm:$0xff]
        %v1561 = vld [vmem:[#allocation12 + $0xa0] sm:$0xff]
        %v1562 = vld [vmem:[#allocation12 + $0xa8] sm:$0xff]
        %v1563 = vld [vmem:[#allocation12 + $0xb0] sm:$0xff]
        %v1564 = vld [vmem:[#allocation12 + $0xb8] sm:$0xff]
        %v1565 = vld [vmem:[#allocation12 + $0xc0] sm:$0xff]
        %v1566 = vld [vmem:[#allocation12 + $0xc8] sm:$0xff]
        %v1567 = vld [vmem:[#allocation12 + $0xd0] sm:$0xff]
        %v1568 = vld [vmem:[#allocation12 + $0xd8] sm:$0xff]
        %v1569 = vld [vmem:[#allocation12 + $0xe0] sm:$0xff]
        %v1570 = vld [vmem:[#allocation12 + $0xe8] sm:$0xff]
        %v1571 = vld [vmem:[#allocation12 + $0xf0] sm:$0xff]
        %v1572 = vld [vmem:[#allocation12 + $0xf8] sm:$0xff]
        %v1573 = vld [vmem:[#allocation12 + $0x100] sm:$0xff]
        %v1574 = vld [vmem:[#allocation12 + $0x108] sm:$0xff]
        %v1575 = vld [vmem:[#allocation12 + $0x110] sm:$0xff]
        %v1576 = vld [vmem:[#allocation12 + $0x118] sm:$0xff]
        %v1577 = vld [vmem:[#allocation12 + $0x120] sm:$0xff]
        %v1578 = vld [vmem:[#allocation12 + $0x128] sm:$0xff]
        %v1579 = vld [vmem:[#allocation12 + $0x130] sm:$0xff]
        %v1580 = vld [vmem:[#allocation12 + $0x138] sm:$0xff]
        %v1581 = vld [vmem:[#allocation12 + $0x140] sm:$0xff]
        %v1582 = vld [vmem:[#allocation12 + $0x148] sm:$0xff]
        %v1583 = vld [vmem:[#allocation12 + $0x150] sm:$0xff]
        %v1584 = vld [vmem:[#allocation12 + $0x158] sm:$0xff]
        %v1585 = vld [vmem:[#allocation12 + $0x160] sm:$0xff]
        %v1586 = vld [vmem:[#allocation12 + $0x168] sm:$0xff]
        %v1587 = vld [vmem:[#allocation12 + $0x170] sm:$0xff]
        %v1588 = vld [vmem:[#allocation12 + $0x178] sm:$0xff]
        %v1589 = vld [vmem:[#allocation12 + $0x180] sm:$0xff]
        %v1590 = vld [vmem:[#allocation12 + $0x188] sm:$0xff]
        %v1591 = vld [vmem:[#allocation12 + $0x190] sm:$0xff]
        %v1592 = vld [vmem:[#allocation12 + $0x198] sm:$0xff]
        %v1593 = vld [vmem:[#allocation12 + $0x1a0] sm:$0xff]
        %v1594 = vld [vmem:[#allocation12 + $0x1a8] sm:$0xff]
        %v1595 = vld [vmem:[#allocation12 + $0x1b0] sm:$0xff]
        %v1596 = vld [vmem:[#allocation12 + $0x1b8] sm:$0xff]
        %v1597 = vld [vmem:[#allocation12 + $0x1c0] sm:$0xff]
        %v1598 = vld [vmem:[#allocation12 + $0x1c8] sm:$0xff]
        %v1599 = vld [vmem:[#allocation12 + $0x1d0] sm:$0xff]
        %v1600 = vld [vmem:[#allocation12 + $0x1d8] sm:$0xff]
        %v1601 = vld [vmem:[#allocation12 + $0x1e0] sm:$0xff]
        %v1602 = vld [vmem:[#allocation12 + $0x1e8] sm:$0xff]
        %v1603 = vld [vmem:[#allocation12 + $0x1f0] sm:$0xff]
        %v1604 = vld [vmem:[#allocation12 + $0x1f8] sm:$0xff]
        %v1605 = vld [vmem:[#allocation12 + $0x200] sm:$0xff]
        %v1606 = vld [vmem:[#allocation12 + $0x208] sm:$0xff]
        %v1607 = vld [vmem:[#allocation12 + $0x210] sm:$0xff]
        %v1608 = vld [vmem:[#allocation12 + $0x218] sm:$0xff]
        %v1609 = vld [vmem:[#allocation12 + $0x220] sm:$0xff]
        %v1610 = vld [vmem:[#allocation12 + $0x228] sm:$0xff]
        %v1611 = vld [vmem:[#allocation12 + $0x230] sm:$0xff]
        %v1612 = vld [vmem:[#allocation12 + $0x238] sm:$0xff]
        %v1613 = vld [vmem:[#allocation12 + $0x240] sm:$0xff]
        %v1614 = vld [vmem:[#allocation12 + $0x248] sm:$0xff]
        %v1615 = vld [vmem:[#allocation12 + $0x250] sm:$0xff]
        %v1616 = vld [vmem:[#allocation12 + $0x258] sm:$0xff]
        %v1617 = vld [vmem:[#allocation12 + $0x260] sm:$0xff]
        %v1618 = vld [vmem:[#allocation12 + $0x268] sm:$0xff]
        %v1619 = vld [vmem:[#allocation12 + $0x270] sm:$0xff]
        %v1620 = vld [vmem:[#allocation12 + $0x278] sm:$0xff]
        %v1621 = vld [vmem:[#allocation12 + $0x280] sm:$0xff]
        %v1622 = vld [vmem:[#allocation12 + $0x288] sm:$0xff]
        %v1623 = vld [vmem:[#allocation12 + $0x290] sm:$0xff]
        %v1624 = vld [vmem:[#allocation12 + $0x298] sm:$0xff]
        %v1625 = vld [vmem:[#allocation12 + $0x2a0] sm:$0xff]
        %v1626 = vld [vmem:[#allocation12 + $0x2a8] sm:$0xff]
        %v1627 = vld [vmem:[#allocation12 + $0x2b0] sm:$0xff]
        %v1628 = vld [vmem:[#allocation12 + $0x2b8] sm:$0xff]
        %v1629 = vld [vmem:[#allocation12 + $0x2c0] sm:$0xff]
        %v1630 = vld [vmem:[#allocation12 + $0x2c8] sm:$0xff]
        %v1631 = vld [vmem:[#allocation12 + $0x2d0] sm:$0xff]
        %v1632 = vld [vmem:[#allocation12 + $0x2d8] sm:$0xff]
        %v1633 = vld [vmem:[#allocation12 + $0x2e0] sm:$0xff]
        %v1634 = vld [vmem:[#allocation12 + $0x2e8] sm:$0xff]
        %v1635 = vld [vmem:[#allocation12 + $0x2f0] sm:$0xff]
        %v1636 = vld [vmem:[#allocation12 + $0x2f8] sm:$0xff]
        %v1637 = vld [vmem:[#allocation12 + $0x300] sm:$0xff]
        %v1638 = vld [vmem:[#allocation12 + $0x308] sm:$0xff]
        %v1639 = vld [vmem:[#allocation12 + $0x310] sm:$0xff]
        %v1640 = vld [vmem:[#allocation12 + $0x318] sm:$0xff]
        %v1641 = vld [vmem:[#allocation12 + $0x320] sm:$0xff]
        %v1642 = vld [vmem:[#allocation12 + $0x328] sm:$0xff]
        %v1643 = vld [vmem:[#allocation12 + $0x330] sm:$0xff]
        %v1644 = vld [vmem:[#allocation12 + $0x338] sm:$0xff]
        %v1645 = vld [vmem:[#allocation12 + $0x340] sm:$0xff]
        %v1646 = vld [vmem:[#allocation12 + $0x348] sm:$0xff]
        %v1647 = vld [vmem:[#allocation12 + $0x350] sm:$0xff]
        %v1648 = vld [vmem:[#allocation12 + $0x358] sm:$0xff]
        %v1649 = vld [vmem:[#allocation12 + $0x360] sm:$0xff]
        %v1650 = vld [vmem:[#allocation12 + $0x368] sm:$0xff]
        %v1651 = vld [vmem:[#allocation12 + $0x370] sm:$0xff]
        %v1652 = vld [vmem:[#allocation12 + $0x378] sm:$0xff]
        %v1653 = vld [vmem:[#allocation12 + $0x380] sm:$0xff]
        %v1654 = vld [vmem:[#allocation12 + $0x388] sm:$0xff]
        %v1655 = vld [vmem:[#allocation12 + $0x390] sm:$0xff]
        %v1656 = vld [vmem:[#allocation12 + $0x398] sm:$0xff]
        %v1657 = vld [vmem:[#allocation12 + $0x3a0] sm:$0xff]
        %v1658 = vld [vmem:[#allocation12 + $0x3a8] sm:$0xff]
        %v1659 = vld [vmem:[#allocation12 + $0x3b0] sm:$0xff]
        %v1660 = vld [vmem:[#allocation12 + $0x3b8] sm:$0xff]
        %v1661 = vld [vmem:[#allocation12 + $0x3c0] sm:$0xff]
        %v1662 = vld [vmem:[#allocation12 + $0x3c8] sm:$0xff]
        %v1663 = vld [vmem:[#allocation12 + $0x3d0] sm:$0xff]
        %v1664 = vld [vmem:[#allocation12 + $0x3d8] sm:$0xff]
        %v1665 = vld [vmem:[#allocation12 + $0x3e0] sm:$0xff]
        %v1666 = vld [vmem:[#allocation12 + $0x3e8] sm:$0xff]
        %v1667 = vld [vmem:[#allocation12 + $0x3f0] sm:$0xff]
        %v1668 = vld [vmem:[#allocation12 + $0x3f8] sm:$0xff]
        %1669 = vmatprep.subr.mxu0 %v1662
        %1670 = vmatpush1.msra.mxu0 %v1661
        %1671 = vmatprep.subr.mxu0 %v1654
        %1672 = vmatpush1.msra.mxu0 %v1653
        %1673 = vmatprep.subr.mxu0 %v1646
        %1674 = vmatpush1.msra.mxu0 %v1645
        %1675 = vmatprep.subr.mxu0 %v1638
        %1676 = vmatpush1.msra.mxu0 %v1637
        %1677 = vmatprep.subr.mxu0 %v1630
        %1678 = vmatpush1.msra.mxu0 %v1629
        %1679 = vmatprep.subr.mxu0 %v1622
        %1680 = vmatpush1.msra.mxu0 %v1621
        %1681 = vmatprep.subr.mxu0 %v1614
        %1682 = vmatpush1.msra.mxu0 %v1613
        %1683 = vmatprep.subr.mxu0 %v1606
        %1684 = vmatpush1.msra.mxu0 %v1605
        %1685 = vmatprep.subr.mxu0 %v1598
        %1686 = vmatpush1.msra.mxu0 %v1597
        %1687 = vmatprep.subr.mxu0 %v1590
        %1688 = vmatpush1.msra.mxu0 %v1589
        %1689 = vmatprep.subr.mxu0 %v1582
        %1690 = vmatpush1.msra.mxu0 %v1581
        %1691 = vmatprep.subr.mxu0 %v1574
        %1692 = vmatpush1.msra.mxu0 %v1573
        %1693 = vmatprep.subr.mxu0 %v1566
        %1694 = vmatpush1.msra.mxu0 %v1565
        %1695 = vmatprep.subr.mxu0 %v1558
        %1696 = vmatpush1.msra.mxu0 %v1557
        %1697 = vmatprep.subr.mxu0 %v1550
        %1698 = vmatpush1.msra.mxu0 %v1549
        %1699 = vmatprep.subr.mxu0 %v1542
        %1700 = vmatpush1.msra.mxu0 %v1541
        %1701 = vmatprep.subr.mxu0 0.0
        %1702 = vmatpush2.msra.mxu0 0.0
        %1703 = vmatprep.subr.mxu0 0.0
        %1704 = vmatpush2.msra.mxu0 0.0
        %1705 = vmatprep.subr.mxu0 0.0
        %1706 = vmatpush2.msra.mxu0 0.0
        %1707 = vmatprep.subr.mxu0 0.0
        %1708 = vmatpush2.msra.mxu0 0.0
        %1709 = vmatprep.subr.mxu0 0.0
        %1710 = vmatpush2.msra.mxu0 0.0
        %1711 = vmatprep.subr.mxu0 0.0
        %1712 = vmatpush2.msra.mxu0 0.0
        %1713 = vmatprep.subr.mxu0 0.0
        %1714 = vmatpush2.msra.mxu0 0.0
        %1715 = vmatprep.subr.mxu0 0.0
        %1716 = vmatpush2.msra.mxu0 0.0
        %1717 = vmatprep.subr.mxu0 0.0
        %1718 = vmatpush2.msra.mxu0 0.0
        %1719 = vmatprep.subr.mxu0 0.0
        %1720 = vmatpush2.msra.mxu0 0.0
        %1721 = vmatprep.subr.mxu0 0.0
        %1722 = vmatpush2.msra.mxu0 0.0
        %1723 = vmatprep.subr.mxu0 0.0
        %1724 = vmatpush2.msra.mxu0 0.0
        %1725 = vmatprep.subr.mxu0 0.0
        %1726 = vmatpush2.msra.mxu0 0.0
        %1727 = vmatprep.subr.mxu0 0.0
        %1728 = vmatpush2.msra.mxu0 0.0
        %1729 = vmatprep.subr.mxu0 0.0
        %1730 = vmatpush2.msra.mxu0 0.0
        %1731 = vmatprep.subr.mxu0 0.0
        %1732 = vmatpush2.msra.mxu0 0.0
        %1733 = vmatprep.mubr.f32.mxu0 0.0
        %1734 = vmatmul.mubr.f32.gmra.mxu0 %v1509
        %v1735 = vpop.f32.mrf.mxu0
        %v1736 = vadd.f32 0.0, %v1735
        %v1737 = vpop.f32.mrf.mxu0
        %v1738 = vadd.f32 0.0, %v1737
        %1739 = vmatprep.mubr.f32.mxu0 0.0
        %1740 = vmatmul.mubr.f32.gmra.mxu0 %v1510
        %v1741 = vpop.f32.mrf.mxu0
        %v1742 = vadd.f32 0.0, %v1741
        %v1743 = vpop.f32.mrf.mxu0
        %v1744 = vadd.f32 0.0, %v1743
        %1745 = vmatprep.mubr.f32.mxu0 0.0
        %1746 = vmatmul.mubr.f32.gmra.mxu0 %v1511
        %v1747 = vpop.f32.mrf.mxu0
        %v1748 = vadd.f32 0.0, %v1747
        %v1749 = vpop.f32.mrf.mxu0
        %v1750 = vadd.f32 0.0, %v1749
        %1751 = vmatprep.mubr.f32.mxu0 0.0
        %1752 = vmatmul.mubr.f32.gmra.mxu0 %v1512
        %v1753 = vpop.f32.mrf.mxu0
        %v1754 = vadd.f32 0.0, %v1753
        %v1755 = vpop.f32.mrf.mxu0
        %v1756 = vadd.f32 0.0, %v1755
        %1757 = vmatprep.mubr.f32.mxu0 0.0
        %1758 = vmatmul.mubr.f32.gmra.mxu0 %v1513
        %v1759 = vpop.f32.mrf.mxu0
        %v1760 = vadd.f32 0.0, %v1759
        %v1761 = vpop.f32.mrf.mxu0
        %v1762 = vadd.f32 0.0, %v1761
        %1763 = vmatprep.mubr.f32.mxu0 0.0
        %1764 = vmatmul.mubr.f32.gmra.mxu0 %v1514
        %v1765 = vpop.f32.mrf.mxu0
        %v1766 = vadd.f32 0.0, %v1765
        %v1767 = vpop.f32.mrf.mxu0
        %v1768 = vadd.f32 0.0, %v1767
        %1769 = vmatprep.mubr.f32.mxu0 0.0
        %1770 = vmatmul.mubr.f32.gmra.mxu0 %v1515
        %v1771 = vpop.f32.mrf.mxu0
        %v1772 = vadd.f32 0.0, %v1771
        %v1773 = vpop.f32.mrf.mxu0
        %v1774 = vadd.f32 0.0, %v1773
        %1775 = vmatprep.mubr.f32.mxu0 0.0
        %1776 = vmatmul.mubr.f32.gmra.mxu0 %v1516
        %v1777 = vpop.f32.mrf.mxu0
        %v1778 = vadd.f32 0.0, %v1777
        %v1779 = vpop.f32.mrf.mxu0
        %v1780 = vadd.f32 0.0, %v1779
        %1781 = vmatprep.mubr.f32.mxu0 0.0
        %1782 = vmatmul.mubr.f32.gmra.mxu0 %v1517
        %v1783 = vpop.f32.mrf.mxu0
        %v1784 = vadd.f32 0.0, %v1783
        %v1785 = vpop.f32.mrf.mxu0
        %v1786 = vadd.f32 0.0, %v1785
        %1787 = vmatprep.mubr.f32.mxu0 0.0
        %1788 = vmatmul.mubr.f32.gmra.mxu0 %v1518
        %v1789 = vpop.f32.mrf.mxu0
        %v1790 = vadd.f32 0.0, %v1789
        %v1791 = vpop.f32.mrf.mxu0
        %v1792 = vadd.f32 0.0, %v1791
        %1793 = vmatprep.mubr.f32.mxu0 0.0
        %1794 = vmatmul.mubr.f32.gmra.mxu0 %v1519
        %v1795 = vpop.f32.mrf.mxu0
        %v1796 = vadd.f32 0.0, %v1795
        %v1797 = vpop.f32.mrf.mxu0
        %v1798 = vadd.f32 0.0, %v1797
        %1799 = vmatprep.mubr.f32.mxu0 0.0
        %1800 = vmatmul.mubr.f32.gmra.mxu0 %v1520
        %v1801 = vpop.f32.mrf.mxu0
        %v1802 = vadd.f32 0.0, %v1801
        %v1803 = vpop.f32.mrf.mxu0
        %v1804 = vadd.f32 0.0, %v1803
        %1805 = vmatprep.mubr.f32.mxu0 0.0
        %1806 = vmatmul.mubr.f32.gmra.mxu0 %v1521
        %v1807 = vpop.f32.mrf.mxu0
        %v1808 = vadd.f32 0.0, %v1807
        %v1809 = vpop.f32.mrf.mxu0
        %v1810 = vadd.f32 0.0, %v1809
        %1811 = vmatprep.mubr.f32.mxu0 0.0
        %1812 = vmatmul.mubr.f32.gmra.mxu0 %v1522
        %v1813 = vpop.f32.mrf.mxu0
        %v1814 = vadd.f32 0.0, %v1813
        %v1815 = vpop.f32.mrf.mxu0
        %v1816 = vadd.f32 0.0, %v1815
        %1817 = vmatprep.mubr.f32.mxu0 0.0
        %1818 = vmatmul.mubr.f32.gmra.mxu0 %v1523
        %v1819 = vpop.f32.mrf.mxu0
        %v1820 = vadd.f32 0.0, %v1819
        %v1821 = vpop.f32.mrf.mxu0
        %v1822 = vadd.f32 0.0, %v1821
        %1823 = vmatprep.mubr.f32.mxu0 0.0
        %1824 = vmatmul.mubr.f32.gmra.mxu0 %v1524
        %v1825 = vpop.f32.mrf.mxu0
        %v1826 = vadd.f32 0.0, %v1825
        %v1827 = vpop.f32.mrf.mxu0
        %v1828 = vadd.f32 0.0, %v1827
        %1829 = vmatprep.mubr.f32.mxu0 0.0
        %1830 = vmatmul.mubr.f32.gmra.mxu0 %v1525
        %v1831 = vpop.f32.mrf.mxu0
        %v1832 = vadd.f32 0.0, %v1831
        %v1833 = vpop.f32.mrf.mxu0
        %v1834 = vadd.f32 0.0, %v1833
        %1835 = vmatprep.mubr.f32.mxu0 0.0
        %1836 = vmatmul.mubr.f32.gmra.mxu0 %v1526
        %v1837 = vpop.f32.mrf.mxu0
        %v1838 = vadd.f32 0.0, %v1837
        %v1839 = vpop.f32.mrf.mxu0
        %v1840 = vadd.f32 0.0, %v1839
        %1841 = vmatprep.mubr.f32.mxu0 0.0
        %1842 = vmatmul.mubr.f32.gmra.mxu0 %v1527
        %v1843 = vpop.f32.mrf.mxu0
        %v1844 = vadd.f32 0.0, %v1843
        %v1845 = vpop.f32.mrf.mxu0
        %v1846 = vadd.f32 0.0, %v1845
        %1847 = vmatprep.mubr.f32.mxu0 0.0
        %1848 = vmatmul.mubr.f32.gmra.mxu0 %v1528
        %v1849 = vpop.f32.mrf.mxu0
        %v1850 = vadd.f32 0.0, %v1849
        %v1851 = vpop.f32.mrf.mxu0
        %v1852 = vadd.f32 0.0, %v1851
        %1853 = vmatprep.mubr.f32.mxu0 0.0
        %1854 = vmatmul.mubr.f32.gmra.mxu0 %v1529
        %v1855 = vpop.f32.mrf.mxu0
        %v1856 = vadd.f32 0.0, %v1855
        %v1857 = vpop.f32.mrf.mxu0
        %v1858 = vadd.f32 0.0, %v1857
        %1859 = vmatprep.mubr.f32.mxu0 0.0
        %1860 = vmatmul.mubr.f32.gmra.mxu0 %v1530
        %v1861 = vpop.f32.mrf.mxu0
        %v1862 = vadd.f32 0.0, %v1861
        %v1863 = vpop.f32.mrf.mxu0
        %v1864 = vadd.f32 0.0, %v1863
        %1865 = vmatprep.mubr.f32.mxu0 0.0
        %1866 = vmatmul.mubr.f32.gmra.mxu0 %v1531
        %v1867 = vpop.f32.mrf.mxu0
        %v1868 = vadd.f32 0.0, %v1867
        %v1869 = vpop.f32.mrf.mxu0
        %v1870 = vadd.f32 0.0, %v1869
        %1871 = vmatprep.mubr.f32.mxu0 0.0
        %1872 = vmatmul.mubr.f32.gmra.mxu0 %v1532
        %v1873 = vpop.f32.mrf.mxu0
        %v1874 = vadd.f32 0.0, %v1873
        %v1875 = vpop.f32.mrf.mxu0
        %v1876 = vadd.f32 0.0, %v1875
        %1877 = vmatprep.mubr.f32.mxu0 0.0
        %1878 = vmatmul.mubr.f32.gmra.mxu0 %v1533
        %v1879 = vpop.f32.mrf.mxu0
        %v1880 = vadd.f32 0.0, %v1879
        %v1881 = vpop.f32.mrf.mxu0
        %v1882 = vadd.f32 0.0, %v1881
        %1883 = vmatprep.mubr.f32.mxu0 0.0
        %1884 = vmatmul.mubr.f32.gmra.mxu0 %v1534
        %v1885 = vpop.f32.mrf.mxu0
        %v1886 = vadd.f32 0.0, %v1885
        %v1887 = vpop.f32.mrf.mxu0
        %v1888 = vadd.f32 0.0, %v1887
        %1889 = vmatprep.mubr.f32.mxu0 0.0
        %1890 = vmatmul.mubr.f32.gmra.mxu0 %v1535
        %v1891 = vpop.f32.mrf.mxu0
        %v1892 = vadd.f32 0.0, %v1891
        %v1893 = vpop.f32.mrf.mxu0
        %v1894 = vadd.f32 0.0, %v1893
        %1895 = vmatprep.mubr.f32.mxu0 0.0
        %1896 = vmatmul.mubr.f32.gmra.mxu0 %v1536
        %v1897 = vpop.f32.mrf.mxu0
        %v1898 = vadd.f32 0.0, %v1897
        %v1899 = vpop.f32.mrf.mxu0
        %v1900 = vadd.f32 0.0, %v1899
        %1901 = vmatprep.mubr.f32.mxu0 0.0
        %1902 = vmatmul.mubr.f32.gmra.mxu0 %v1537
        %v1903 = vpop.f32.mrf.mxu0
        %v1904 = vadd.f32 0.0, %v1903
        %v1905 = vpop.f32.mrf.mxu0
        %v1906 = vadd.f32 0.0, %v1905
        %1907 = vmatprep.mubr.f32.mxu0 0.0
        %1908 = vmatmul.mubr.f32.gmra.mxu0 %v1538
        %v1909 = vpop.f32.mrf.mxu0
        %v1910 = vadd.f32 0.0, %v1909
        %v1911 = vpop.f32.mrf.mxu0
        %v1912 = vadd.f32 0.0, %v1911
        %1913 = vmatprep.mubr.f32.mxu0 0.0
        %1914 = vmatmul.mubr.f32.gmra.mxu0 %v1539
        %v1915 = vpop.f32.mrf.mxu0
        %v1916 = vadd.f32 0.0, %v1915
        %v1917 = vpop.f32.mrf.mxu0
        %v1918 = vadd.f32 0.0, %v1917
        %1919 = vmatprep.mubr.f32.mxu0 0.0
        %1920 = vmatmul.mubr.f32.gmra.mxu0 %v1540
        %v1921 = vpop.f32.mrf.mxu0
        %v1922 = vadd.f32 0.0, %v1921
        %v1923 = vpop.f32.mrf.mxu0
        %v1924 = vadd.f32 0.0, %v1923
        %1925 = vdwg.mxu0
        %1926 = vmatprep.subr.mxu0 %v1664
        %1927 = vmatpush1.msra.mxu0 %v1663
        %1928 = vmatprep.subr.mxu0 %v1656
        %1929 = vmatpush1.msra.mxu0 %v1655
        %1930 = vmatprep.subr.mxu0 %v1648
        %1931 = vmatpush1.msra.mxu0 %v1647
        %1932 = vmatprep.subr.mxu0 %v1640
        %1933 = vmatpush1.msra.mxu0 %v1639
        %1934 = vmatprep.subr.mxu0 %v1632
        %1935 = vmatpush1.msra.mxu0 %v1631
        %1936 = vmatprep.subr.mxu0 %v1624
        %1937 = vmatpush1.msra.mxu0 %v1623
        %1938 = vmatprep.subr.mxu0 %v1616
        %1939 = vmatpush1.msra.mxu0 %v1615
        %1940 = vmatprep.subr.mxu0 %v1608
        %1941 = vmatpush1.msra.mxu0 %v1607
        %1942 = vmatprep.subr.mxu0 %v1600
        %1943 = vmatpush1.msra.mxu0 %v1599
        %1944 = vmatprep.subr.mxu0 %v1592
        %1945 = vmatpush1.msra.mxu0 %v1591
        %1946 = vmatprep.subr.mxu0 %v1584
        %1947 = vmatpush1.msra.mxu0 %v1583
        %1948 = vmatprep.subr.mxu0 %v1576
        %1949 = vmatpush1.msra.mxu0 %v1575
        %1950 = vmatprep.subr.mxu0 %v1568
        %1951 = vmatpush1.msra.mxu0 %v1567
        %1952 = vmatprep.subr.mxu0 %v1560
        %1953 = vmatpush1.msra.mxu0 %v1559
        %1954 = vmatprep.subr.mxu0 %v1552
        %1955 = vmatpush1.msra.mxu0 %v1551
        %1956 = vmatprep.subr.mxu0 %v1544
        %1957 = vmatpush1.msra.mxu0 %v1543
        %1958 = vmatprep.subr.mxu0 0.0
        %1959 = vmatpush2.msra.mxu0 0.0
        %1960 = vmatprep.subr.mxu0 0.0
        %1961 = vmatpush2.msra.mxu0 0.0
        %1962 = vmatprep.subr.mxu0 0.0
        %1963 = vmatpush2.msra.mxu0 0.0
        %1964 = vmatprep.subr.mxu0 0.0
        %1965 = vmatpush2.msra.mxu0 0.0
        %1966 = vmatprep.subr.mxu0 0.0
        %1967 = vmatpush2.msra.mxu0 0.0
        %1968 = vmatprep.subr.mxu0 0.0
        %1969 = vmatpush2.msra.mxu0 0.0
        %1970 = vmatprep.subr.mxu0 0.0
        %1971 = vmatpush2.msra.mxu0 0.0
        %1972 = vmatprep.subr.mxu0 0.0
        %1973 = vmatpush2.msra.mxu0 0.0
        %1974 = vmatprep.subr.mxu0 0.0
        %1975 = vmatpush2.msra.mxu0 0.0
        %1976 = vmatprep.subr.mxu0 0.0
        %1977 = vmatpush2.msra.mxu0 0.0
        %1978 = vmatprep.subr.mxu0 0.0
        %1979 = vmatpush2.msra.mxu0 0.0
        %1980 = vmatprep.subr.mxu0 0.0
        %1981 = vmatpush2.msra.mxu0 0.0
        %1982 = vmatprep.subr.mxu0 0.0
        %1983 = vmatpush2.msra.mxu0 0.0
        %1984 = vmatprep.subr.mxu0 0.0
        %1985 = vmatpush2.msra.mxu0 0.0
        %1986 = vmatprep.subr.mxu0 0.0
        %1987 = vmatpush2.msra.mxu0 0.0
        %1988 = vmatprep.subr.mxu0 0.0
        %1989 = vmatpush2.msra.mxu0 0.0
        %1990 = vmatprep.mubr.f32.mxu0 0.0
        %1991 = vmatmul.mubr.f32.gmra.mxu0 %v1509
        %v1992 = vpop.f32.mrf.mxu0
        %v1993 = vadd.f32 0.0, %v1992
        %v1994 = vpop.f32.mrf.mxu0
        %v1995 = vadd.f32 0.0, %v1994
        %1996 = vmatprep.mubr.f32.mxu0 0.0
        %1997 = vmatmul.mubr.f32.gmra.mxu0 %v1510
        %v1998 = vpop.f32.mrf.mxu0
        %v1999 = vadd.f32 0.0, %v1998
        %v2000 = vpop.f32.mrf.mxu0
        %v2001 = vadd.f32 0.0, %v2000
        %2002 = vmatprep.mubr.f32.mxu0 0.0
        %2003 = vmatmul.mubr.f32.gmra.mxu0 %v1511
        %v2004 = vpop.f32.mrf.mxu0
        %v2005 = vadd.f32 0.0, %v2004
        %v2006 = vpop.f32.mrf.mxu0
        %v2007 = vadd.f32 0.0, %v2006
        %2008 = vmatprep.mubr.f32.mxu0 0.0
        %2009 = vmatmul.mubr.f32.gmra.mxu0 %v1512
        %v2010 = vpop.f32.mrf.mxu0
        %v2011 = vadd.f32 0.0, %v2010
        %v2012 = vpop.f32.mrf.mxu0
        %v2013 = vadd.f32 0.0, %v2012
        %2014 = vmatprep.mubr.f32.mxu0 0.0
        %2015 = vmatmul.mubr.f32.gmra.mxu0 %v1513
        %v2016 = vpop.f32.mrf.mxu0
        %v2017 = vadd.f32 0.0, %v2016
        %v2018 = vpop.f32.mrf.mxu0
        %v2019 = vadd.f32 0.0, %v2018
        %2020 = vmatprep.mubr.f32.mxu0 0.0
        %2021 = vmatmul.mubr.f32.gmra.mxu0 %v1514
        %v2022 = vpop.f32.mrf.mxu0
        %v2023 = vadd.f32 0.0, %v2022
        %v2024 = vpop.f32.mrf.mxu0
        %v2025 = vadd.f32 0.0, %v2024
        %2026 = vmatprep.mubr.f32.mxu0 0.0
        %2027 = vmatmul.mubr.f32.gmra.mxu0 %v1515
        %v2028 = vpop.f32.mrf.mxu0
        %v2029 = vadd.f32 0.0, %v2028
        %v2030 = vpop.f32.mrf.mxu0
        %v2031 = vadd.f32 0.0, %v2030
        %2032 = vmatprep.mubr.f32.mxu0 0.0
        %2033 = vmatmul.mubr.f32.gmra.mxu0 %v1516
        %v2034 = vpop.f32.mrf.mxu0
        %v2035 = vadd.f32 0.0, %v2034
        %v2036 = vpop.f32.mrf.mxu0
        %v2037 = vadd.f32 0.0, %v2036
        %2038 = vmatprep.mubr.f32.mxu0 0.0
        %2039 = vmatmul.mubr.f32.gmra.mxu0 %v1517
        %v2040 = vpop.f32.mrf.mxu0
        %v2041 = vadd.f32 0.0, %v2040
        %v2042 = vpop.f32.mrf.mxu0
        %v2043 = vadd.f32 0.0, %v2042
        %2044 = vmatprep.mubr.f32.mxu0 0.0
        %2045 = vmatmul.mubr.f32.gmra.mxu0 %v1518
        %v2046 = vpop.f32.mrf.mxu0
        %v2047 = vadd.f32 0.0, %v2046
        %v2048 = vpop.f32.mrf.mxu0
        %v2049 = vadd.f32 0.0, %v2048
        %2050 = vmatprep.mubr.f32.mxu0 0.0
        %2051 = vmatmul.mubr.f32.gmra.mxu0 %v1519
        %v2052 = vpop.f32.mrf.mxu0
        %v2053 = vadd.f32 0.0, %v2052
        %v2054 = vpop.f32.mrf.mxu0
        %v2055 = vadd.f32 0.0, %v2054
        %2056 = vmatprep.mubr.f32.mxu0 0.0
        %2057 = vmatmul.mubr.f32.gmra.mxu0 %v1520
        %v2058 = vpop.f32.mrf.mxu0
        %v2059 = vadd.f32 0.0, %v2058
        %v2060 = vpop.f32.mrf.mxu0
        %v2061 = vadd.f32 0.0, %v2060
        %2062 = vmatprep.mubr.f32.mxu0 0.0
        %2063 = vmatmul.mubr.f32.gmra.mxu0 %v1521
        %v2064 = vpop.f32.mrf.mxu0
        %v2065 = vadd.f32 0.0, %v2064
        %v2066 = vpop.f32.mrf.mxu0
        %v2067 = vadd.f32 0.0, %v2066
        %2068 = vmatprep.mubr.f32.mxu0 0.0
        %2069 = vmatmul.mubr.f32.gmra.mxu0 %v1522
        %v2070 = vpop.f32.mrf.mxu0
        %v2071 = vadd.f32 0.0, %v2070
        %v2072 = vpop.f32.mrf.mxu0
        %v2073 = vadd.f32 0.0, %v2072
        %2074 = vmatprep.mubr.f32.mxu0 0.0
        %2075 = vmatmul.mubr.f32.gmra.mxu0 %v1523
        %v2076 = vpop.f32.mrf.mxu0
        %v2077 = vadd.f32 0.0, %v2076
        %v2078 = vpop.f32.mrf.mxu0
        %v2079 = vadd.f32 0.0, %v2078
        %2080 = vmatprep.mubr.f32.mxu0 0.0
        %2081 = vmatmul.mubr.f32.gmra.mxu0 %v1524
        %v2082 = vpop.f32.mrf.mxu0
        %v2083 = vadd.f32 0.0, %v2082
        %v2084 = vpop.f32.mrf.mxu0
        %v2085 = vadd.f32 0.0, %v2084
        %2086 = vmatprep.mubr.f32.mxu0 0.0
        %2087 = vmatmul.mubr.f32.gmra.mxu0 %v1525
        %v2088 = vpop.f32.mrf.mxu0
        %v2089 = vadd.f32 0.0, %v2088
        %v2090 = vpop.f32.mrf.mxu0
        %v2091 = vadd.f32 0.0, %v2090
        %2092 = vmatprep.mubr.f32.mxu0 0.0
        %2093 = vmatmul.mubr.f32.gmra.mxu0 %v1526
        %v2094 = vpop.f32.mrf.mxu0
        %v2095 = vadd.f32 0.0, %v2094
        %v2096 = vpop.f32.mrf.mxu0
        %v2097 = vadd.f32 0.0, %v2096
        %2098 = vmatprep.mubr.f32.mxu0 0.0
        %2099 = vmatmul.mubr.f32.gmra.mxu0 %v1527
        %v2100 = vpop.f32.mrf.mxu0
        %v2101 = vadd.f32 0.0, %v2100
        %v2102 = vpop.f32.mrf.mxu0
        %v2103 = vadd.f32 0.0, %v2102
        %2104 = vmatprep.mubr.f32.mxu0 0.0
        %2105 = vmatmul.mubr.f32.gmra.mxu0 %v1528
        %v2106 = vpop.f32.mrf.mxu0
        %v2107 = vadd.f32 0.0, %v2106
        %v2108 = vpop.f32.mrf.mxu0
        %v2109 = vadd.f32 0.0, %v2108
        %2110 = vmatprep.mubr.f32.mxu0 0.0
        %2111 = vmatmul.mubr.f32.gmra.mxu0 %v1529
        %v2112 = vpop.f32.mrf.mxu0
        %v2113 = vadd.f32 0.0, %v2112
        %v2114 = vpop.f32.mrf.mxu0
        %v2115 = vadd.f32 0.0, %v2114
        %2116 = vmatprep.mubr.f32.mxu0 0.0
        %2117 = vmatmul.mubr.f32.gmra.mxu0 %v1530
        %v2118 = vpop.f32.mrf.mxu0
        %v2119 = vadd.f32 0.0, %v2118
        %v2120 = vpop.f32.mrf.mxu0
        %v2121 = vadd.f32 0.0, %v2120
        %2122 = vmatprep.mubr.f32.mxu0 0.0
        %2123 = vmatmul.mubr.f32.gmra.mxu0 %v1531
        %v2124 = vpop.f32.mrf.mxu0
        %v2125 = vadd.f32 0.0, %v2124
        %v2126 = vpop.f32.mrf.mxu0
        %v2127 = vadd.f32 0.0, %v2126
        %2128 = vmatprep.mubr.f32.mxu0 0.0
        %2129 = vmatmul.mubr.f32.gmra.mxu0 %v1532
        %v2130 = vpop.f32.mrf.mxu0
        %v2131 = vadd.f32 0.0, %v2130
        %v2132 = vpop.f32.mrf.mxu0
        %v2133 = vadd.f32 0.0, %v2132
        %2134 = vmatprep.mubr.f32.mxu0 0.0
        %2135 = vmatmul.mubr.f32.gmra.mxu0 %v1533
        %v2136 = vpop.f32.mrf.mxu0
        %v2137 = vadd.f32 0.0, %v2136
        %v2138 = vpop.f32.mrf.mxu0
        %v2139 = vadd.f32 0.0, %v2138
        %2140 = vmatprep.mubr.f32.mxu0 0.0
        %2141 = vmatmul.mubr.f32.gmra.mxu0 %v1534
        %v2142 = vpop.f32.mrf.mxu0
        %v2143 = vadd.f32 0.0, %v2142
        %v2144 = vpop.f32.mrf.mxu0
        %v2145 = vadd.f32 0.0, %v2144
        %2146 = vmatprep.mubr.f32.mxu0 0.0
        %2147 = vmatmul.mubr.f32.gmra.mxu0 %v1535
        %v2148 = vpop.f32.mrf.mxu0
        %v2149 = vadd.f32 0.0, %v2148
        %v2150 = vpop.f32.mrf.mxu0
        %v2151 = vadd.f32 0.0, %v2150
        %2152 = vmatprep.mubr.f32.mxu0 0.0
        %2153 = vmatmul.mubr.f32.gmra.mxu0 %v1536
        %v2154 = vpop.f32.mrf.mxu0
        %v2155 = vadd.f32 0.0, %v2154
        %v2156 = vpop.f32.mrf.mxu0
        %v2157 = vadd.f32 0.0, %v2156
        %2158 = vmatprep.mubr.f32.mxu0 0.0
        %2159 = vmatmul.mubr.f32.gmra.mxu0 %v1537
        %v2160 = vpop.f32.mrf.mxu0
        %v2161 = vadd.f32 0.0, %v2160
        %v2162 = vpop.f32.mrf.mxu0
        %v2163 = vadd.f32 0.0, %v2162
        %2164 = vmatprep.mubr.f32.mxu0 0.0
        %2165 = vmatmul.mubr.f32.gmra.mxu0 %v1538
        %v2166 = vpop.f32.mrf.mxu0
        %v2167 = vadd.f32 0.0, %v2166
        %v2168 = vpop.f32.mrf.mxu0
        %v2169 = vadd.f32 0.0, %v2168
        %2170 = vmatprep.mubr.f32.mxu0 0.0
        %2171 = vmatmul.mubr.f32.gmra.mxu0 %v1539
        %v2172 = vpop.f32.mrf.mxu0
        %v2173 = vadd.f32 0.0, %v2172
        %v2174 = vpop.f32.mrf.mxu0
        %v2175 = vadd.f32 0.0, %v2174
        %2176 = vmatprep.mubr.f32.mxu0 0.0
        %2177 = vmatmul.mubr.f32.gmra.mxu0 %v1540
        %v2178 = vpop.f32.mrf.mxu0
        %v2179 = vadd.f32 0.0, %v2178
        %v2180 = vpop.f32.mrf.mxu0
        %v2181 = vadd.f32 0.0, %v2180
        %2182 = vdwg.mxu0
        %2183 = vmatprep.subr.mxu0 %v1666
        %2184 = vmatpush1.msra.mxu0 %v1665
        %2185 = vmatprep.subr.mxu0 %v1658
        %2186 = vmatpush1.msra.mxu0 %v1657
        %2187 = vmatprep.subr.mxu0 %v1650
        %2188 = vmatpush1.msra.mxu0 %v1649
        %2189 = vmatprep.subr.mxu0 %v1642
        %2190 = vmatpush1.msra.mxu0 %v1641
        %2191 = vmatprep.subr.mxu0 %v1634
        %2192 = vmatpush1.msra.mxu0 %v1633
        %2193 = vmatprep.subr.mxu0 %v1626
        %2194 = vmatpush1.msra.mxu0 %v1625
        %2195 = vmatprep.subr.mxu0 %v1618
        %2196 = vmatpush1.msra.mxu0 %v1617
        %2197 = vmatprep.subr.mxu0 %v1610
        %2198 = vmatpush1.msra.mxu0 %v1609
        %2199 = vmatprep.subr.mxu0 %v1602
        %2200 = vmatpush1.msra.mxu0 %v1601
        %2201 = vmatprep.subr.mxu0 %v1594
        %2202 = vmatpush1.msra.mxu0 %v1593
        %2203 = vmatprep.subr.mxu0 %v1586
        %2204 = vmatpush1.msra.mxu0 %v1585
        %2205 = vmatprep.subr.mxu0 %v1578
        %2206 = vmatpush1.msra.mxu0 %v1577
        %2207 = vmatprep.subr.mxu0 %v1570
        %2208 = vmatpush1.msra.mxu0 %v1569
        %2209 = vmatprep.subr.mxu0 %v1562
        %2210 = vmatpush1.msra.mxu0 %v1561
        %2211 = vmatprep.subr.mxu0 %v1554
        %2212 = vmatpush1.msra.mxu0 %v1553
        %2213 = vmatprep.subr.mxu0 %v1546
        %2214 = vmatpush1.msra.mxu0 %v1545
        %2215 = vmatprep.subr.mxu0 0.0
        %2216 = vmatpush2.msra.mxu0 0.0
        %2217 = vmatprep.subr.mxu0 0.0
        %2218 = vmatpush2.msra.mxu0 0.0
        %2219 = vmatprep.subr.mxu0 0.0
        %2220 = vmatpush2.msra.mxu0 0.0
        %2221 = vmatprep.subr.mxu0 0.0
        %2222 = vmatpush2.msra.mxu0 0.0
        %2223 = vmatprep.subr.mxu0 0.0
        %2224 = vmatpush2.msra.mxu0 0.0
        %2225 = vmatprep.subr.mxu0 0.0
        %2226 = vmatpush2.msra.mxu0 0.0
        %2227 = vmatprep.subr.mxu0 0.0
        %2228 = vmatpush2.msra.mxu0 0.0
        %2229 = vmatprep.subr.mxu0 0.0
        %2230 = vmatpush2.msra.mxu0 0.0
        %2231 = vmatprep.subr.mxu0 0.0
        %2232 = vmatpush2.msra.mxu0 0.0
        %2233 = vmatprep.subr.mxu0 0.0
        %2234 = vmatpush2.msra.mxu0 0.0
        %2235 = vmatprep.subr.mxu0 0.0
        %2236 = vmatpush2.msra.mxu0 0.0
        %2237 = vmatprep.subr.mxu0 0.0
        %2238 = vmatpush2.msra.mxu0 0.0
        %2239 = vmatprep.subr.mxu0 0.0
        %2240 = vmatpush2.msra.mxu0 0.0
        %2241 = vmatprep.subr.mxu0 0.0
        %2242 = vmatpush2.msra.mxu0 0.0
        %2243 = vmatprep.subr.mxu0 0.0
        %2244 = vmatpush2.msra.mxu0 0.0
        %2245 = vmatprep.subr.mxu0 0.0
        %2246 = vmatpush2.msra.mxu0 0.0
        %2247 = vmatprep.mubr.f32.mxu0 0.0
        %2248 = vmatmul.mubr.f32.gmra.mxu0 %v1509
        %v2249 = vpop.f32.mrf.mxu0
        %v2250 = vadd.f32 0.0, %v2249
        %v2251 = vpop.f32.mrf.mxu0
        %v2252 = vadd.f32 0.0, %v2251
        %2253 = vmatprep.mubr.f32.mxu0 0.0
        %2254 = vmatmul.mubr.f32.gmra.mxu0 %v1510
        %v2255 = vpop.f32.mrf.mxu0
        %v2256 = vadd.f32 0.0, %v2255
        %v2257 = vpop.f32.mrf.mxu0
        %v2258 = vadd.f32 0.0, %v2257
        %2259 = vmatprep.mubr.f32.mxu0 0.0
        %2260 = vmatmul.mubr.f32.gmra.mxu0 %v1511
        %v2261 = vpop.f32.mrf.mxu0
        %v2262 = vadd.f32 0.0, %v2261
        %v2263 = vpop.f32.mrf.mxu0
        %v2264 = vadd.f32 0.0, %v2263
        %2265 = vmatprep.mubr.f32.mxu0 0.0
        %2266 = vmatmul.mubr.f32.gmra.mxu0 %v1512
        %v2267 = vpop.f32.mrf.mxu0
        %v2268 = vadd.f32 0.0, %v2267
        %v2269 = vpop.f32.mrf.mxu0
        %v2270 = vadd.f32 0.0, %v2269
        %2271 = vmatprep.mubr.f32.mxu0 0.0
        %2272 = vmatmul.mubr.f32.gmra.mxu0 %v1513
        %v2273 = vpop.f32.mrf.mxu0
        %v2274 = vadd.f32 0.0, %v2273
        %v2275 = vpop.f32.mrf.mxu0
        %v2276 = vadd.f32 0.0, %v2275
        %2277 = vmatprep.mubr.f32.mxu0 0.0
        %2278 = vmatmul.mubr.f32.gmra.mxu0 %v1514
        %v2279 = vpop.f32.mrf.mxu0
        %v2280 = vadd.f32 0.0, %v2279
        %v2281 = vpop.f32.mrf.mxu0
        %v2282 = vadd.f32 0.0, %v2281
        %2283 = vmatprep.mubr.f32.mxu0 0.0
        %2284 = vmatmul.mubr.f32.gmra.mxu0 %v1515
        %v2285 = vpop.f32.mrf.mxu0
        %v2286 = vadd.f32 0.0, %v2285
        %v2287 = vpop.f32.mrf.mxu0
        %v2288 = vadd.f32 0.0, %v2287
        %2289 = vmatprep.mubr.f32.mxu0 0.0
        %2290 = vmatmul.mubr.f32.gmra.mxu0 %v1516
        %v2291 = vpop.f32.mrf.mxu0
        %v2292 = vadd.f32 0.0, %v2291
        %v2293 = vpop.f32.mrf.mxu0
        %v2294 = vadd.f32 0.0, %v2293
        %2295 = vmatprep.mubr.f32.mxu0 0.0
        %2296 = vmatmul.mubr.f32.gmra.mxu0 %v1517
        %v2297 = vpop.f32.mrf.mxu0
        %v2298 = vadd.f32 0.0, %v2297
        %v2299 = vpop.f32.mrf.mxu0
        %v2300 = vadd.f32 0.0, %v2299
        %2301 = vmatprep.mubr.f32.mxu0 0.0
        %2302 = vmatmul.mubr.f32.gmra.mxu0 %v1518
        %v2303 = vpop.f32.mrf.mxu0
        %v2304 = vadd.f32 0.0, %v2303
        %v2305 = vpop.f32.mrf.mxu0
        %v2306 = vadd.f32 0.0, %v2305
        %2307 = vmatprep.mubr.f32.mxu0 0.0
        %2308 = vmatmul.mubr.f32.gmra.mxu0 %v1519
        %v2309 = vpop.f32.mrf.mxu0
        %v2310 = vadd.f32 0.0, %v2309
        %v2311 = vpop.f32.mrf.mxu0
        %v2312 = vadd.f32 0.0, %v2311
        %2313 = vmatprep.mubr.f32.mxu0 0.0
        %2314 = vmatmul.mubr.f32.gmra.mxu0 %v1520
        %v2315 = vpop.f32.mrf.mxu0
        %v2316 = vadd.f32 0.0, %v2315
        %v2317 = vpop.f32.mrf.mxu0
        %v2318 = vadd.f32 0.0, %v2317
        %2319 = vmatprep.mubr.f32.mxu0 0.0
        %2320 = vmatmul.mubr.f32.gmra.mxu0 %v1521
        %v2321 = vpop.f32.mrf.mxu0
        %v2322 = vadd.f32 0.0, %v2321
        %v2323 = vpop.f32.mrf.mxu0
        %v2324 = vadd.f32 0.0, %v2323
        %2325 = vmatprep.mubr.f32.mxu0 0.0
        %2326 = vmatmul.mubr.f32.gmra.mxu0 %v1522
        %v2327 = vpop.f32.mrf.mxu0
        %v2328 = vadd.f32 0.0, %v2327
        %v2329 = vpop.f32.mrf.mxu0
        %v2330 = vadd.f32 0.0, %v2329
        %2331 = vmatprep.mubr.f32.mxu0 0.0
        %2332 = vmatmul.mubr.f32.gmra.mxu0 %v1523
        %v2333 = vpop.f32.mrf.mxu0
        %v2334 = vadd.f32 0.0, %v2333
        %v2335 = vpop.f32.mrf.mxu0
        %v2336 = vadd.f32 0.0, %v2335
        %2337 = vmatprep.mubr.f32.mxu0 0.0
        %2338 = vmatmul.mubr.f32.gmra.mxu0 %v1524
        %v2339 = vpop.f32.mrf.mxu0
        %v2340 = vadd.f32 0.0, %v2339
        %v2341 = vpop.f32.mrf.mxu0
        %v2342 = vadd.f32 0.0, %v2341
        %2343 = vmatprep.mubr.f32.mxu0 0.0
        %2344 = vmatmul.mubr.f32.gmra.mxu0 %v1525
        %v2345 = vpop.f32.mrf.mxu0
        %v2346 = vadd.f32 0.0, %v2345
        %v2347 = vpop.f32.mrf.mxu0
        %v2348 = vadd.f32 0.0, %v2347
        %2349 = vmatprep.mubr.f32.mxu0 0.0
        %2350 = vmatmul.mubr.f32.gmra.mxu0 %v1526
        %v2351 = vpop.f32.mrf.mxu0
        %v2352 = vadd.f32 0.0, %v2351
        %v2353 = vpop.f32.mrf.mxu0
        %v2354 = vadd.f32 0.0, %v2353
        %2355 = vmatprep.mubr.f32.mxu0 0.0
        %2356 = vmatmul.mubr.f32.gmra.mxu0 %v1527
        %v2357 = vpop.f32.mrf.mxu0
        %v2358 = vadd.f32 0.0, %v2357
        %v2359 = vpop.f32.mrf.mxu0
        %v2360 = vadd.f32 0.0, %v2359
        %2361 = vmatprep.mubr.f32.mxu0 0.0
        %2362 = vmatmul.mubr.f32.gmra.mxu0 %v1528
        %v2363 = vpop.f32.mrf.mxu0
        %v2364 = vadd.f32 0.0, %v2363
        %v2365 = vpop.f32.mrf.mxu0
        %v2366 = vadd.f32 0.0, %v2365
        %2367 = vmatprep.mubr.f32.mxu0 0.0
        %2368 = vmatmul.mubr.f32.gmra.mxu0 %v1529
        %v2369 = vpop.f32.mrf.mxu0
        %v2370 = vadd.f32 0.0, %v2369
        %v2371 = vpop.f32.mrf.mxu0
        %v2372 = vadd.f32 0.0, %v2371
        %2373 = vmatprep.mubr.f32.mxu0 0.0
        %2374 = vmatmul.mubr.f32.gmra.mxu0 %v1530
        %v2375 = vpop.f32.mrf.mxu0
        %v2376 = vadd.f32 0.0, %v2375
        %v2377 = vpop.f32.mrf.mxu0
        %v2378 = vadd.f32 0.0, %v2377
        %2379 = vmatprep.mubr.f32.mxu0 0.0
        %2380 = vmatmul.mubr.f32.gmra.mxu0 %v1531
        %v2381 = vpop.f32.mrf.mxu0
        %v2382 = vadd.f32 0.0, %v2381
        %v2383 = vpop.f32.mrf.mxu0
        %v2384 = vadd.f32 0.0, %v2383
        %2385 = vmatprep.mubr.f32.mxu0 0.0
        %2386 = vmatmul.mubr.f32.gmra.mxu0 %v1532
        %v2387 = vpop.f32.mrf.mxu0
        %v2388 = vadd.f32 0.0, %v2387
        %v2389 = vpop.f32.mrf.mxu0
        %v2390 = vadd.f32 0.0, %v2389
        %2391 = vmatprep.mubr.f32.mxu0 0.0
        %2392 = vmatmul.mubr.f32.gmra.mxu0 %v1533
        %v2393 = vpop.f32.mrf.mxu0
        %v2394 = vadd.f32 0.0, %v2393
        %v2395 = vpop.f32.mrf.mxu0
        %v2396 = vadd.f32 0.0, %v2395
        %2397 = vmatprep.mubr.f32.mxu0 0.0
        %2398 = vmatmul.mubr.f32.gmra.mxu0 %v1534
        %v2399 = vpop.f32.mrf.mxu0
        %v2400 = vadd.f32 0.0, %v2399
        %v2401 = vpop.f32.mrf.mxu0
        %v2402 = vadd.f32 0.0, %v2401
        %2403 = vmatprep.mubr.f32.mxu0 0.0
        %2404 = vmatmul.mubr.f32.gmra.mxu0 %v1535
        %v2405 = vpop.f32.mrf.mxu0
        %v2406 = vadd.f32 0.0, %v2405
        %v2407 = vpop.f32.mrf.mxu0
        %v2408 = vadd.f32 0.0, %v2407
        %2409 = vmatprep.mubr.f32.mxu0 0.0
        %2410 = vmatmul.mubr.f32.gmra.mxu0 %v1536
        %v2411 = vpop.f32.mrf.mxu0
        %v2412 = vadd.f32 0.0, %v2411
        %v2413 = vpop.f32.mrf.mxu0
        %v2414 = vadd.f32 0.0, %v2413
        %2415 = vmatprep.mubr.f32.mxu0 0.0
        %2416 = vmatmul.mubr.f32.gmra.mxu0 %v1537
        %v2417 = vpop.f32.mrf.mxu0
        %v2418 = vadd.f32 0.0, %v2417
        %v2419 = vpop.f32.mrf.mxu0
        %v2420 = vadd.f32 0.0, %v2419
        %2421 = vmatprep.mubr.f32.mxu0 0.0
        %2422 = vmatmul.mubr.f32.gmra.mxu0 %v1538
        %v2423 = vpop.f32.mrf.mxu0
        %v2424 = vadd.f32 0.0, %v2423
        %v2425 = vpop.f32.mrf.mxu0
        %v2426 = vadd.f32 0.0, %v2425
        %2427 = vmatprep.mubr.f32.mxu0 0.0
        %2428 = vmatmul.mubr.f32.gmra.mxu0 %v1539
        %v2429 = vpop.f32.mrf.mxu0
        %v2430 = vadd.f32 0.0, %v2429
        %v2431 = vpop.f32.mrf.mxu0
        %v2432 = vadd.f32 0.0, %v2431
        %2433 = vmatprep.mubr.f32.mxu0 0.0
        %2434 = vmatmul.mubr.f32.gmra.mxu0 %v1540
        %v2435 = vpop.f32.mrf.mxu0
        %v2436 = vadd.f32 0.0, %v2435
        %v2437 = vpop.f32.mrf.mxu0
        %v2438 = vadd.f32 0.0, %v2437
        %2439 = vdwg.mxu0
        %2440 = vmatprep.subr.mxu0 %v1668
        %2441 = vmatpush1.msra.mxu0 %v1667
        %2442 = vmatprep.subr.mxu0 %v1660
        %2443 = vmatpush1.msra.mxu0 %v1659
        %2444 = vmatprep.subr.mxu0 %v1652
        %2445 = vmatpush1.msra.mxu0 %v1651
        %2446 = vmatprep.subr.mxu0 %v1644
        %2447 = vmatpush1.msra.mxu0 %v1643
        %2448 = vmatprep.subr.mxu0 %v1636
        %2449 = vmatpush1.msra.mxu0 %v1635
        %2450 = vmatprep.subr.mxu0 %v1628
        %2451 = vmatpush1.msra.mxu0 %v1627
        %2452 = vmatprep.subr.mxu0 %v1620
        %2453 = vmatpush1.msra.mxu0 %v1619
        %2454 = vmatprep.subr.mxu0 %v1612
        %2455 = vmatpush1.msra.mxu0 %v1611
        %2456 = vmatprep.subr.mxu0 %v1604
        %2457 = vmatpush1.msra.mxu0 %v1603
        %2458 = vmatprep.subr.mxu0 %v1596
        %2459 = vmatpush1.msra.mxu0 %v1595
        %2460 = vmatprep.subr.mxu0 %v1588
        %2461 = vmatpush1.msra.mxu0 %v1587
        %2462 = vmatprep.subr.mxu0 %v1580
        %2463 = vmatpush1.msra.mxu0 %v1579
        %2464 = vmatprep.subr.mxu0 %v1572
        %2465 = vmatpush1.msra.mxu0 %v1571
        %2466 = vmatprep.subr.mxu0 %v1564
        %2467 = vmatpush1.msra.mxu0 %v1563
        %2468 = vmatprep.subr.mxu0 %v1556
        %2469 = vmatpush1.msra.mxu0 %v1555
        %2470 = vmatprep.subr.mxu0 %v1548
        %2471 = vmatpush1.msra.mxu0 %v1547
        %2472 = vmatprep.subr.mxu0 0.0
        %2473 = vmatpush2.msra.mxu0 0.0
        %2474 = vmatprep.subr.mxu0 0.0
        %2475 = vmatpush2.msra.mxu0 0.0
        %2476 = vmatprep.subr.mxu0 0.0
        %2477 = vmatpush2.msra.mxu0 0.0
        %2478 = vmatprep.subr.mxu0 0.0
        %2479 = vmatpush2.msra.mxu0 0.0
        %2480 = vmatprep.subr.mxu0 0.0
        %2481 = vmatpush2.msra.mxu0 0.0
        %2482 = vmatprep.subr.mxu0 0.0
        %2483 = vmatpush2.msra.mxu0 0.0
        %2484 = vmatprep.subr.mxu0 0.0
        %2485 = vmatpush2.msra.mxu0 0.0
        %2486 = vmatprep.subr.mxu0 0.0
        %2487 = vmatpush2.msra.mxu0 0.0
        %2488 = vmatprep.subr.mxu0 0.0
        %2489 = vmatpush2.msra.mxu0 0.0
        %2490 = vmatprep.subr.mxu0 0.0
        %2491 = vmatpush2.msra.mxu0 0.0
        %2492 = vmatprep.subr.mxu0 0.0
        %2493 = vmatpush2.msra.mxu0 0.0
        %2494 = vmatprep.subr.mxu0 0.0
        %2495 = vmatpush2.msra.mxu0 0.0
        %2496 = vmatprep.subr.mxu0 0.0
        %2497 = vmatpush2.msra.mxu0 0.0
        %2498 = vmatprep.subr.mxu0 0.0
        %2499 = vmatpush2.msra.mxu0 0.0
        %2500 = vmatprep.subr.mxu0 0.0
        %2501 = vmatpush2.msra.mxu0 0.0
        %2502 = vmatprep.subr.mxu0 0.0
        %2503 = vmatpush2.msra.mxu0 0.0
        %2504 = vmatprep.mubr.f32.mxu0 0.0
        %2505 = vmatmul.mubr.f32.gmra.mxu0 %v1509
        %v2506 = vpop.f32.mrf.mxu0
        %v2507 = vadd.f32 0.0, %v2506
        %v2508 = vpop.f32.mrf.mxu0
        %v2509 = vadd.f32 0.0, %v2508
        %2510 = vmatprep.mubr.f32.mxu0 0.0
        %2511 = vmatmul.mubr.f32.gmra.mxu0 %v1510
        %v2512 = vpop.f32.mrf.mxu0
        %v2513 = vadd.f32 0.0, %v2512
        %v2514 = vpop.f32.mrf.mxu0
        %v2515 = vadd.f32 0.0, %v2514
        %2516 = vmatprep.mubr.f32.mxu0 0.0
        %2517 = vmatmul.mubr.f32.gmra.mxu0 %v1511
        %v2518 = vpop.f32.mrf.mxu0
        %v2519 = vadd.f32 0.0, %v2518
        %v2520 = vpop.f32.mrf.mxu0
        %v2521 = vadd.f32 0.0, %v2520
        %2522 = vmatprep.mubr.f32.mxu0 0.0
        %2523 = vmatmul.mubr.f32.gmra.mxu0 %v1512
        %v2524 = vpop.f32.mrf.mxu0
        %v2525 = vadd.f32 0.0, %v2524
        %v2526 = vpop.f32.mrf.mxu0
        %v2527 = vadd.f32 0.0, %v2526
        %2528 = vmatprep.mubr.f32.mxu0 0.0
        %2529 = vmatmul.mubr.f32.gmra.mxu0 %v1513
        %v2530 = vpop.f32.mrf.mxu0
        %v2531 = vadd.f32 0.0, %v2530
        %v2532 = vpop.f32.mrf.mxu0
        %v2533 = vadd.f32 0.0, %v2532
        %2534 = vmatprep.mubr.f32.mxu0 0.0
        %2535 = vmatmul.mubr.f32.gmra.mxu0 %v1514
        %v2536 = vpop.f32.mrf.mxu0
        %v2537 = vadd.f32 0.0, %v2536
        %v2538 = vpop.f32.mrf.mxu0
        %v2539 = vadd.f32 0.0, %v2538
        %2540 = vmatprep.mubr.f32.mxu0 0.0
        %2541 = vmatmul.mubr.f32.gmra.mxu0 %v1515
        %v2542 = vpop.f32.mrf.mxu0
        %v2543 = vadd.f32 0.0, %v2542
        %v2544 = vpop.f32.mrf.mxu0
        %v2545 = vadd.f32 0.0, %v2544
        %2546 = vmatprep.mubr.f32.mxu0 0.0
        %2547 = vmatmul.mubr.f32.gmra.mxu0 %v1516
        %v2548 = vpop.f32.mrf.mxu0
        %v2549 = vadd.f32 0.0, %v2548
        %v2550 = vpop.f32.mrf.mxu0
        %v2551 = vadd.f32 0.0, %v2550
        %2552 = vmatprep.mubr.f32.mxu0 0.0
        %2553 = vmatmul.mubr.f32.gmra.mxu0 %v1517
        %v2554 = vpop.f32.mrf.mxu0
        %v2555 = vadd.f32 0.0, %v2554
        %v2556 = vpop.f32.mrf.mxu0
        %v2557 = vadd.f32 0.0, %v2556
        %2558 = vmatprep.mubr.f32.mxu0 0.0
        %2559 = vmatmul.mubr.f32.gmra.mxu0 %v1518
        %v2560 = vpop.f32.mrf.mxu0
        %v2561 = vadd.f32 0.0, %v2560
        %v2562 = vpop.f32.mrf.mxu0
        %v2563 = vadd.f32 0.0, %v2562
        %2564 = vmatprep.mubr.f32.mxu0 0.0
        %2565 = vmatmul.mubr.f32.gmra.mxu0 %v1519
        %v2566 = vpop.f32.mrf.mxu0
        %v2567 = vadd.f32 0.0, %v2566
        %v2568 = vpop.f32.mrf.mxu0
        %v2569 = vadd.f32 0.0, %v2568
        %2570 = vmatprep.mubr.f32.mxu0 0.0
        %2571 = vmatmul.mubr.f32.gmra.mxu0 %v1520
        %v2572 = vpop.f32.mrf.mxu0
        %v2573 = vadd.f32 0.0, %v2572
        %v2574 = vpop.f32.mrf.mxu0
        %v2575 = vadd.f32 0.0, %v2574
        %2576 = vmatprep.mubr.f32.mxu0 0.0
        %2577 = vmatmul.mubr.f32.gmra.mxu0 %v1521
        %v2578 = vpop.f32.mrf.mxu0
        %v2579 = vadd.f32 0.0, %v2578
        %v2580 = vpop.f32.mrf.mxu0
        %v2581 = vadd.f32 0.0, %v2580
        %2582 = vmatprep.mubr.f32.mxu0 0.0
        %2583 = vmatmul.mubr.f32.gmra.mxu0 %v1522
        %v2584 = vpop.f32.mrf.mxu0
        %v2585 = vadd.f32 0.0, %v2584
        %v2586 = vpop.f32.mrf.mxu0
        %v2587 = vadd.f32 0.0, %v2586
        %2588 = vmatprep.mubr.f32.mxu0 0.0
        %2589 = vmatmul.mubr.f32.gmra.mxu0 %v1523
        %v2590 = vpop.f32.mrf.mxu0
        %v2591 = vadd.f32 0.0, %v2590
        %v2592 = vpop.f32.mrf.mxu0
        %v2593 = vadd.f32 0.0, %v2592
        %2594 = vmatprep.mubr.f32.mxu0 0.0
        %2595 = vmatmul.mubr.f32.gmra.mxu0 %v1524
        %v2596 = vpop.f32.mrf.mxu0
        %v2597 = vadd.f32 0.0, %v2596
        %v2598 = vpop.f32.mrf.mxu0
        %v2599 = vadd.f32 0.0, %v2598
        %2600 = vmatprep.mubr.f32.mxu0 0.0
        %2601 = vmatmul.mubr.f32.gmra.mxu0 %v1525
        %v2602 = vpop.f32.mrf.mxu0
        %v2603 = vadd.f32 0.0, %v2602
        %v2604 = vpop.f32.mrf.mxu0
        %v2605 = vadd.f32 0.0, %v2604
        %2606 = vmatprep.mubr.f32.mxu0 0.0
        %2607 = vmatmul.mubr.f32.gmra.mxu0 %v1526
        %v2608 = vpop.f32.mrf.mxu0
        %v2609 = vadd.f32 0.0, %v2608
        %v2610 = vpop.f32.mrf.mxu0
        %v2611 = vadd.f32 0.0, %v2610
        %2612 = vmatprep.mubr.f32.mxu0 0.0
        %2613 = vmatmul.mubr.f32.gmra.mxu0 %v1527
        %v2614 = vpop.f32.mrf.mxu0
        %v2615 = vadd.f32 0.0, %v2614
        %v2616 = vpop.f32.mrf.mxu0
        %v2617 = vadd.f32 0.0, %v2616
        %2618 = vmatprep.mubr.f32.mxu0 0.0
        %2619 = vmatmul.mubr.f32.gmra.mxu0 %v1528
        %v2620 = vpop.f32.mrf.mxu0
        %v2621 = vadd.f32 0.0, %v2620
        %v2622 = vpop.f32.mrf.mxu0
        %v2623 = vadd.f32 0.0, %v2622
        %2624 = vmatprep.mubr.f32.mxu0 0.0
        %2625 = vmatmul.mubr.f32.gmra.mxu0 %v1529
        %v2626 = vpop.f32.mrf.mxu0
        %v2627 = vadd.f32 0.0, %v2626
        %v2628 = vpop.f32.mrf.mxu0
        %v2629 = vadd.f32 0.0, %v2628
        %2630 = vmatprep.mubr.f32.mxu0 0.0
        %2631 = vmatmul.mubr.f32.gmra.mxu0 %v1530
        %v2632 = vpop.f32.mrf.mxu0
        %v2633 = vadd.f32 0.0, %v2632
        %v2634 = vpop.f32.mrf.mxu0
        %v2635 = vadd.f32 0.0, %v2634
        %2636 = vmatprep.mubr.f32.mxu0 0.0
        %2637 = vmatmul.mubr.f32.gmra.mxu0 %v1531
        %v2638 = vpop.f32.mrf.mxu0
        %v2639 = vadd.f32 0.0, %v2638
        %v2640 = vpop.f32.mrf.mxu0
        %v2641 = vadd.f32 0.0, %v2640
        %2642 = vmatprep.mubr.f32.mxu0 0.0
        %2643 = vmatmul.mubr.f32.gmra.mxu0 %v1532
        %v2644 = vpop.f32.mrf.mxu0
        %v2645 = vadd.f32 0.0, %v2644
        %v2646 = vpop.f32.mrf.mxu0
        %v2647 = vadd.f32 0.0, %v2646
        %2648 = vmatprep.mubr.f32.mxu0 0.0
        %2649 = vmatmul.mubr.f32.gmra.mxu0 %v1533
        %v2650 = vpop.f32.mrf.mxu0
        %v2651 = vadd.f32 0.0, %v2650
        %v2652 = vpop.f32.mrf.mxu0
        %v2653 = vadd.f32 0.0, %v2652
        %2654 = vmatprep.mubr.f32.mxu0 0.0
        %2655 = vmatmul.mubr.f32.gmra.mxu0 %v1534
        %v2656 = vpop.f32.mrf.mxu0
        %v2657 = vadd.f32 0.0, %v2656
        %v2658 = vpop.f32.mrf.mxu0
        %v2659 = vadd.f32 0.0, %v2658
        %2660 = vmatprep.mubr.f32.mxu0 0.0
        %2661 = vmatmul.mubr.f32.gmra.mxu0 %v1535
        %v2662 = vpop.f32.mrf.mxu0
        %v2663 = vadd.f32 0.0, %v2662
        %v2664 = vpop.f32.mrf.mxu0
        %v2665 = vadd.f32 0.0, %v2664
        %2666 = vmatprep.mubr.f32.mxu0 0.0
        %2667 = vmatmul.mubr.f32.gmra.mxu0 %v1536
        %v2668 = vpop.f32.mrf.mxu0
        %v2669 = vadd.f32 0.0, %v2668
        %v2670 = vpop.f32.mrf.mxu0
        %v2671 = vadd.f32 0.0, %v2670
        %2672 = vmatprep.mubr.f32.mxu0 0.0
        %2673 = vmatmul.mubr.f32.gmra.mxu0 %v1537
        %v2674 = vpop.f32.mrf.mxu0
        %v2675 = vadd.f32 0.0, %v2674
        %v2676 = vpop.f32.mrf.mxu0
        %v2677 = vadd.f32 0.0, %v2676
        %2678 = vmatprep.mubr.f32.mxu0 0.0
        %2679 = vmatmul.mubr.f32.gmra.mxu0 %v1538
        %v2680 = vpop.f32.mrf.mxu0
        %v2681 = vadd.f32 0.0, %v2680
        %v2682 = vpop.f32.mrf.mxu0
        %v2683 = vadd.f32 0.0, %v2682
        %2684 = vmatprep.mubr.f32.mxu0 0.0
        %2685 = vmatmul.mubr.f32.gmra.mxu0 %v1539
        %v2686 = vpop.f32.mrf.mxu0
        %v2687 = vadd.f32 0.0, %v2686
        %v2688 = vpop.f32.mrf.mxu0
        %v2689 = vadd.f32 0.0, %v2688
        %2690 = vmatprep.mubr.f32.mxu0 0.0
        %2691 = vmatmul.mubr.f32.gmra.mxu0 %v1540
        %v2692 = vpop.f32.mrf.mxu0
        %v2693 = vadd.f32 0.0, %v2692
        %v2694 = vpop.f32.mrf.mxu0
        %v2695 = vadd.f32 0.0, %v2694
        %2696 = vdwg.mxu0
        %v2697 = vmax.f32 %v1736, %v1742
        %v2698 = vmax.f32 %v2697, %v1748
        %v2699 = vmax.f32 %v2698, %v1754
        %v2700 = vmax.f32 %v2699, %v1760
        %v2701 = vmax.f32 %v2700, %v1766
        %v2702 = vmax.f32 %v2701, %v1772
        %v2703 = vmax.f32 %v2702, %v1778
        %v2704 = vmax.f32 %v2703, %v1784
        %v2705 = vmax.f32 %v2704, %v1790
        %v2706 = vmax.f32 %v2705, %v1796
        %v2707 = vmax.f32 %v2706, %v1802
        %v2708 = vmax.f32 %v2707, %v1808
        %v2709 = vmax.f32 %v2708, %v1814
        %v2710 = vmax.f32 %v2709, %v1820
        %v2711 = vmax.f32 %v2710, %v1826
        %v2712 = vrot.slane %v2711, 4
        %v2713 = vmax.f32 %v2711, %v2712
        %v2714 = vrot.slane %v2713, 2
        %v2715 = vmax.f32 %v2713, %v2714
        %v2716 = vrot.slane %v2715, 1
        %v2717 = vmax.f32 %v2715, %v2716
        %v2718 = vmax.f32 %v1738, %v1744
        %v2719 = vmax.f32 %v2718, %v1750
        %v2720 = vmax.f32 %v2719, %v1756
        %v2721 = vmax.f32 %v2720, %v1762
        %v2722 = vmax.f32 %v2721, %v1768
        %v2723 = vmax.f32 %v2722, %v1774
        %v2724 = vmax.f32 %v2723, %v1780
        %v2725 = vmax.f32 %v2724, %v1786
        %v2726 = vmax.f32 %v2725, %v1792
        %v2727 = vmax.f32 %v2726, %v1798
        %v2728 = vmax.f32 %v2727, %v1804
        %v2729 = vmax.f32 %v2728, %v1810
        %v2730 = vmax.f32 %v2729, %v1816
        %v2731 = vmax.f32 %v2730, %v1822
        %v2732 = vmax.f32 %v2731, %v1828
        %v2733 = vrot.slane %v2732, 4
        %v2734 = vmax.f32 %v2732, %v2733
        %v2735 = vrot.slane %v2734, 2
        %v2736 = vmax.f32 %v2734, %v2735
        %v2737 = vrot.slane %v2736, 1
        %v2738 = vmax.f32 %v2736, %v2737
        %v2739 = vmax.f32 %v1993, %v1999
        %v2740 = vmax.f32 %v2739, %v2005
        %v2741 = vmax.f32 %v2740, %v2011
        %v2742 = vmax.f32 %v2741, %v2017
        %v2743 = vmax.f32 %v2742, %v2023
        %v2744 = vmax.f32 %v2743, %v2029
        %v2745 = vmax.f32 %v2744, %v2035
        %v2746 = vmax.f32 %v2745, %v2041
        %v2747 = vmax.f32 %v2746, %v2047
        %v2748 = vmax.f32 %v2747, %v2053
        %v2749 = vmax.f32 %v2748, %v2059
        %v2750 = vmax.f32 %v2749, %v2065
        %v2751 = vmax.f32 %v2750, %v2071
        %v2752 = vmax.f32 %v2751, %v2077
        %v2753 = vmax.f32 %v2752, %v2083
        %v2754 = vrot.slane %v2753, 4
        %v2755 = vmax.f32 %v2753, %v2754
        %v2756 = vrot.slane %v2755, 2
        %v2757 = vmax.f32 %v2755, %v2756
        %v2758 = vrot.slane %v2757, 1
        %v2759 = vmax.f32 %v2757, %v2758
        %v2760 = vmax.f32 %v1995, %v2001
        %v2761 = vmax.f32 %v2760, %v2007
        %v2762 = vmax.f32 %v2761, %v2013
        %v2763 = vmax.f32 %v2762, %v2019
        %v2764 = vmax.f32 %v2763, %v2025
        %v2765 = vmax.f32 %v2764, %v2031
        %v2766 = vmax.f32 %v2765, %v2037
        %v2767 = vmax.f32 %v2766, %v2043
        %v2768 = vmax.f32 %v2767, %v2049
        %v2769 = vmax.f32 %v2768, %v2055
        %v2770 = vmax.f32 %v2769, %v2061
        %v2771 = vmax.f32 %v2770, %v2067
        %v2772 = vmax.f32 %v2771, %v2073
        %v2773 = vmax.f32 %v2772, %v2079
        %v2774 = vmax.f32 %v2773, %v2085
        %v2775 = vrot.slane %v2774, 4
        %v2776 = vmax.f32 %v2774, %v2775
        %v2777 = vrot.slane %v2776, 2
        %v2778 = vmax.f32 %v2776, %v2777
        %v2779 = vrot.slane %v2778, 1
        %v2780 = vmax.f32 %v2778, %v2779
        %v2781 = vmax.f32 %v2250, %v2256
        %v2782 = vmax.f32 %v2781, %v2262
        %v2783 = vmax.f32 %v2782, %v2268
        %v2784 = vmax.f32 %v2783, %v2274
        %v2785 = vmax.f32 %v2784, %v2280
        %v2786 = vmax.f32 %v2785, %v2286
        %v2787 = vmax.f32 %v2786, %v2292
        %v2788 = vmax.f32 %v2787, %v2298
        %v2789 = vmax.f32 %v2788, %v2304
        %v2790 = vmax.f32 %v2789, %v2310
        %v2791 = vmax.f32 %v2790, %v2316
        %v2792 = vmax.f32 %v2791, %v2322
        %v2793 = vmax.f32 %v2792, %v2328
        %v2794 = vmax.f32 %v2793, %v2334
        %v2795 = vmax.f32 %v2794, %v2340
        %v2796 = vrot.slane %v2795, 4
        %v2797 = vmax.f32 %v2795, %v2796
        %v2798 = vrot.slane %v2797, 2
        %v2799 = vmax.f32 %v2797, %v2798
        %v2800 = vrot.slane %v2799, 1
        %v2801 = vmax.f32 %v2799, %v2800
        %v2802 = vmax.f32 %v2252, %v2258
        %v2803 = vmax.f32 %v2802, %v2264
        %v2804 = vmax.f32 %v2803, %v2270
        %v2805 = vmax.f32 %v2804, %v2276
        %v2806 = vmax.f32 %v2805, %v2282
        %v2807 = vmax.f32 %v2806, %v2288
        %v2808 = vmax.f32 %v2807, %v2294
        %v2809 = vmax.f32 %v2808, %v2300
        %v2810 = vmax.f32 %v2809, %v2306
        %v2811 = vmax.f32 %v2810, %v2312
        %v2812 = vmax.f32 %v2811, %v2318
        %v2813 = vmax.f32 %v2812, %v2324
        %v2814 = vmax.f32 %v2813, %v2330
        %v2815 = vmax.f32 %v2814, %v2336
        %v2816 = vmax.f32 %v2815, %v2342
        %v2817 = vrot.slane %v2816, 4
        %v2818 = vmax.f32 %v2816, %v2817
        %v2819 = vrot.slane %v2818, 2
        %v2820 = vmax.f32 %v2818, %v2819
        %v2821 = vrot.slane %v2820, 1
        %v2822 = vmax.f32 %v2820, %v2821
        %v2823 = vmax.f32 %v2507, %v2513
        %v2824 = vmax.f32 %v2823, %v2519
        %v2825 = vmax.f32 %v2824, %v2525
        %v2826 = vmax.f32 %v2825, %v2531
        %v2827 = vmax.f32 %v2826, %v2537
        %v2828 = vmax.f32 %v2827, %v2543
        %v2829 = vmax.f32 %v2828, %v2549
        %v2830 = vmax.f32 %v2829, %v2555
        %v2831 = vmax.f32 %v2830, %v2561
        %v2832 = vmax.f32 %v2831, %v2567
        %v2833 = vmax.f32 %v2832, %v2573
        %v2834 = vmax.f32 %v2833, %v2579
        %v2835 = vmax.f32 %v2834, %v2585
        %v2836 = vmax.f32 %v2835, %v2591
        %v2837 = vmax.f32 %v2836, %v2597
        %v2838 = vrot.slane %v2837, 4
        %v2839 = vmax.f32 %v2837, %v2838
        %v2840 = vrot.slane %v2839, 2
        %v2841 = vmax.f32 %v2839, %v2840
        %v2842 = vrot.slane %v2841, 1
        %v2843 = vmax.f32 %v2841, %v2842
        %v2844 = vmax.f32 %v2509, %v2515
        %v2845 = vmax.f32 %v2844, %v2521
        %v2846 = vmax.f32 %v2845, %v2527
        %v2847 = vmax.f32 %v2846, %v2533
        %v2848 = vmax.f32 %v2847, %v2539
        %v2849 = vmax.f32 %v2848, %v2545
        %v2850 = vmax.f32 %v2849, %v2551
        %v2851 = vmax.f32 %v2850, %v2557
        %v2852 = vmax.f32 %v2851, %v2563
        %v2853 = vmax.f32 %v2852, %v2569
        %v2854 = vmax.f32 %v2853, %v2575
        %v2855 = vmax.f32 %v2854, %v2581
        %v2856 = vmax.f32 %v2855, %v2587
        %v2857 = vmax.f32 %v2856, %v2593
        %v2858 = vmax.f32 %v2857, %v2599
        %v2859 = vrot.slane %v2858, 4
        %v2860 = vmax.f32 %v2858, %v2859
        %v2861 = vrot.slane %v2860, 2
        %v2862 = vmax.f32 %v2860, %v2861
        %v2863 = vrot.slane %v2862, 1
        %v2864 = vmax.f32 %v2862, %v2863
        %v2865 = vmax.f32 %v1832, %v1838
        %v2866 = vmax.f32 %v2865, %v1844
        %v2867 = vmax.f32 %v2866, %v1850
        %v2868 = vmax.f32 %v2867, %v1856
        %v2869 = vmax.f32 %v2868, %v1862
        %v2870 = vmax.f32 %v2869, %v1868
        %v2871 = vmax.f32 %v2870, %v1874
        %v2872 = vmax.f32 %v2871, %v1880
        %v2873 = vmax.f32 %v2872, %v1886
        %v2874 = vmax.f32 %v2873, %v1892
        %v2875 = vmax.f32 %v2874, %v1898
        %v2876 = vmax.f32 %v2875, %v1904
        %v2877 = vmax.f32 %v2876, %v1910
        %v2878 = vmax.f32 %v2877, %v1916
        %v2879 = vmax.f32 %v2878, %v1922
        %v2880 = vrot.slane %v2879, 4
        %v2881 = vmax.f32 %v2879, %v2880
        %v2882 = vrot.slane %v2881, 2
        %v2883 = vmax.f32 %v2881, %v2882
        %v2884 = vrot.slane %v2883, 1
        %v2885 = vmax.f32 %v2883, %v2884
        %v2886 = vmax.f32 %v1834, %v1840
        %v2887 = vmax.f32 %v2886, %v1846
        %v2888 = vmax.f32 %v2887, %v1852
        %v2889 = vmax.f32 %v2888, %v1858
        %v2890 = vmax.f32 %v2889, %v1864
        %v2891 = vmax.f32 %v2890, %v1870
        %v2892 = vmax.f32 %v2891, %v1876
        %v2893 = vmax.f32 %v2892, %v1882
        %v2894 = vmax.f32 %v2893, %v1888
        %v2895 = vmax.f32 %v2894, %v1894
        %v2896 = vmax.f32 %v2895, %v1900
        %v2897 = vmax.f32 %v2896, %v1906
        %v2898 = vmax.f32 %v2897, %v1912
        %v2899 = vmax.f32 %v2898, %v1918
        %v2900 = vmax.f32 %v2899, %v1924
        %v2901 = vrot.slane %v2900, 4
        %v2902 = vmax.f32 %v2900, %v2901
        %v2903 = vrot.slane %v2902, 2
        %v2904 = vmax.f32 %v2902, %v2903
        %v2905 = vrot.slane %v2904, 1
        %v2906 = vmax.f32 %v2904, %v2905
        %v2907 = vmax.f32 %v2089, %v2095
        %v2908 = vmax.f32 %v2907, %v2101
        %v2909 = vmax.f32 %v2908, %v2107
        %v2910 = vmax.f32 %v2909, %v2113
        %v2911 = vmax.f32 %v2910, %v2119
        %v2912 = vmax.f32 %v2911, %v2125
        %v2913 = vmax.f32 %v2912, %v2131
        %v2914 = vmax.f32 %v2913, %v2137
        %v2915 = vmax.f32 %v2914, %v2143
        %v2916 = vmax.f32 %v2915, %v2149
        %v2917 = vmax.f32 %v2916, %v2155
        %v2918 = vmax.f32 %v2917, %v2161
        %v2919 = vmax.f32 %v2918, %v2167
        %v2920 = vmax.f32 %v2919, %v2173
        %v2921 = vmax.f32 %v2920, %v2179
        %v2922 = vrot.slane %v2921, 4
        %v2923 = vmax.f32 %v2921, %v2922
        %v2924 = vrot.slane %v2923, 2
        %v2925 = vmax.f32 %v2923, %v2924
        %v2926 = vrot.slane %v2925, 1
        %v2927 = vmax.f32 %v2925, %v2926
        %v2928 = vmax.f32 %v2091, %v2097
        %v2929 = vmax.f32 %v2928, %v2103
        %v2930 = vmax.f32 %v2929, %v2109
        %v2931 = vmax.f32 %v2930, %v2115
        %v2932 = vmax.f32 %v2931, %v2121
        %v2933 = vmax.f32 %v2932, %v2127
        %v2934 = vmax.f32 %v2933, %v2133
        %v2935 = vmax.f32 %v2934, %v2139
        %v2936 = vmax.f32 %v2935, %v2145
        %v2937 = vmax.f32 %v2936, %v2151
        %v2938 = vmax.f32 %v2937, %v2157
        %v2939 = vmax.f32 %v2938, %v2163
        %v2940 = vmax.f32 %v2939, %v2169
        %v2941 = vmax.f32 %v2940, %v2175
        %v2942 = vmax.f32 %v2941, %v2181
        %v2943 = vrot.slane %v2942, 4
        %v2944 = vmax.f32 %v2942, %v2943
        %v2945 = vrot.slane %v2944, 2
        %v2946 = vmax.f32 %v2944, %v2945
        %v2947 = vrot.slane %v2946, 1
        %v2948 = vmax.f32 %v2946, %v2947
        %v2949 = vmax.f32 %v2346, %v2352
        %v2950 = vmax.f32 %v2949, %v2358
        %v2951 = vmax.f32 %v2950, %v2364
        %v2952 = vmax.f32 %v2951, %v2370
        %v2953 = vmax.f32 %v2952, %v2376
        %v2954 = vmax.f32 %v2953, %v2382
        %v2955 = vmax.f32 %v2954, %v2388
        %v2956 = vmax.f32 %v2955, %v2394
        %v2957 = vmax.f32 %v2956, %v2400
        %v2958 = vmax.f32 %v2957, %v2406
        %v2959 = vmax.f32 %v2958, %v2412
        %v2960 = vmax.f32 %v2959, %v2418
        %v2961 = vmax.f32 %v2960, %v2424
        %v2962 = vmax.f32 %v2961, %v2430
        %v2963 = vmax.f32 %v2962, %v2436
        %v2964 = vrot.slane %v2963, 4
        %v2965 = vmax.f32 %v2963, %v2964
        %v2966 = vrot.slane %v2965, 2
        %v2967 = vmax.f32 %v2965, %v2966
        %v2968 = vrot.slane %v2967, 1
        %v2969 = vmax.f32 %v2967, %v2968
        %v2970 = vmax.f32 %v2348, %v2354
        %v2971 = vmax.f32 %v2970, %v2360
        %v2972 = vmax.f32 %v2971, %v2366
        %v2973 = vmax.f32 %v2972, %v2372
        %v2974 = vmax.f32 %v2973, %v2378
        %v2975 = vmax.f32 %v2974, %v2384
        %v2976 = vmax.f32 %v2975, %v2390
        %v2977 = vmax.f32 %v2976, %v2396
        %v2978 = vmax.f32 %v2977, %v2402
        %v2979 = vmax.f32 %v2978, %v2408
        %v2980 = vmax.f32 %v2979, %v2414
        %v2981 = vmax.f32 %v2980, %v2420
        %v2982 = vmax.f32 %v2981, %v2426
        %v2983 = vmax.f32 %v2982, %v2432
        %v2984 = vmax.f32 %v2983, %v2438
        %v2985 = vrot.slane %v2984, 4
        %v2986 = vmax.f32 %v2984, %v2985
        %v2987 = vrot.slane %v2986, 2
        %v2988 = vmax.f32 %v2986, %v2987
        %v2989 = vrot.slane %v2988, 1
        %v2990 = vmax.f32 %v2988, %v2989
        %v2991 = vmax.f32 %v2603, %v2609
        %v2992 = vmax.f32 %v2991, %v2615
        %v2993 = vmax.f32 %v2992, %v2621
        %v2994 = vmax.f32 %v2993, %v2627
        %v2995 = vmax.f32 %v2994, %v2633
        %v2996 = vmax.f32 %v2995, %v2639
        %v2997 = vmax.f32 %v2996, %v2645
        %v2998 = vmax.f32 %v2997, %v2651
        %v2999 = vmax.f32 %v2998, %v2657
        %v3000 = vmax.f32 %v2999, %v2663
        %v3001 = vmax.f32 %v3000, %v2669
        %v3002 = vmax.f32 %v3001, %v2675
        %v3003 = vmax.f32 %v3002, %v2681
        %v3004 = vmax.f32 %v3003, %v2687
        %v3005 = vmax.f32 %v3004, %v2693
        %v3006 = vrot.slane %v3005, 4
        %v3007 = vmax.f32 %v3005, %v3006
        %v3008 = vrot.slane %v3007, 2
        %v3009 = vmax.f32 %v3007, %v3008
        %v3010 = vrot.slane %v3009, 1
        %v3011 = vmax.f32 %v3009, %v3010
        %v3012 = vmax.f32 %v2605, %v2611
        %v3013 = vmax.f32 %v3012, %v2617
        %v3014 = vmax.f32 %v3013, %v2623
        %v3015 = vmax.f32 %v3014, %v2629
        %v3016 = vmax.f32 %v3015, %v2635
        %v3017 = vmax.f32 %v3016, %v2641
        %v3018 = vmax.f32 %v3017, %v2647
        %v3019 = vmax.f32 %v3018, %v2653
        %v3020 = vmax.f32 %v3019, %v2659
        %v3021 = vmax.f32 %v3020, %v2665
        %v3022 = vmax.f32 %v3021, %v2671
        %v3023 = vmax.f32 %v3022, %v2677
        %v3024 = vmax.f32 %v3023, %v2683
        %v3025 = vmax.f32 %v3024, %v2689
        %v3026 = vmax.f32 %v3025, %v2695
        %v3027 = vrot.slane %v3026, 4
        %v3028 = vmax.f32 %v3026, %v3027
        %v3029 = vrot.slane %v3028, 2
        %v3030 = vmax.f32 %v3028, %v3029
        %v3031 = vrot.slane %v3030, 1
        %v3032 = vmax.f32 %v3030, %v3031
        %vm3033 = vcmask 1040384
        %v3034 = vsel %vm3033, %v2717, %v2885
        %v3035 = vsel %vm3033, %v2738, %v2906
        %v3036 = vsel %vm3033, %v2759, %v2927
        %v3037 = vsel %vm3033, %v2780, %v2948
        %v3038 = vsel %vm3033, %v2801, %v2969
        %v3039 = vsel %vm3033, %v2822, %v2990
        %v3040 = vsel %vm3033, %v2843, %v3011
        %v3041 = vsel %vm3033, %v2864, %v3032
        %v3042 = vld [vmem:[#allocation2] sm:$0xff]
        %v3043 = vld [vmem:[#allocation2 + $0x8] sm:$0xff]
        %v3052 = vcombine.low %v3034, %v3035
        %v3053 = vcombine.low %v3036, %v3037
        %v3055 = vunpack.c.l.s4 1983009808
        %v3056 = vunpack.c.0.s8 %v3055
        %v3057 = vlaneseq
        %v3058 = vshrl.u32 %v3057, 7
        %v3059 = vsub.s32 %v3056, %v3058
        %v3060 = vrot.slane %v3052, %v3059
        %v3062 = vunpack.c.l.s4 1983009808
        %v3063 = vunpack.c.0.s8 %v3062
        %v3064 = vlaneseq
        %v3065 = vshrl.u32 %v3064, 7
        %v3066 = vsub.s32 %v3063, %v3065
        %v3067 = vrot.slane %v3053, %v3066
        %v3068 = vcombine.low %v3060, %v3067
        %v3069 = vcombine.low %v3038, %v3039
        %v3070 = vcombine.low %v3040, %v3041
        %v3072 = vunpack.c.l.s4 1983009808
        %v3073 = vunpack.c.0.s8 %v3072
        %v3074 = vlaneseq
        %v3075 = vshrl.u32 %v3074, 7
        %v3076 = vsub.s32 %v3073, %v3075
        %v3077 = vrot.slane %v3069, %v3076
        %v3079 = vunpack.c.l.s4 1983009808
        %v3080 = vunpack.c.0.s8 %v3079
        %v3081 = vlaneseq
        %v3082 = vshrl.u32 %v3081, 7
        %v3083 = vsub.s32 %v3080, %v3082
        %v3084 = vrot.slane %v3070, %v3083
        %v3085 = vcombine.low %v3077, %v3084
        %v3088 = vmax.f32 %v3042, %v3068
        %v3089 = vmax.f32 %v3043, %v3085
        %3090 = vst [vmem:[#allocation2] sm:$0xff] %v3088
        %3091 = vst [vmem:[#allocation2 + $0x8] sm:$0xff] %v3089
        %p3092 = scmp.eq.s32.totalorder %s37, 1
        // Predicated region
        $region163: #{tpu_custom_call.1} parent=105 // pred_check
          %p3093 = pneg %p3092
        $region164: #{tpu_custom_call.1} parent=105 // pred_check_branch
          %3095 = sbr.rel (%p3093) target = $region166
        $region165: #{tpu_custom_call.1} parent=105 // pred_region
          %v3096 = vld [vmem:[#allocation2] sm:$0xff]
          %v3097 = vld [vmem:[#allocation2 + $0x8] sm:$0xff]
          %v3098 = vld [vmem:[#allocation13] sm:$0xff]
          %v3100 = vlaneseq
          %v3101 = vshrl.u32 %v3100, 7
          %v3102 = vsub.s32 0, %v3101
          %v3103 = vrot.slane %v3098, %v3102
          %v3104 = vlaneseq
          %v3105 = vshrl.u32 %v3104, 7
          %v3106 = vsub.s32 1, %v3105
          %v3107 = vrot.slane %v3098, %v3106
          %v3108 = vlaneseq
          %v3109 = vshrl.u32 %v3108, 7
          %v3110 = vsub.s32 2, %v3109
          %v3111 = vrot.slane %v3098, %v3110
          %v3112 = vlaneseq
          %v3113 = vshrl.u32 %v3112, 7
          %v3114 = vsub.s32 3, %v3113
          %v3115 = vrot.slane %v3098, %v3114
          %v3116 = vlaneseq
          %v3117 = vshrl.u32 %v3116, 7
          %v3118 = vsub.s32 4, %v3117
          %v3119 = vrot.slane %v3098, %v3118
          %v3120 = vlaneseq
          %v3121 = vshrl.u32 %v3120, 7
          %v3122 = vsub.s32 5, %v3121
          %v3123 = vrot.slane %v3098, %v3122
          %v3124 = vlaneseq
          %v3125 = vshrl.u32 %v3124, 7
          %v3126 = vsub.s32 6, %v3125
          %v3127 = vrot.slane %v3098, %v3126
          %v3128 = vlaneseq
          %v3129 = vshrl.u32 %v3128, 7
          %v3130 = vsub.s32 7, %v3129
          %v3131 = vrot.slane %v3098, %v3130
          %v3132 = vcombine.low %v3103, %v3107
          %v3133 = vcombine.low %v3111, %v3115
          %v3135 = vunpack.c.l.s4 1983009808
          %v3136 = vunpack.c.0.s8 %v3135
          %v3137 = vlaneseq
          %v3138 = vshrl.u32 %v3137, 7
          %v3139 = vsub.s32 %v3136, %v3138
          %v3140 = vrot.slane %v3132, %v3139
          %v3142 = vunpack.c.l.s4 1983009808
          %v3143 = vunpack.c.0.s8 %v3142
          %v3144 = vlaneseq
          %v3145 = vshrl.u32 %v3144, 7
          %v3146 = vsub.s32 %v3143, %v3145
          %v3147 = vrot.slane %v3133, %v3146
          %v3148 = vcombine.low %v3140, %v3147
          %v3149 = vcombine.low %v3119, %v3123
          %v3150 = vcombine.low %v3127, %v3131
          %v3152 = vunpack.c.l.s4 1983009808
          %v3153 = vunpack.c.0.s8 %v3152
          %v3154 = vlaneseq
          %v3155 = vshrl.u32 %v3154, 7
          %v3156 = vsub.s32 %v3153, %v3155
          %v3157 = vrot.slane %v3149, %v3156
          %v3159 = vunpack.c.l.s4 1983009808
          %v3160 = vunpack.c.0.s8 %v3159
          %v3161 = vlaneseq
          %v3162 = vshrl.u32 %v3161, 7
          %v3163 = vsub.s32 %v3160, %v3162
          %v3164 = vrot.slane %v3150, %v3163
          %v3165 = vcombine.low %v3157, %v3164
          %v3168 = vadd.f32 %v3096, %v3148
          %v3169 = vadd.f32 %v3097, %v3165
          %v3170 = vmax.f32 %v3168, 0.0
          %v3171 = vmax.f32 %v3169, 0.0
          %v3172 = vld [vmem:[#allocation15] sm:$0xff]
          %v3173 = vld [vmem:[#allocation15 + $0x8] sm:$0xff]
          %v3174 = vld [vmem:[#allocation15 + $0x10] sm:$0xff]
          %v3175 = vld [vmem:[#allocation15 + $0x18] sm:$0xff]
          %v3176 = vld [vmem:[#allocation15 + $0x20] sm:$0xff]
          %v3177 = vld [vmem:[#allocation15 + $0x28] sm:$0xff]
          %v3178 = vld [vmem:[#allocation15 + $0x30] sm:$0xff]
          %v3179 = vld [vmem:[#allocation15 + $0x38] sm:$0xff]
          %v3180 = vld [vmem:[#allocation15 + $0x40] sm:$0xff]
          %v3181 = vld [vmem:[#allocation15 + $0x48] sm:$0xff]
          %v3182 = vld [vmem:[#allocation15 + $0x50] sm:$0xff]
          %v3183 = vld [vmem:[#allocation15 + $0x58] sm:$0xff]
          %v3184 = vld [vmem:[#allocation15 + $0x60] sm:$0xff]
          %v3185 = vld [vmem:[#allocation15 + $0x68] sm:$0xff]
          %v3186 = vld [vmem:[#allocation15 + $0x70] sm:$0xff]
          %v3187 = vld [vmem:[#allocation15 + $0x78] sm:$0xff]
          %v3188 = vld [vmem:[#allocation15 + $0x80] sm:$0xff]
          %v3189 = vld [vmem:[#allocation15 + $0x88] sm:$0xff]
          %v3190 = vld [vmem:[#allocation15 + $0x90] sm:$0xff]
          %v3191 = vld [vmem:[#allocation15 + $0x98] sm:$0xff]
          %v3192 = vld [vmem:[#allocation15 + $0xa0] sm:$0xff]
          %v3193 = vld [vmem:[#allocation15 + $0xa8] sm:$0xff]
          %v3194 = vld [vmem:[#allocation15 + $0xb0] sm:$0xff]
          %v3195 = vld [vmem:[#allocation15 + $0xb8] sm:$0xff]
          %v3196 = vld [vmem:[#allocation15 + $0xc0] sm:$0xff]
          %v3197 = vld [vmem:[#allocation15 + $0xc8] sm:$0xff]
          %v3198 = vld [vmem:[#allocation15 + $0xd0] sm:$0xff]
          %v3199 = vld [vmem:[#allocation15 + $0xd8] sm:$0xff]
          %v3200 = vld [vmem:[#allocation15 + $0xe0] sm:$0xff]
          %v3201 = vld [vmem:[#allocation15 + $0xe8] sm:$0xff]
          %v3202 = vld [vmem:[#allocation15 + $0xf0] sm:$0xff]
          %v3203 = vld [vmem:[#allocation15 + $0xf8] sm:$0xff]
          %v3204 = vld [vmem:[#allocation15 + $0x100] sm:$0xff]
          %v3205 = vld [vmem:[#allocation15 + $0x108] sm:$0xff]
          %v3206 = vld [vmem:[#allocation15 + $0x110] sm:$0xff]
          %v3207 = vld [vmem:[#allocation15 + $0x118] sm:$0xff]
          %v3208 = vld [vmem:[#allocation15 + $0x120] sm:$0xff]
          %v3209 = vld [vmem:[#allocation15 + $0x128] sm:$0xff]
          %v3210 = vld [vmem:[#allocation15 + $0x130] sm:$0xff]
          %v3211 = vld [vmem:[#allocation15 + $0x138] sm:$0xff]
          %v3212 = vld [vmem:[#allocation15 + $0x140] sm:$0xff]
          %v3213 = vld [vmem:[#allocation15 + $0x148] sm:$0xff]
          %v3214 = vld [vmem:[#allocation15 + $0x150] sm:$0xff]
          %v3215 = vld [vmem:[#allocation15 + $0x158] sm:$0xff]
          %v3216 = vld [vmem:[#allocation15 + $0x160] sm:$0xff]
          %v3217 = vld [vmem:[#allocation15 + $0x168] sm:$0xff]
          %v3218 = vld [vmem:[#allocation15 + $0x170] sm:$0xff]
          %v3219 = vld [vmem:[#allocation15 + $0x178] sm:$0xff]
          %v3220 = vld [vmem:[#allocation15 + $0x180] sm:$0xff]
          %v3221 = vld [vmem:[#allocation15 + $0x188] sm:$0xff]
          %v3222 = vld [vmem:[#allocation15 + $0x190] sm:$0xff]
          %v3223 = vld [vmem:[#allocation15 + $0x198] sm:$0xff]
          %v3224 = vld [vmem:[#allocation15 + $0x1a0] sm:$0xff]
          %v3225 = vld [vmem:[#allocation15 + $0x1a8] sm:$0xff]
          %v3226 = vld [vmem:[#allocation15 + $0x1b0] sm:$0xff]
          %v3227 = vld [vmem:[#allocation15 + $0x1b8] sm:$0xff]
          %v3228 = vld [vmem:[#allocation15 + $0x1c0] sm:$0xff]
          %v3229 = vld [vmem:[#allocation15 + $0x1c8] sm:$0xff]
          %v3230 = vld [vmem:[#allocation15 + $0x1d0] sm:$0xff]
          %v3231 = vld [vmem:[#allocation15 + $0x1d8] sm:$0xff]
          %v3232 = vld [vmem:[#allocation15 + $0x1e0] sm:$0xff]
          %v3233 = vld [vmem:[#allocation15 + $0x1e8] sm:$0xff]
          %v3234 = vld [vmem:[#allocation15 + $0x1f0] sm:$0xff]
          %v3235 = vld [vmem:[#allocation15 + $0x1f8] sm:$0xff]
          %v3236 = vld [vmem:[#allocation15 + $0x200] sm:$0xff]
          %v3237 = vld [vmem:[#allocation15 + $0x208] sm:$0xff]
          %v3238 = vld [vmem:[#allocation15 + $0x210] sm:$0xff]
          %v3239 = vld [vmem:[#allocation15 + $0x218] sm:$0xff]
          %v3240 = vld [vmem:[#allocation15 + $0x220] sm:$0xff]
          %v3241 = vld [vmem:[#allocation15 + $0x228] sm:$0xff]
          %v3242 = vld [vmem:[#allocation15 + $0x230] sm:$0xff]
          %v3243 = vld [vmem:[#allocation15 + $0x238] sm:$0xff]
          %v3244 = vld [vmem:[#allocation15 + $0x240] sm:$0xff]
          %v3245 = vld [vmem:[#allocation15 + $0x248] sm:$0xff]
          %v3246 = vld [vmem:[#allocation15 + $0x250] sm:$0xff]
          %v3247 = vld [vmem:[#allocation15 + $0x258] sm:$0xff]
          %v3248 = vld [vmem:[#allocation15 + $0x260] sm:$0xff]
          %v3249 = vld [vmem:[#allocation15 + $0x268] sm:$0xff]
          %v3250 = vld [vmem:[#allocation15 + $0x270] sm:$0xff]
          %v3251 = vld [vmem:[#allocation15 + $0x278] sm:$0xff]
          %v3252 = vld [vmem:[#allocation15 + $0x280] sm:$0xff]
          %v3253 = vld [vmem:[#allocation15 + $0x288] sm:$0xff]
          %v3254 = vld [vmem:[#allocation15 + $0x290] sm:$0xff]
          %v3255 = vld [vmem:[#allocation15 + $0x298] sm:$0xff]
          %v3256 = vld [vmem:[#allocation15 + $0x2a0] sm:$0xff]
          %v3257 = vld [vmem:[#allocation15 + $0x2a8] sm:$0xff]
          %v3258 = vld [vmem:[#allocation15 + $0x2b0] sm:$0xff]
          %v3259 = vld [vmem:[#allocation15 + $0x2b8] sm:$0xff]
          %v3260 = vld [vmem:[#allocation15 + $0x2c0] sm:$0xff]
          %v3261 = vld [vmem:[#allocation15 + $0x2c8] sm:$0xff]
          %v3262 = vld [vmem:[#allocation15 + $0x2d0] sm:$0xff]
          %v3263 = vld [vmem:[#allocation15 + $0x2d8] sm:$0xff]
          %v3264 = vld [vmem:[#allocation15 + $0x2e0] sm:$0xff]
          %v3265 = vld [vmem:[#allocation15 + $0x2e8] sm:$0xff]
          %v3266 = vld [vmem:[#allocation15 + $0x2f0] sm:$0xff]
          %v3267 = vld [vmem:[#allocation15 + $0x2f8] sm:$0xff]
          %v3268 = vld [vmem:[#allocation15 + $0x300] sm:$0xff]
          %v3269 = vld [vmem:[#allocation15 + $0x308] sm:$0xff]
          %v3270 = vld [vmem:[#allocation15 + $0x310] sm:$0xff]
          %v3271 = vld [vmem:[#allocation15 + $0x318] sm:$0xff]
          %v3272 = vld [vmem:[#allocation15 + $0x320] sm:$0xff]
          %v3273 = vld [vmem:[#allocation15 + $0x328] sm:$0xff]
          %v3274 = vld [vmem:[#allocation15 + $0x330] sm:$0xff]
          %v3275 = vld [vmem:[#allocation15 + $0x338] sm:$0xff]
          %v3276 = vld [vmem:[#allocation15 + $0x340] sm:$0xff]
          %v3277 = vld [vmem:[#allocation15 + $0x348] sm:$0xff]
          %v3278 = vld [vmem:[#allocation15 + $0x350] sm:$0xff]
          %v3279 = vld [vmem:[#allocation15 + $0x358] sm:$0xff]
          %v3280 = vld [vmem:[#allocation15 + $0x360] sm:$0xff]
          %v3281 = vld [vmem:[#allocation15 + $0x368] sm:$0xff]
          %v3282 = vld [vmem:[#allocation15 + $0x370] sm:$0xff]
          %v3283 = vld [vmem:[#allocation15 + $0x378] sm:$0xff]
          %v3284 = vld [vmem:[#allocation15 + $0x380] sm:$0xff]
          %v3285 = vld [vmem:[#allocation15 + $0x388] sm:$0xff]
          %v3286 = vld [vmem:[#allocation15 + $0x390] sm:$0xff]
          %v3287 = vld [vmem:[#allocation15 + $0x398] sm:$0xff]
          %v3288 = vld [vmem:[#allocation15 + $0x3a0] sm:$0xff]
          %v3289 = vld [vmem:[#allocation15 + $0x3a8] sm:$0xff]
          %v3290 = vld [vmem:[#allocation15 + $0x3b0] sm:$0xff]
          %v3291 = vld [vmem:[#allocation15 + $0x3b8] sm:$0xff]
          %v3292 = vld [vmem:[#allocation15 + $0x3c0] sm:$0xff]
          %v3293 = vld [vmem:[#allocation15 + $0x3c8] sm:$0xff]
          %v3294 = vld [vmem:[#allocation15 + $0x3d0] sm:$0xff]
          %v3295 = vld [vmem:[#allocation15 + $0x3d8] sm:$0xff]
          %v3296 = vld [vmem:[#allocation15 + $0x3e0] sm:$0xff]
          %v3297 = vld [vmem:[#allocation15 + $0x3e8] sm:$0xff]
          %v3298 = vld [vmem:[#allocation15 + $0x3f0] sm:$0xff]
          %v3299 = vld [vmem:[#allocation15 + $0x3f8] sm:$0xff]
          %v3300 = vld [vmem:[#allocation15 + $0x400] sm:$0xff]
          %v3301 = vld [vmem:[#allocation15 + $0x408] sm:$0xff]
          %v3302 = vld [vmem:[#allocation15 + $0x410] sm:$0xff]
          %v3303 = vld [vmem:[#allocation15 + $0x418] sm:$0xff]
          %v3304 = vld [vmem:[#allocation15 + $0x420] sm:$0xff]
          %v3305 = vld [vmem:[#allocation15 + $0x428] sm:$0xff]
          %v3306 = vld [vmem:[#allocation15 + $0x430] sm:$0xff]
          %v3307 = vld [vmem:[#allocation15 + $0x438] sm:$0xff]
          %v3308 = vld [vmem:[#allocation15 + $0x440] sm:$0xff]
          %v3309 = vld [vmem:[#allocation15 + $0x448] sm:$0xff]
          %v3310 = vld [vmem:[#allocation15 + $0x450] sm:$0xff]
          %v3311 = vld [vmem:[#allocation15 + $0x458] sm:$0xff]
          %v3312 = vld [vmem:[#allocation15 + $0x460] sm:$0xff]
          %v3313 = vld [vmem:[#allocation15 + $0x468] sm:$0xff]
          %v3314 = vld [vmem:[#allocation15 + $0x470] sm:$0xff]
          %v3315 = vld [vmem:[#allocation15 + $0x478] sm:$0xff]
          %v3316 = vld [vmem:[#allocation15 + $0x480] sm:$0xff]
          %v3317 = vld [vmem:[#allocation15 + $0x488] sm:$0xff]
          %v3318 = vld [vmem:[#allocation15 + $0x490] sm:$0xff]
          %v3319 = vld [vmem:[#allocation15 + $0x498] sm:$0xff]
          %v3320 = vld [vmem:[#allocation15 + $0x4a0] sm:$0xff]
          %v3321 = vld [vmem:[#allocation15 + $0x4a8] sm:$0xff]
          %v3322 = vld [vmem:[#allocation15 + $0x4b0] sm:$0xff]
          %v3323 = vld [vmem:[#allocation15 + $0x4b8] sm:$0xff]
          %v3324 = vld [vmem:[#allocation15 + $0x4c0] sm:$0xff]
          %v3325 = vld [vmem:[#allocation15 + $0x4c8] sm:$0xff]
          %v3326 = vld [vmem:[#allocation15 + $0x4d0] sm:$0xff]
          %v3327 = vld [vmem:[#allocation15 + $0x4d8] sm:$0xff]
          %v3328 = vld [vmem:[#allocation15 + $0x4e0] sm:$0xff]
          %v3329 = vld [vmem:[#allocation15 + $0x4e8] sm:$0xff]
          %v3330 = vld [vmem:[#allocation15 + $0x4f0] sm:$0xff]
          %v3331 = vld [vmem:[#allocation15 + $0x4f8] sm:$0xff]
          %v3332 = vld [vmem:[#allocation15 + $0x500] sm:$0xff]
          %v3333 = vld [vmem:[#allocation15 + $0x508] sm:$0xff]
          %v3334 = vld [vmem:[#allocation15 + $0x510] sm:$0xff]
          %v3335 = vld [vmem:[#allocation15 + $0x518] sm:$0xff]
          %v3336 = vld [vmem:[#allocation15 + $0x520] sm:$0xff]
          %v3337 = vld [vmem:[#allocation15 + $0x528] sm:$0xff]
          %v3338 = vld [vmem:[#allocation15 + $0x530] sm:$0xff]
          %v3339 = vld [vmem:[#allocation15 + $0x538] sm:$0xff]
          %v3340 = vld [vmem:[#allocation15 + $0x540] sm:$0xff]
          %v3341 = vld [vmem:[#allocation15 + $0x548] sm:$0xff]
          %v3342 = vld [vmem:[#allocation15 + $0x550] sm:$0xff]
          %v3343 = vld [vmem:[#allocation15 + $0x558] sm:$0xff]
          %v3344 = vld [vmem:[#allocation15 + $0x560] sm:$0xff]
          %v3345 = vld [vmem:[#allocation15 + $0x568] sm:$0xff]
          %v3346 = vld [vmem:[#allocation15 + $0x570] sm:$0xff]
          %v3347 = vld [vmem:[#allocation15 + $0x578] sm:$0xff]
          %v3348 = vld [vmem:[#allocation15 + $0x580] sm:$0xff]
          %v3349 = vld [vmem:[#allocation15 + $0x588] sm:$0xff]
          %v3350 = vld [vmem:[#allocation15 + $0x590] sm:$0xff]
          %v3351 = vld [vmem:[#allocation15 + $0x598] sm:$0xff]
          %v3352 = vld [vmem:[#allocation15 + $0x5a0] sm:$0xff]
          %v3353 = vld [vmem:[#allocation15 + $0x5a8] sm:$0xff]
          %v3354 = vld [vmem:[#allocation15 + $0x5b0] sm:$0xff]
          %v3355 = vld [vmem:[#allocation15 + $0x5b8] sm:$0xff]
          %v3356 = vld [vmem:[#allocation15 + $0x5c0] sm:$0xff]
          %v3357 = vld [vmem:[#allocation15 + $0x5c8] sm:$0xff]
          %v3358 = vld [vmem:[#allocation15 + $0x5d0] sm:$0xff]
          %v3359 = vld [vmem:[#allocation15 + $0x5d8] sm:$0xff]
          %v3360 = vld [vmem:[#allocation15 + $0x5e0] sm:$0xff]
          %v3361 = vld [vmem:[#allocation15 + $0x5e8] sm:$0xff]
          %v3362 = vld [vmem:[#allocation15 + $0x5f0] sm:$0xff]
          %v3363 = vld [vmem:[#allocation15 + $0x5f8] sm:$0xff]
          %v3364 = vld [vmem:[#allocation15 + $0x600] sm:$0xff]
          %v3365 = vld [vmem:[#allocation15 + $0x608] sm:$0xff]
          %v3366 = vld [vmem:[#allocation15 + $0x610] sm:$0xff]
          %v3367 = vld [vmem:[#allocation15 + $0x618] sm:$0xff]
          %v3368 = vld [vmem:[#allocation15 + $0x620] sm:$0xff]
          %v3369 = vld [vmem:[#allocation15 + $0x628] sm:$0xff]
          %v3370 = vld [vmem:[#allocation15 + $0x630] sm:$0xff]
          %v3371 = vld [vmem:[#allocation15 + $0x638] sm:$0xff]
          %v3372 = vld [vmem:[#allocation15 + $0x640] sm:$0xff]
          %v3373 = vld [vmem:[#allocation15 + $0x648] sm:$0xff]
          %v3374 = vld [vmem:[#allocation15 + $0x650] sm:$0xff]
          %v3375 = vld [vmem:[#allocation15 + $0x658] sm:$0xff]
          %v3376 = vld [vmem:[#allocation15 + $0x660] sm:$0xff]
          %v3377 = vld [vmem:[#allocation15 + $0x668] sm:$0xff]
          %v3378 = vld [vmem:[#allocation15 + $0x670] sm:$0xff]
          %v3379 = vld [vmem:[#allocation15 + $0x678] sm:$0xff]
          %v3380 = vld [vmem:[#allocation15 + $0x680] sm:$0xff]
          %v3381 = vld [vmem:[#allocation15 + $0x688] sm:$0xff]
          %v3382 = vld [vmem:[#allocation15 + $0x690] sm:$0xff]
          %v3383 = vld [vmem:[#allocation15 + $0x698] sm:$0xff]
          %v3384 = vld [vmem:[#allocation15 + $0x6a0] sm:$0xff]
          %v3385 = vld [vmem:[#allocation15 + $0x6a8] sm:$0xff]
          %v3386 = vld [vmem:[#allocation15 + $0x6b0] sm:$0xff]
          %v3387 = vld [vmem:[#allocation15 + $0x6b8] sm:$0xff]
          %v3388 = vld [vmem:[#allocation15 + $0x6c0] sm:$0xff]
          %v3389 = vld [vmem:[#allocation15 + $0x6c8] sm:$0xff]
          %v3390 = vld [vmem:[#allocation15 + $0x6d0] sm:$0xff]
          %v3391 = vld [vmem:[#allocation15 + $0x6d8] sm:$0xff]
          %v3392 = vld [vmem:[#allocation15 + $0x6e0] sm:$0xff]
          %v3393 = vld [vmem:[#allocation15 + $0x6e8] sm:$0xff]
          %v3394 = vld [vmem:[#allocation15 + $0x6f0] sm:$0xff]
          %v3395 = vld [vmem:[#allocation15 + $0x6f8] sm:$0xff]
          %v3396 = vld [vmem:[#allocation15 + $0x700] sm:$0xff]
          %v3397 = vld [vmem:[#allocation15 + $0x708] sm:$0xff]
          %v3398 = vld [vmem:[#allocation15 + $0x710] sm:$0xff]
          %v3399 = vld [vmem:[#allocation15 + $0x718] sm:$0xff]
          %v3400 = vld [vmem:[#allocation15 + $0x720] sm:$0xff]
          %v3401 = vld [vmem:[#allocation15 + $0x728] sm:$0xff]
          %v3402 = vld [vmem:[#allocation15 + $0x730] sm:$0xff]
          %v3403 = vld [vmem:[#allocation15 + $0x738] sm:$0xff]
          %v3404 = vld [vmem:[#allocation15 + $0x740] sm:$0xff]
          %v3405 = vld [vmem:[#allocation15 + $0x748] sm:$0xff]
          %v3406 = vld [vmem:[#allocation15 + $0x750] sm:$0xff]
          %v3407 = vld [vmem:[#allocation15 + $0x758] sm:$0xff]
          %v3408 = vld [vmem:[#allocation15 + $0x760] sm:$0xff]
          %v3409 = vld [vmem:[#allocation15 + $0x768] sm:$0xff]
          %v3410 = vld [vmem:[#allocation15 + $0x770] sm:$0xff]
          %v3411 = vld [vmem:[#allocation15 + $0x778] sm:$0xff]
          %v3412 = vld [vmem:[#allocation15 + $0x780] sm:$0xff]
          %v3413 = vld [vmem:[#allocation15 + $0x788] sm:$0xff]
          %v3414 = vld [vmem:[#allocation15 + $0x790] sm:$0xff]
          %v3415 = vld [vmem:[#allocation15 + $0x798] sm:$0xff]
          %v3416 = vld [vmem:[#allocation15 + $0x7a0] sm:$0xff]
          %v3417 = vld [vmem:[#allocation15 + $0x7a8] sm:$0xff]
          %v3418 = vld [vmem:[#allocation15 + $0x7b0] sm:$0xff]
          %v3419 = vld [vmem:[#allocation15 + $0x7b8] sm:$0xff]
          %v3420 = vld [vmem:[#allocation15 + $0x7c0] sm:$0xff]
          %v3421 = vld [vmem:[#allocation15 + $0x7c8] sm:$0xff]
          %v3422 = vld [vmem:[#allocation15 + $0x7d0] sm:$0xff]
          %v3423 = vld [vmem:[#allocation15 + $0x7d8] sm:$0xff]
          %v3424 = vld [vmem:[#allocation15 + $0x7e0] sm:$0xff]
          %v3425 = vld [vmem:[#allocation15 + $0x7e8] sm:$0xff]
          %v3426 = vld [vmem:[#allocation15 + $0x7f0] sm:$0xff]
          %v3427 = vld [vmem:[#allocation15 + $0x7f8] sm:$0xff]
          %v3428 = vld [vmem:[#allocation15 + $0x800] sm:$0xff]
          %v3429 = vld [vmem:[#allocation15 + $0x808] sm:$0xff]
          %v3430 = vld [vmem:[#allocation15 + $0x810] sm:$0xff]
          %v3431 = vld [vmem:[#allocation15 + $0x818] sm:$0xff]
          %v3432 = vld [vmem:[#allocation15 + $0x820] sm:$0xff]
          %v3433 = vld [vmem:[#allocation15 + $0x828] sm:$0xff]
          %v3434 = vld [vmem:[#allocation15 + $0x830] sm:$0xff]
          %v3435 = vld [vmem:[#allocation15 + $0x838] sm:$0xff]
          %v3436 = vld [vmem:[#allocation15 + $0x840] sm:$0xff]
          %v3437 = vld [vmem:[#allocation15 + $0x848] sm:$0xff]
          %v3438 = vld [vmem:[#allocation15 + $0x850] sm:$0xff]
          %v3439 = vld [vmem:[#allocation15 + $0x858] sm:$0xff]
          %v3440 = vld [vmem:[#allocation15 + $0x860] sm:$0xff]
          %v3441 = vld [vmem:[#allocation15 + $0x868] sm:$0xff]
          %v3442 = vld [vmem:[#allocation15 + $0x870] sm:$0xff]
          %v3443 = vld [vmem:[#allocation15 + $0x878] sm:$0xff]
          %v3444 = vld [vmem:[#allocation15 + $0x880] sm:$0xff]
          %v3445 = vld [vmem:[#allocation15 + $0x888] sm:$0xff]
          %v3446 = vld [vmem:[#allocation15 + $0x890] sm:$0xff]
          %v3447 = vld [vmem:[#allocation15 + $0x898] sm:$0xff]
          %v3448 = vld [vmem:[#allocation15 + $0x8a0] sm:$0xff]
          %v3449 = vld [vmem:[#allocation15 + $0x8a8] sm:$0xff]
          %v3450 = vld [vmem:[#allocation15 + $0x8b0] sm:$0xff]
          %v3451 = vld [vmem:[#allocation15 + $0x8b8] sm:$0xff]
          %v3452 = vld [vmem:[#allocation15 + $0x8c0] sm:$0xff]
          %v3453 = vld [vmem:[#allocation15 + $0x8c8] sm:$0xff]
          %v3454 = vld [vmem:[#allocation15 + $0x8d0] sm:$0xff]
          %v3455 = vld [vmem:[#allocation15 + $0x8d8] sm:$0xff]
          %v3456 = vld [vmem:[#allocation15 + $0x8e0] sm:$0xff]
          %v3457 = vld [vmem:[#allocation15 + $0x8e8] sm:$0xff]
          %v3458 = vld [vmem:[#allocation15 + $0x8f0] sm:$0xff]
          %v3459 = vld [vmem:[#allocation15 + $0x8f8] sm:$0xff]
          %v3460 = vld [vmem:[#allocation15 + $0x900] sm:$0xff]
          %v3461 = vld [vmem:[#allocation15 + $0x908] sm:$0xff]
          %v3462 = vld [vmem:[#allocation15 + $0x910] sm:$0xff]
          %v3463 = vld [vmem:[#allocation15 + $0x918] sm:$0xff]
          %v3464 = vld [vmem:[#allocation15 + $0x920] sm:$0xff]
          %v3465 = vld [vmem:[#allocation15 + $0x928] sm:$0xff]
          %v3466 = vld [vmem:[#allocation15 + $0x930] sm:$0xff]
          %v3467 = vld [vmem:[#allocation15 + $0x938] sm:$0xff]
          %v3468 = vld [vmem:[#allocation15 + $0x940] sm:$0xff]
          %v3469 = vld [vmem:[#allocation15 + $0x948] sm:$0xff]
          %v3470 = vld [vmem:[#allocation15 + $0x950] sm:$0xff]
          %v3471 = vld [vmem:[#allocation15 + $0x958] sm:$0xff]
          %v3472 = vld [vmem:[#allocation15 + $0x960] sm:$0xff]
          %v3473 = vld [vmem:[#allocation15 + $0x968] sm:$0xff]
          %v3474 = vld [vmem:[#allocation15 + $0x970] sm:$0xff]
          %v3475 = vld [vmem:[#allocation15 + $0x978] sm:$0xff]
          %v3476 = vld [vmem:[#allocation15 + $0x980] sm:$0xff]
          %v3477 = vld [vmem:[#allocation15 + $0x988] sm:$0xff]
          %v3478 = vld [vmem:[#allocation15 + $0x990] sm:$0xff]
          %v3479 = vld [vmem:[#allocation15 + $0x998] sm:$0xff]
          %v3480 = vld [vmem:[#allocation15 + $0x9a0] sm:$0xff]
          %v3481 = vld [vmem:[#allocation15 + $0x9a8] sm:$0xff]
          %v3482 = vld [vmem:[#allocation15 + $0x9b0] sm:$0xff]
          %v3483 = vld [vmem:[#allocation15 + $0x9b8] sm:$0xff]
          %v3484 = vld [vmem:[#allocation15 + $0x9c0] sm:$0xff]
          %v3485 = vld [vmem:[#allocation15 + $0x9c8] sm:$0xff]
          %v3486 = vld [vmem:[#allocation15 + $0x9d0] sm:$0xff]
          %v3487 = vld [vmem:[#allocation15 + $0x9d8] sm:$0xff]
          %v3488 = vld [vmem:[#allocation15 + $0x9e0] sm:$0xff]
          %v3489 = vld [vmem:[#allocation15 + $0x9e8] sm:$0xff]
          %v3490 = vld [vmem:[#allocation15 + $0x9f0] sm:$0xff]
          %v3491 = vld [vmem:[#allocation15 + $0x9f8] sm:$0xff]
          %v3492 = vld [vmem:[#allocation15 + $0xa00] sm:$0xff]
          %v3493 = vld [vmem:[#allocation15 + $0xa08] sm:$0xff]
          %v3494 = vld [vmem:[#allocation15 + $0xa10] sm:$0xff]
          %v3495 = vld [vmem:[#allocation15 + $0xa18] sm:$0xff]
          %v3496 = vld [vmem:[#allocation15 + $0xa20] sm:$0xff]
          %v3497 = vld [vmem:[#allocation15 + $0xa28] sm:$0xff]
          %v3498 = vld [vmem:[#allocation15 + $0xa30] sm:$0xff]
          %v3499 = vld [vmem:[#allocation15 + $0xa38] sm:$0xff]
          %v3500 = vld [vmem:[#allocation15 + $0xa40] sm:$0xff]
          %v3501 = vld [vmem:[#allocation15 + $0xa48] sm:$0xff]
          %v3502 = vld [vmem:[#allocation15 + $0xa50] sm:$0xff]
          %v3503 = vld [vmem:[#allocation15 + $0xa58] sm:$0xff]
          %v3504 = vld [vmem:[#allocation15 + $0xa60] sm:$0xff]
          %v3505 = vld [vmem:[#allocation15 + $0xa68] sm:$0xff]
          %v3506 = vld [vmem:[#allocation15 + $0xa70] sm:$0xff]
          %v3507 = vld [vmem:[#allocation15 + $0xa78] sm:$0xff]
          %v3508 = vld [vmem:[#allocation15 + $0xa80] sm:$0xff]
          %v3509 = vld [vmem:[#allocation15 + $0xa88] sm:$0xff]
          %v3510 = vld [vmem:[#allocation15 + $0xa90] sm:$0xff]
          %v3511 = vld [vmem:[#allocation15 + $0xa98] sm:$0xff]
          %v3512 = vld [vmem:[#allocation15 + $0xaa0] sm:$0xff]
          %v3513 = vld [vmem:[#allocation15 + $0xaa8] sm:$0xff]
          %v3514 = vld [vmem:[#allocation15 + $0xab0] sm:$0xff]
          %v3515 = vld [vmem:[#allocation15 + $0xab8] sm:$0xff]
          %v3516 = vld [vmem:[#allocation15 + $0xac0] sm:$0xff]
          %v3517 = vld [vmem:[#allocation15 + $0xac8] sm:$0xff]
          %v3518 = vld [vmem:[#allocation15 + $0xad0] sm:$0xff]
          %v3519 = vld [vmem:[#allocation15 + $0xad8] sm:$0xff]
          %v3520 = vld [vmem:[#allocation15 + $0xae0] sm:$0xff]
          %v3521 = vld [vmem:[#allocation15 + $0xae8] sm:$0xff]
          %v3522 = vld [vmem:[#allocation15 + $0xaf0] sm:$0xff]
          %v3523 = vld [vmem:[#allocation15 + $0xaf8] sm:$0xff]
          %v3524 = vld [vmem:[#allocation15 + $0xb00] sm:$0xff]
          %v3525 = vld [vmem:[#allocation15 + $0xb08] sm:$0xff]
          %v3526 = vld [vmem:[#allocation15 + $0xb10] sm:$0xff]
          %v3527 = vld [vmem:[#allocation15 + $0xb18] sm:$0xff]
          %v3528 = vld [vmem:[#allocation15 + $0xb20] sm:$0xff]
          %v3529 = vld [vmem:[#allocation15 + $0xb28] sm:$0xff]
          %v3530 = vld [vmem:[#allocation15 + $0xb30] sm:$0xff]
          %v3531 = vld [vmem:[#allocation15 + $0xb38] sm:$0xff]
          %v3532 = vld [vmem:[#allocation15 + $0xb40] sm:$0xff]
          %v3533 = vld [vmem:[#allocation15 + $0xb48] sm:$0xff]
          %v3534 = vld [vmem:[#allocation15 + $0xb50] sm:$0xff]
          %v3535 = vld [vmem:[#allocation15 + $0xb58] sm:$0xff]
          %v3536 = vld [vmem:[#allocation15 + $0xb60] sm:$0xff]
          %v3537 = vld [vmem:[#allocation15 + $0xb68] sm:$0xff]
          %v3538 = vld [vmem:[#allocation15 + $0xb70] sm:$0xff]
          %v3539 = vld [vmem:[#allocation15 + $0xb78] sm:$0xff]
          %v3540 = vld [vmem:[#allocation15 + $0xb80] sm:$0xff]
          %v3541 = vld [vmem:[#allocation15 + $0xb88] sm:$0xff]
          %v3542 = vld [vmem:[#allocation15 + $0xb90] sm:$0xff]
          %v3543 = vld [vmem:[#allocation15 + $0xb98] sm:$0xff]
          %v3544 = vld [vmem:[#allocation15 + $0xba0] sm:$0xff]
          %v3545 = vld [vmem:[#allocation15 + $0xba8] sm:$0xff]
          %v3546 = vld [vmem:[#allocation15 + $0xbb0] sm:$0xff]
          %v3547 = vld [vmem:[#allocation15 + $0xbb8] sm:$0xff]
          %v3548 = vld [vmem:[#allocation15 + $0xbc0] sm:$0xff]
          %v3549 = vld [vmem:[#allocation15 + $0xbc8] sm:$0xff]
          %v3550 = vld [vmem:[#allocation15 + $0xbd0] sm:$0xff]
          %v3551 = vld [vmem:[#allocation15 + $0xbd8] sm:$0xff]
          %v3552 = vld [vmem:[#allocation15 + $0xbe0] sm:$0xff]
          %v3553 = vld [vmem:[#allocation15 + $0xbe8] sm:$0xff]
          %v3554 = vld [vmem:[#allocation15 + $0xbf0] sm:$0xff]
          %v3555 = vld [vmem:[#allocation15 + $0xbf8] sm:$0xff]
          %v3556 = vld [vmem:[#allocation15 + $0xc00] sm:$0xff]
          %v3557 = vld [vmem:[#allocation15 + $0xc08] sm:$0xff]
          %v3558 = vld [vmem:[#allocation15 + $0xc10] sm:$0xff]
          %v3559 = vld [vmem:[#allocation15 + $0xc18] sm:$0xff]
          %v3560 = vld [vmem:[#allocation15 + $0xc20] sm:$0xff]
          %v3561 = vld [vmem:[#allocation15 + $0xc28] sm:$0xff]
          %v3562 = vld [vmem:[#allocation15 + $0xc30] sm:$0xff]
          %v3563 = vld [vmem:[#allocation15 + $0xc38] sm:$0xff]
          %v3564 = vld [vmem:[#allocation15 + $0xc40] sm:$0xff]
          %v3565 = vld [vmem:[#allocation15 + $0xc48] sm:$0xff]
          %v3566 = vld [vmem:[#allocation15 + $0xc50] sm:$0xff]
          %v3567 = vld [vmem:[#allocation15 + $0xc58] sm:$0xff]
          %v3568 = vld [vmem:[#allocation15 + $0xc60] sm:$0xff]
          %v3569 = vld [vmem:[#allocation15 + $0xc68] sm:$0xff]
          %v3570 = vld [vmem:[#allocation15 + $0xc70] sm:$0xff]
          %v3571 = vld [vmem:[#allocation15 + $0xc78] sm:$0xff]
          %v3572 = vld [vmem:[#allocation15 + $0xc80] sm:$0xff]
          %v3573 = vld [vmem:[#allocation15 + $0xc88] sm:$0xff]
          %v3574 = vld [vmem:[#allocation15 + $0xc90] sm:$0xff]
          %v3575 = vld [vmem:[#allocation15 + $0xc98] sm:$0xff]
          %v3576 = vld [vmem:[#allocation15 + $0xca0] sm:$0xff]
          %v3577 = vld [vmem:[#allocation15 + $0xca8] sm:$0xff]
          %v3578 = vld [vmem:[#allocation15 + $0xcb0] sm:$0xff]
          %v3579 = vld [vmem:[#allocation15 + $0xcb8] sm:$0xff]
          %v3580 = vld [vmem:[#allocation15 + $0xcc0] sm:$0xff]
          %v3581 = vld [vmem:[#allocation15 + $0xcc8] sm:$0xff]
          %v3582 = vld [vmem:[#allocation15 + $0xcd0] sm:$0xff]
          %v3583 = vld [vmem:[#allocation15 + $0xcd8] sm:$0xff]
          %v3584 = vld [vmem:[#allocation15 + $0xce0] sm:$0xff]
          %v3585 = vld [vmem:[#allocation15 + $0xce8] sm:$0xff]
          %v3586 = vld [vmem:[#allocation15 + $0xcf0] sm:$0xff]
          %v3587 = vld [vmem:[#allocation15 + $0xcf8] sm:$0xff]
          %v3588 = vld [vmem:[#allocation15 + $0xd00] sm:$0xff]
          %v3589 = vld [vmem:[#allocation15 + $0xd08] sm:$0xff]
          %v3590 = vld [vmem:[#allocation15 + $0xd10] sm:$0xff]
          %v3591 = vld [vmem:[#allocation15 + $0xd18] sm:$0xff]
          %v3592 = vld [vmem:[#allocation15 + $0xd20] sm:$0xff]
          %v3593 = vld [vmem:[#allocation15 + $0xd28] sm:$0xff]
          %v3594 = vld [vmem:[#allocation15 + $0xd30] sm:$0xff]
          %v3595 = vld [vmem:[#allocation15 + $0xd38] sm:$0xff]
          %v3596 = vld [vmem:[#allocation15 + $0xd40] sm:$0xff]
          %v3597 = vld [vmem:[#allocation15 + $0xd48] sm:$0xff]
          %v3598 = vld [vmem:[#allocation15 + $0xd50] sm:$0xff]
          %v3599 = vld [vmem:[#allocation15 + $0xd58] sm:$0xff]
          %v3600 = vld [vmem:[#allocation15 + $0xd60] sm:$0xff]
          %v3601 = vld [vmem:[#allocation15 + $0xd68] sm:$0xff]
          %v3602 = vld [vmem:[#allocation15 + $0xd70] sm:$0xff]
          %v3603 = vld [vmem:[#allocation15 + $0xd78] sm:$0xff]
          %v3604 = vld [vmem:[#allocation15 + $0xd80] sm:$0xff]
          %v3605 = vld [vmem:[#allocation15 + $0xd88] sm:$0xff]
          %v3606 = vld [vmem:[#allocation15 + $0xd90] sm:$0xff]
          %v3607 = vld [vmem:[#allocation15 + $0xd98] sm:$0xff]
          %v3608 = vld [vmem:[#allocation15 + $0xda0] sm:$0xff]
          %v3609 = vld [vmem:[#allocation15 + $0xda8] sm:$0xff]
          %v3610 = vld [vmem:[#allocation15 + $0xdb0] sm:$0xff]
          %v3611 = vld [vmem:[#allocation15 + $0xdb8] sm:$0xff]
          %v3612 = vld [vmem:[#allocation15 + $0xdc0] sm:$0xff]
          %v3613 = vld [vmem:[#allocation15 + $0xdc8] sm:$0xff]
          %v3614 = vld [vmem:[#allocation15 + $0xdd0] sm:$0xff]
          %v3615 = vld [vmem:[#allocation15 + $0xdd8] sm:$0xff]
          %v3616 = vld [vmem:[#allocation15 + $0xde0] sm:$0xff]
          %v3617 = vld [vmem:[#allocation15 + $0xde8] sm:$0xff]
          %v3618 = vld [vmem:[#allocation15 + $0xdf0] sm:$0xff]
          %v3619 = vld [vmem:[#allocation15 + $0xdf8] sm:$0xff]
          %v3620 = vld [vmem:[#allocation15 + $0xe00] sm:$0xff]
          %v3621 = vld [vmem:[#allocation15 + $0xe08] sm:$0xff]
          %v3622 = vld [vmem:[#allocation15 + $0xe10] sm:$0xff]
          %v3623 = vld [vmem:[#allocation15 + $0xe18] sm:$0xff]
          %v3624 = vld [vmem:[#allocation15 + $0xe20] sm:$0xff]
          %v3625 = vld [vmem:[#allocation15 + $0xe28] sm:$0xff]
          %v3626 = vld [vmem:[#allocation15 + $0xe30] sm:$0xff]
          %v3627 = vld [vmem:[#allocation15 + $0xe38] sm:$0xff]
          %v3628 = vld [vmem:[#allocation15 + $0xe40] sm:$0xff]
          %v3629 = vld [vmem:[#allocation15 + $0xe48] sm:$0xff]
          %v3630 = vld [vmem:[#allocation15 + $0xe50] sm:$0xff]
          %v3631 = vld [vmem:[#allocation15 + $0xe58] sm:$0xff]
          %v3632 = vld [vmem:[#allocation15 + $0xe60] sm:$0xff]
          %v3633 = vld [vmem:[#allocation15 + $0xe68] sm:$0xff]
          %v3634 = vld [vmem:[#allocation15 + $0xe70] sm:$0xff]
          %v3635 = vld [vmem:[#allocation15 + $0xe78] sm:$0xff]
          %v3636 = vld [vmem:[#allocation15 + $0xe80] sm:$0xff]
          %v3637 = vld [vmem:[#allocation15 + $0xe88] sm:$0xff]
          %v3638 = vld [vmem:[#allocation15 + $0xe90] sm:$0xff]
          %v3639 = vld [vmem:[#allocation15 + $0xe98] sm:$0xff]
          %v3640 = vld [vmem:[#allocation15 + $0xea0] sm:$0xff]
          %v3641 = vld [vmem:[#allocation15 + $0xea8] sm:$0xff]
          %v3642 = vld [vmem:[#allocation15 + $0xeb0] sm:$0xff]
          %v3643 = vld [vmem:[#allocation15 + $0xeb8] sm:$0xff]
          %v3644 = vld [vmem:[#allocation15 + $0xec0] sm:$0xff]
          %v3645 = vld [vmem:[#allocation15 + $0xec8] sm:$0xff]
          %v3646 = vld [vmem:[#allocation15 + $0xed0] sm:$0xff]
          %v3647 = vld [vmem:[#allocation15 + $0xed8] sm:$0xff]
          %v3648 = vld [vmem:[#allocation15 + $0xee0] sm:$0xff]
          %v3649 = vld [vmem:[#allocation15 + $0xee8] sm:$0xff]
          %v3650 = vld [vmem:[#allocation15 + $0xef0] sm:$0xff]
          %v3651 = vld [vmem:[#allocation15 + $0xef8] sm:$0xff]
          %v3652 = vld [vmem:[#allocation15 + $0xf00] sm:$0xff]
          %v3653 = vld [vmem:[#allocation15 + $0xf08] sm:$0xff]
          %v3654 = vld [vmem:[#allocation15 + $0xf10] sm:$0xff]
          %v3655 = vld [vmem:[#allocation15 + $0xf18] sm:$0xff]
          %v3656 = vld [vmem:[#allocation15 + $0xf20] sm:$0xff]
          %v3657 = vld [vmem:[#allocation15 + $0xf28] sm:$0xff]
          %v3658 = vld [vmem:[#allocation15 + $0xf30] sm:$0xff]
          %v3659 = vld [vmem:[#allocation15 + $0xf38] sm:$0xff]
          %v3660 = vld [vmem:[#allocation15 + $0xf40] sm:$0xff]
          %v3661 = vld [vmem:[#allocation15 + $0xf48] sm:$0xff]
          %v3662 = vld [vmem:[#allocation15 + $0xf50] sm:$0xff]
          %v3663 = vld [vmem:[#allocation15 + $0xf58] sm:$0xff]
          %v3664 = vld [vmem:[#allocation15 + $0xf60] sm:$0xff]
          %v3665 = vld [vmem:[#allocation15 + $0xf68] sm:$0xff]
          %v3666 = vld [vmem:[#allocation15 + $0xf70] sm:$0xff]
          %v3667 = vld [vmem:[#allocation15 + $0xf78] sm:$0xff]
          %v3668 = vld [vmem:[#allocation15 + $0xf80] sm:$0xff]
          %v3669 = vld [vmem:[#allocation15 + $0xf88] sm:$0xff]
          %v3670 = vld [vmem:[#allocation15 + $0xf90] sm:$0xff]
          %v3671 = vld [vmem:[#allocation15 + $0xf98] sm:$0xff]
          %v3672 = vld [vmem:[#allocation15 + $0xfa0] sm:$0xff]
          %v3673 = vld [vmem:[#allocation15 + $0xfa8] sm:$0xff]
          %v3674 = vld [vmem:[#allocation15 + $0xfb0] sm:$0xff]
          %v3675 = vld [vmem:[#allocation15 + $0xfb8] sm:$0xff]
          %v3676 = vld [vmem:[#allocation15 + $0xfc0] sm:$0xff]
          %v3677 = vld [vmem:[#allocation15 + $0xfc8] sm:$0xff]
          %v3678 = vld [vmem:[#allocation15 + $0xfd0] sm:$0xff]
          %v3679 = vld [vmem:[#allocation15 + $0xfd8] sm:$0xff]
          %v3680 = vld [vmem:[#allocation15 + $0xfe0] sm:$0xff]
          %v3681 = vld [vmem:[#allocation15 + $0xfe8] sm:$0xff]
          %v3682 = vld [vmem:[#allocation15 + $0xff0] sm:$0xff]
          %v3683 = vld [vmem:[#allocation15 + $0xff8] sm:$0xff]
          %v3684 = vld [vmem:[#allocation16] sm:$0xf]
          %v3686 = vlaneseq
          %v3687 = vshrl.u32 %v3686, 7
          %v3688 = vsub.s32 0, %v3687
          %v3689 = vrot.slane %v3684, %v3688
          %v3690 = vlaneseq
          %v3691 = vshrl.u32 %v3690, 7
          %v3692 = vsub.s32 1, %v3691
          %v3693 = vrot.slane %v3684, %v3692
          %v3694 = vlaneseq
          %v3695 = vshrl.u32 %v3694, 7
          %v3696 = vsub.s32 2, %v3695
          %v3697 = vrot.slane %v3684, %v3696
          %v3698 = vlaneseq
          %v3699 = vshrl.u32 %v3698, 7
          %v3700 = vsub.s32 3, %v3699
          %v3701 = vrot.slane %v3684, %v3700
          %v3708 = vcombine.high %v3170, %v3170
          %v3710 = vunpack.c.l.s4 1983009808
          %v3711 = vunpack.c.0.s8 %v3710
          %v3712 = vlaneseq
          %v3713 = vshrl.u32 %v3712, 7
          %v3714 = vsub.s32 %v3711, %v3713
          %v3715 = vrot.slane %v3170, %v3714
          %v3717 = vunpack.c.l.s4 1983009808
          %v3718 = vunpack.c.0.s8 %v3717
          %v3719 = vlaneseq
          %v3720 = vshrl.u32 %v3719, 7
          %v3721 = vsub.s32 %v3718, %v3720
          %v3722 = vrot.slane %v3708, %v3721
          %v3723 = vcombine.high %v3715, %v3715
          %v3724 = vcombine.high %v3722, %v3722
          %v3725 = vcombine.high %v3171, %v3171
          %v3727 = vunpack.c.l.s4 1983009808
          %v3728 = vunpack.c.0.s8 %v3727
          %v3729 = vlaneseq
          %v3730 = vshrl.u32 %v3729, 7
          %v3731 = vsub.s32 %v3728, %v3730
          %v3732 = vrot.slane %v3171, %v3731
          %v3734 = vunpack.c.l.s4 1983009808
          %v3735 = vunpack.c.0.s8 %v3734
          %v3736 = vlaneseq
          %v3737 = vshrl.u32 %v3736, 7
          %v3738 = vsub.s32 %v3735, %v3737
          %v3739 = vrot.slane %v3725, %v3738
          %v3740 = vcombine.high %v3732, %v3732
          %v3741 = vcombine.high %v3739, %v3739
          %3750 = vmatprep.subr.mxu0 %v3233
          %3751 = vmatpush1.msra.mxu0 %v3232
          %3752 = vmatprep.subr.mxu0 %v3229
          %3753 = vmatpush1.msra.mxu0 %v3228
          %3754 = vmatprep.subr.mxu0 %v3225
          %3755 = vmatpush1.msra.mxu0 %v3224
          %3756 = vmatprep.subr.mxu0 %v3221
          %3757 = vmatpush1.msra.mxu0 %v3220
          %3758 = vmatprep.subr.mxu0 %v3217
          %3759 = vmatpush1.msra.mxu0 %v3216
          %3760 = vmatprep.subr.mxu0 %v3213
          %3761 = vmatpush1.msra.mxu0 %v3212
          %3762 = vmatprep.subr.mxu0 %v3209
          %3763 = vmatpush1.msra.mxu0 %v3208
          %3764 = vmatprep.subr.mxu0 %v3205
          %3765 = vmatpush1.msra.mxu0 %v3204
          %3766 = vmatprep.subr.mxu0 %v3201
          %3767 = vmatpush1.msra.mxu0 %v3200
          %3768 = vmatprep.subr.mxu0 %v3197
          %3769 = vmatpush1.msra.mxu0 %v3196
          %3770 = vmatprep.subr.mxu0 %v3193
          %3771 = vmatpush1.msra.mxu0 %v3192
          %3772 = vmatprep.subr.mxu0 %v3189
          %3773 = vmatpush1.msra.mxu0 %v3188
          %3774 = vmatprep.subr.mxu0 %v3185
          %3775 = vmatpush1.msra.mxu0 %v3184
          %3776 = vmatprep.subr.mxu0 %v3181
          %3777 = vmatpush1.msra.mxu0 %v3180
          %3778 = vmatprep.subr.mxu0 %v3177
          %3779 = vmatpush1.msra.mxu0 %v3176
          %3780 = vmatprep.subr.mxu0 %v3173
          %3781 = vmatpush1.msra.mxu0 %v3172
          %3782 = vmatprep.subr.mxu0 %v3297
          %3783 = vmatpush2.msra.mxu0 %v3296
          %3784 = vmatprep.subr.mxu0 %v3293
          %3785 = vmatpush2.msra.mxu0 %v3292
          %3786 = vmatprep.subr.mxu0 %v3289
          %3787 = vmatpush2.msra.mxu0 %v3288
          %3788 = vmatprep.subr.mxu0 %v3285
          %3789 = vmatpush2.msra.mxu0 %v3284
          %3790 = vmatprep.subr.mxu0 %v3281
          %3791 = vmatpush2.msra.mxu0 %v3280
          %3792 = vmatprep.subr.mxu0 %v3277
          %3793 = vmatpush2.msra.mxu0 %v3276
          %3794 = vmatprep.subr.mxu0 %v3273
          %3795 = vmatpush2.msra.mxu0 %v3272
          %3796 = vmatprep.subr.mxu0 %v3269
          %3797 = vmatpush2.msra.mxu0 %v3268
          %3798 = vmatprep.subr.mxu0 %v3265
          %3799 = vmatpush2.msra.mxu0 %v3264
          %3800 = vmatprep.subr.mxu0 %v3261
          %3801 = vmatpush2.msra.mxu0 %v3260
          %3802 = vmatprep.subr.mxu0 %v3257
          %3803 = vmatpush2.msra.mxu0 %v3256
          %3804 = vmatprep.subr.mxu0 %v3253
          %3805 = vmatpush2.msra.mxu0 %v3252
          %3806 = vmatprep.subr.mxu0 %v3249
          %3807 = vmatpush2.msra.mxu0 %v3248
          %3808 = vmatprep.subr.mxu0 %v3245
          %3809 = vmatpush2.msra.mxu0 %v3244
          %3810 = vmatprep.subr.mxu0 %v3241
          %3811 = vmatpush2.msra.mxu0 %v3240
          %3812 = vmatprep.subr.mxu0 %v3237
          %3813 = vmatpush2.msra.mxu0 %v3236
          %3814 = vmatprep.mubr.f32.mxu0 %v3723
          %3815 = vmatmul.mubr.f32.gmra.mxu0 %v3715
          %v3816 = vpop.f32.mrf.mxu0
          %v3817 = vadd.f32 %v3689, %v3816
          %v3818 = vpop.f32.mrf.mxu0
          %v3819 = vadd.f32 %v3693, %v3818
          %3820 = vdwg.mxu0
          %3821 = vmatprep.subr.mxu0 %v3361
          %3822 = vmatpush1.msra.mxu0 %v3360
          %3823 = vmatprep.subr.mxu0 %v3357
          %3824 = vmatpush1.msra.mxu0 %v3356
          %3825 = vmatprep.subr.mxu0 %v3353
          %3826 = vmatpush1.msra.mxu0 %v3352
          %3827 = vmatprep.subr.mxu0 %v3349
          %3828 = vmatpush1.msra.mxu0 %v3348
          %3829 = vmatprep.subr.mxu0 %v3345
          %3830 = vmatpush1.msra.mxu0 %v3344
          %3831 = vmatprep.subr.mxu0 %v3341
          %3832 = vmatpush1.msra.mxu0 %v3340
          %3833 = vmatprep.subr.mxu0 %v3337
          %3834 = vmatpush1.msra.mxu0 %v3336
          %3835 = vmatprep.subr.mxu0 %v3333
          %3836 = vmatpush1.msra.mxu0 %v3332
          %3837 = vmatprep.subr.mxu0 %v3329
          %3838 = vmatpush1.msra.mxu0 %v3328
          %3839 = vmatprep.subr.mxu0 %v3325
          %3840 = vmatpush1.msra.mxu0 %v3324
          %3841 = vmatprep.subr.mxu0 %v3321
          %3842 = vmatpush1.msra.mxu0 %v3320
          %3843 = vmatprep.subr.mxu0 %v3317
          %3844 = vmatpush1.msra.mxu0 %v3316
          %3845 = vmatprep.subr.mxu0 %v3313
          %3846 = vmatpush1.msra.mxu0 %v3312
          %3847 = vmatprep.subr.mxu0 %v3309
          %3848 = vmatpush1.msra.mxu0 %v3308
          %3849 = vmatprep.subr.mxu0 %v3305
          %3850 = vmatpush1.msra.mxu0 %v3304
          %3851 = vmatprep.subr.mxu0 %v3301
          %3852 = vmatpush1.msra.mxu0 %v3300
          %3853 = vmatprep.subr.mxu0 %v3425
          %3854 = vmatpush2.msra.mxu0 %v3424
          %3855 = vmatprep.subr.mxu0 %v3421
          %3856 = vmatpush2.msra.mxu0 %v3420
          %3857 = vmatprep.subr.mxu0 %v3417
          %3858 = vmatpush2.msra.mxu0 %v3416
          %3859 = vmatprep.subr.mxu0 %v3413
          %3860 = vmatpush2.msra.mxu0 %v3412
          %3861 = vmatprep.subr.mxu0 %v3409
          %3862 = vmatpush2.msra.mxu0 %v3408
          %3863 = vmatprep.subr.mxu0 %v3405
          %3864 = vmatpush2.msra.mxu0 %v3404
          %3865 = vmatprep.subr.mxu0 %v3401
          %3866 = vmatpush2.msra.mxu0 %v3400
          %3867 = vmatprep.subr.mxu0 %v3397
          %3868 = vmatpush2.msra.mxu0 %v3396
          %3869 = vmatprep.subr.mxu0 %v3393
          %3870 = vmatpush2.msra.mxu0 %v3392
          %3871 = vmatprep.subr.mxu0 %v3389
          %3872 = vmatpush2.msra.mxu0 %v3388
          %3873 = vmatprep.subr.mxu0 %v3385
          %3874 = vmatpush2.msra.mxu0 %v3384
          %3875 = vmatprep.subr.mxu0 %v3381
          %3876 = vmatpush2.msra.mxu0 %v3380
          %3877 = vmatprep.subr.mxu0 %v3377
          %3878 = vmatpush2.msra.mxu0 %v3376
          %3879 = vmatprep.subr.mxu0 %v3373
          %3880 = vmatpush2.msra.mxu0 %v3372
          %3881 = vmatprep.subr.mxu0 %v3369
          %3882 = vmatpush2.msra.mxu0 %v3368
          %3883 = vmatprep.subr.mxu0 %v3365
          %3884 = vmatpush2.msra.mxu0 %v3364
          %3885 = vmatprep.mubr.f32.mxu0 %v3724
          %3886 = vmatmul.mubr.f32.gmra.mxu0 %v3722
          %v3887 = vpop.f32.mrf.mxu0
          %v3888 = vadd.f32 %v3817, %v3887
          %v3889 = vpop.f32.mrf.mxu0
          %v3890 = vadd.f32 %v3819, %v3889
          %3891 = vdwg.mxu0
          %3892 = vmatprep.subr.mxu0 %v3489
          %3893 = vmatpush1.msra.mxu0 %v3488
          %3894 = vmatprep.subr.mxu0 %v3485
          %3895 = vmatpush1.msra.mxu0 %v3484
          %3896 = vmatprep.subr.mxu0 %v3481
          %3897 = vmatpush1.msra.mxu0 %v3480
          %3898 = vmatprep.subr.mxu0 %v3477
          %3899 = vmatpush1.msra.mxu0 %v3476
          %3900 = vmatprep.subr.mxu0 %v3473
          %3901 = vmatpush1.msra.mxu0 %v3472
          %3902 = vmatprep.subr.mxu0 %v3469
          %3903 = vmatpush1.msra.mxu0 %v3468
          %3904 = vmatprep.subr.mxu0 %v3465
          %3905 = vmatpush1.msra.mxu0 %v3464
          %3906 = vmatprep.subr.mxu0 %v3461
          %3907 = vmatpush1.msra.mxu0 %v3460
          %3908 = vmatprep.subr.mxu0 %v3457
          %3909 = vmatpush1.msra.mxu0 %v3456
          %3910 = vmatprep.subr.mxu0 %v3453
          %3911 = vmatpush1.msra.mxu0 %v3452
          %3912 = vmatprep.subr.mxu0 %v3449
          %3913 = vmatpush1.msra.mxu0 %v3448
          %3914 = vmatprep.subr.mxu0 %v3445
          %3915 = vmatpush1.msra.mxu0 %v3444
          %3916 = vmatprep.subr.mxu0 %v3441
          %3917 = vmatpush1.msra.mxu0 %v3440
          %3918 = vmatprep.subr.mxu0 %v3437
          %3919 = vmatpush1.msra.mxu0 %v3436
          %3920 = vmatprep.subr.mxu0 %v3433
          %3921 = vmatpush1.msra.mxu0 %v3432
          %3922 = vmatprep.subr.mxu0 %v3429
          %3923 = vmatpush1.msra.mxu0 %v3428
          %3924 = vmatprep.subr.mxu0 %v3553
          %3925 = vmatpush2.msra.mxu0 %v3552
          %3926 = vmatprep.subr.mxu0 %v3549
          %3927 = vmatpush2.msra.mxu0 %v3548
          %3928 = vmatprep.subr.mxu0 %v3545
          %3929 = vmatpush2.msra.mxu0 %v3544
          %3930 = vmatprep.subr.mxu0 %v3541
          %3931 = vmatpush2.msra.mxu0 %v3540
          %3932 = vmatprep.subr.mxu0 %v3537
          %3933 = vmatpush2.msra.mxu0 %v3536
          %3934 = vmatprep.subr.mxu0 %v3533
          %3935 = vmatpush2.msra.mxu0 %v3532
          %3936 = vmatprep.subr.mxu0 %v3529
          %3937 = vmatpush2.msra.mxu0 %v3528
          %3938 = vmatprep.subr.mxu0 %v3525
          %3939 = vmatpush2.msra.mxu0 %v3524
          %3940 = vmatprep.subr.mxu0 %v3521
          %3941 = vmatpush2.msra.mxu0 %v3520
          %3942 = vmatprep.subr.mxu0 %v3517
          %3943 = vmatpush2.msra.mxu0 %v3516
          %3944 = vmatprep.subr.mxu0 %v3513
          %3945 = vmatpush2.msra.mxu0 %v3512
          %3946 = vmatprep.subr.mxu0 %v3509
          %3947 = vmatpush2.msra.mxu0 %v3508
          %3948 = vmatprep.subr.mxu0 %v3505
          %3949 = vmatpush2.msra.mxu0 %v3504
          %3950 = vmatprep.subr.mxu0 %v3501
          %3951 = vmatpush2.msra.mxu0 %v3500
          %3952 = vmatprep.subr.mxu0 %v3497
          %3953 = vmatpush2.msra.mxu0 %v3496
          %3954 = vmatprep.subr.mxu0 %v3493
          %3955 = vmatpush2.msra.mxu0 %v3492
          %3956 = vmatprep.mubr.f32.mxu0 %v3740
          %3957 = vmatmul.mubr.f32.gmra.mxu0 %v3732
          %v3958 = vpop.f32.mrf.mxu0
          %v3959 = vadd.f32 %v3888, %v3958
          %v3960 = vpop.f32.mrf.mxu0
          %v3961 = vadd.f32 %v3890, %v3960
          %3962 = vdwg.mxu0
          %3963 = vmatprep.subr.mxu0 %v3617
          %3964 = vmatpush1.msra.mxu0 %v3616
          %3965 = vmatprep.subr.mxu0 %v3613
          %3966 = vmatpush1.msra.mxu0 %v3612
          %3967 = vmatprep.subr.mxu0 %v3609
          %3968 = vmatpush1.msra.mxu0 %v3608
          %3969 = vmatprep.subr.mxu0 %v3605
          %3970 = vmatpush1.msra.mxu0 %v3604
          %3971 = vmatprep.subr.mxu0 %v3601
          %3972 = vmatpush1.msra.mxu0 %v3600
          %3973 = vmatprep.subr.mxu0 %v3597
          %3974 = vmatpush1.msra.mxu0 %v3596
          %3975 = vmatprep.subr.mxu0 %v3593
          %3976 = vmatpush1.msra.mxu0 %v3592
          %3977 = vmatprep.subr.mxu0 %v3589
          %3978 = vmatpush1.msra.mxu0 %v3588
          %3979 = vmatprep.subr.mxu0 %v3585
          %3980 = vmatpush1.msra.mxu0 %v3584
          %3981 = vmatprep.subr.mxu0 %v3581
          %3982 = vmatpush1.msra.mxu0 %v3580
          %3983 = vmatprep.subr.mxu0 %v3577
          %3984 = vmatpush1.msra.mxu0 %v3576
          %3985 = vmatprep.subr.mxu0 %v3573
          %3986 = vmatpush1.msra.mxu0 %v3572
          %3987 = vmatprep.subr.mxu0 %v3569
          %3988 = vmatpush1.msra.mxu0 %v3568
          %3989 = vmatprep.subr.mxu0 %v3565
          %3990 = vmatpush1.msra.mxu0 %v3564
          %3991 = vmatprep.subr.mxu0 %v3561
          %3992 = vmatpush1.msra.mxu0 %v3560
          %3993 = vmatprep.subr.mxu0 %v3557
          %3994 = vmatpush1.msra.mxu0 %v3556
          %3995 = vmatprep.subr.mxu0 %v3681
          %3996 = vmatpush2.msra.mxu0 %v3680
          %3997 = vmatprep.subr.mxu0 %v3677
          %3998 = vmatpush2.msra.mxu0 %v3676
          %3999 = vmatprep.subr.mxu0 %v3673
          %4000 = vmatpush2.msra.mxu0 %v3672
          %4001 = vmatprep.subr.mxu0 %v3669
          %4002 = vmatpush2.msra.mxu0 %v3668
          %4003 = vmatprep.subr.mxu0 %v3665
          %4004 = vmatpush2.msra.mxu0 %v3664
          %4005 = vmatprep.subr.mxu0 %v3661
          %4006 = vmatpush2.msra.mxu0 %v3660
          %4007 = vmatprep.subr.mxu0 %v3657
          %4008 = vmatpush2.msra.mxu0 %v3656
          %4009 = vmatprep.subr.mxu0 %v3653
          %4010 = vmatpush2.msra.mxu0 %v3652
          %4011 = vmatprep.subr.mxu0 %v3649
          %4012 = vmatpush2.msra.mxu0 %v3648
          %4013 = vmatprep.subr.mxu0 %v3645
          %4014 = vmatpush2.msra.mxu0 %v3644
          %4015 = vmatprep.subr.mxu0 %v3641
          %4016 = vmatpush2.msra.mxu0 %v3640
          %4017 = vmatprep.subr.mxu0 %v3637
          %4018 = vmatpush2.msra.mxu0 %v3636
          %4019 = vmatprep.subr.mxu0 %v3633
          %4020 = vmatpush2.msra.mxu0 %v3632
          %4021 = vmatprep.subr.mxu0 %v3629
          %4022 = vmatpush2.msra.mxu0 %v3628
          %4023 = vmatprep.subr.mxu0 %v3625
          %4024 = vmatpush2.msra.mxu0 %v3624
          %4025 = vmatprep.subr.mxu0 %v3621
          %4026 = vmatpush2.msra.mxu0 %v3620
          %4027 = vmatprep.mubr.f32.mxu0 %v3741
          %4028 = vmatmul.mubr.f32.gmra.mxu0 %v3739
          %v4029 = vpop.f32.mrf.mxu0
          %v4030 = vadd.f32 %v3959, %v4029
          %v4031 = vpop.f32.mrf.mxu0
          %v4032 = vadd.f32 %v3961, %v4031
          %4033 = vdwg.mxu0
          %4034 = vmatprep.subr.mxu0 %v3235
          %4035 = vmatpush1.msra.mxu0 %v3234
          %4036 = vmatprep.subr.mxu0 %v3231
          %4037 = vmatpush1.msra.mxu0 %v3230
          %4038 = vmatprep.subr.mxu0 %v3227
          %4039 = vmatpush1.msra.mxu0 %v3226
          %4040 = vmatprep.subr.mxu0 %v3223
          %4041 = vmatpush1.msra.mxu0 %v3222
          %4042 = vmatprep.subr.mxu0 %v3219
          %4043 = vmatpush1.msra.mxu0 %v3218
          %4044 = vmatprep.subr.mxu0 %v3215
          %4045 = vmatpush1.msra.mxu0 %v3214
          %4046 = vmatprep.subr.mxu0 %v3211
          %4047 = vmatpush1.msra.mxu0 %v3210
          %4048 = vmatprep.subr.mxu0 %v3207
          %4049 = vmatpush1.msra.mxu0 %v3206
          %4050 = vmatprep.subr.mxu0 %v3203
          %4051 = vmatpush1.msra.mxu0 %v3202
          %4052 = vmatprep.subr.mxu0 %v3199
          %4053 = vmatpush1.msra.mxu0 %v3198
          %4054 = vmatprep.subr.mxu0 %v3195
          %4055 = vmatpush1.msra.mxu0 %v3194
          %4056 = vmatprep.subr.mxu0 %v3191
          %4057 = vmatpush1.msra.mxu0 %v3190
          %4058 = vmatprep.subr.mxu0 %v3187
          %4059 = vmatpush1.msra.mxu0 %v3186
          %4060 = vmatprep.subr.mxu0 %v3183
          %4061 = vmatpush1.msra.mxu0 %v3182
          %4062 = vmatprep.subr.mxu0 %v3179
          %4063 = vmatpush1.msra.mxu0 %v3178
          %4064 = vmatprep.subr.mxu0 %v3175
          %4065 = vmatpush1.msra.mxu0 %v3174
          %4066 = vmatprep.subr.mxu0 %v3299
          %4067 = vmatpush2.msra.mxu0 %v3298
          %4068 = vmatprep.subr.mxu0 %v3295
          %4069 = vmatpush2.msra.mxu0 %v3294
          %4070 = vmatprep.subr.mxu0 %v3291
          %4071 = vmatpush2.msra.mxu0 %v3290
          %4072 = vmatprep.subr.mxu0 %v3287
          %4073 = vmatpush2.msra.mxu0 %v3286
          %4074 = vmatprep.subr.mxu0 %v3283
          %4075 = vmatpush2.msra.mxu0 %v3282
          %4076 = vmatprep.subr.mxu0 %v3279
          %4077 = vmatpush2.msra.mxu0 %v3278
          %4078 = vmatprep.subr.mxu0 %v3275
          %4079 = vmatpush2.msra.mxu0 %v3274
          %4080 = vmatprep.subr.mxu0 %v3271
          %4081 = vmatpush2.msra.mxu0 %v3270
          %4082 = vmatprep.subr.mxu0 %v3267
          %4083 = vmatpush2.msra.mxu0 %v3266
          %4084 = vmatprep.subr.mxu0 %v3263
          %4085 = vmatpush2.msra.mxu0 %v3262
          %4086 = vmatprep.subr.mxu0 %v3259
          %4087 = vmatpush2.msra.mxu0 %v3258
          %4088 = vmatprep.subr.mxu0 %v3255
          %4089 = vmatpush2.msra.mxu0 %v3254
          %4090 = vmatprep.subr.mxu0 %v3251
          %4091 = vmatpush2.msra.mxu0 %v3250
          %4092 = vmatprep.subr.mxu0 %v3247
          %4093 = vmatpush2.msra.mxu0 %v3246
          %4094 = vmatprep.subr.mxu0 %v3243
          %4095 = vmatpush2.msra.mxu0 %v3242
          %4096 = vmatprep.subr.mxu0 %v3239
          %4097 = vmatpush2.msra.mxu0 %v3238
          %4098 = vmatprep.mubr.f32.mxu0 %v3723
          %4099 = vmatmul.mubr.f32.gmra.mxu0 %v3715
          %v4100 = vpop.f32.mrf.mxu0
          %v4101 = vadd.f32 %v3697, %v4100
          %v4102 = vpop.f32.mrf.mxu0
          %v4103 = vadd.f32 %v3701, %v4102
          %4104 = vdwg.mxu0
          %4105 = vmatprep.subr.mxu0 %v3363
          %4106 = vmatpush1.msra.mxu0 %v3362
          %4107 = vmatprep.subr.mxu0 %v3359
          %4108 = vmatpush1.msra.mxu0 %v3358
          %4109 = vmatprep.subr.mxu0 %v3355
          %4110 = vmatpush1.msra.mxu0 %v3354
          %4111 = vmatprep.subr.mxu0 %v3351
          %4112 = vmatpush1.msra.mxu0 %v3350
          %4113 = vmatprep.subr.mxu0 %v3347
          %4114 = vmatpush1.msra.mxu0 %v3346
          %4115 = vmatprep.subr.mxu0 %v3343
          %4116 = vmatpush1.msra.mxu0 %v3342
          %4117 = vmatprep.subr.mxu0 %v3339
          %4118 = vmatpush1.msra.mxu0 %v3338
          %4119 = vmatprep.subr.mxu0 %v3335
          %4120 = vmatpush1.msra.mxu0 %v3334
          %4121 = vmatprep.subr.mxu0 %v3331
          %4122 = vmatpush1.msra.mxu0 %v3330
          %4123 = vmatprep.subr.mxu0 %v3327
          %4124 = vmatpush1.msra.mxu0 %v3326
          %4125 = vmatprep.subr.mxu0 %v3323
          %4126 = vmatpush1.msra.mxu0 %v3322
          %4127 = vmatprep.subr.mxu0 %v3319
          %4128 = vmatpush1.msra.mxu0 %v3318
          %4129 = vmatprep.subr.mxu0 %v3315
          %4130 = vmatpush1.msra.mxu0 %v3314
          %4131 = vmatprep.subr.mxu0 %v3311
          %4132 = vmatpush1.msra.mxu0 %v3310
          %4133 = vmatprep.subr.mxu0 %v3307
          %4134 = vmatpush1.msra.mxu0 %v3306
          %4135 = vmatprep.subr.mxu0 %v3303
          %4136 = vmatpush1.msra.mxu0 %v3302
          %4137 = vmatprep.subr.mxu0 %v3427
          %4138 = vmatpush2.msra.mxu0 %v3426
          %4139 = vmatprep.subr.mxu0 %v3423
          %4140 = vmatpush2.msra.mxu0 %v3422
          %4141 = vmatprep.subr.mxu0 %v3419
          %4142 = vmatpush2.msra.mxu0 %v3418
          %4143 = vmatprep.subr.mxu0 %v3415
          %4144 = vmatpush2.msra.mxu0 %v3414
          %4145 = vmatprep.subr.mxu0 %v3411
          %4146 = vmatpush2.msra.mxu0 %v3410
          %4147 = vmatprep.subr.mxu0 %v3407
          %4148 = vmatpush2.msra.mxu0 %v3406
          %4149 = vmatprep.subr.mxu0 %v3403
          %4150 = vmatpush2.msra.mxu0 %v3402
          %4151 = vmatprep.subr.mxu0 %v3399
          %4152 = vmatpush2.msra.mxu0 %v3398
          %4153 = vmatprep.subr.mxu0 %v3395
          %4154 = vmatpush2.msra.mxu0 %v3394
          %4155 = vmatprep.subr.mxu0 %v3391
          %4156 = vmatpush2.msra.mxu0 %v3390
          %4157 = vmatprep.subr.mxu0 %v3387
          %4158 = vmatpush2.msra.mxu0 %v3386
          %4159 = vmatprep.subr.mxu0 %v3383
          %4160 = vmatpush2.msra.mxu0 %v3382
          %4161 = vmatprep.subr.mxu0 %v3379
          %4162 = vmatpush2.msra.mxu0 %v3378
          %4163 = vmatprep.subr.mxu0 %v3375
          %4164 = vmatpush2.msra.mxu0 %v3374
          %4165 = vmatprep.subr.mxu0 %v3371
          %4166 = vmatpush2.msra.mxu0 %v3370
          %4167 = vmatprep.subr.mxu0 %v3367
          %4168 = vmatpush2.msra.mxu0 %v3366
          %4169 = vmatprep.mubr.f32.mxu0 %v3724
          %4170 = vmatmul.mubr.f32.gmra.mxu0 %v3722
          %v4171 = vpop.f32.mrf.mxu0
          %v4172 = vadd.f32 %v4101, %v4171
          %v4173 = vpop.f32.mrf.mxu0
          %v4174 = vadd.f32 %v4103, %v4173
          %4175 = vdwg.mxu0
          %4176 = vmatprep.subr.mxu0 %v3491
          %4177 = vmatpush1.msra.mxu0 %v3490
          %4178 = vmatprep.subr.mxu0 %v3487
          %4179 = vmatpush1.msra.mxu0 %v3486
          %4180 = vmatprep.subr.mxu0 %v3483
          %4181 = vmatpush1.msra.mxu0 %v3482
          %4182 = vmatprep.subr.mxu0 %v3479
          %4183 = vmatpush1.msra.mxu0 %v3478
          %4184 = vmatprep.subr.mxu0 %v3475
          %4185 = vmatpush1.msra.mxu0 %v3474
          %4186 = vmatprep.subr.mxu0 %v3471
          %4187 = vmatpush1.msra.mxu0 %v3470
          %4188 = vmatprep.subr.mxu0 %v3467
          %4189 = vmatpush1.msra.mxu0 %v3466
          %4190 = vmatprep.subr.mxu0 %v3463
          %4191 = vmatpush1.msra.mxu0 %v3462
          %4192 = vmatprep.subr.mxu0 %v3459
          %4193 = vmatpush1.msra.mxu0 %v3458
          %4194 = vmatprep.subr.mxu0 %v3455
          %4195 = vmatpush1.msra.mxu0 %v3454
          %4196 = vmatprep.subr.mxu0 %v3451
          %4197 = vmatpush1.msra.mxu0 %v3450
          %4198 = vmatprep.subr.mxu0 %v3447
          %4199 = vmatpush1.msra.mxu0 %v3446
          %4200 = vmatprep.subr.mxu0 %v3443
          %4201 = vmatpush1.msra.mxu0 %v3442
          %4202 = vmatprep.subr.mxu0 %v3439
          %4203 = vmatpush1.msra.mxu0 %v3438
          %4204 = vmatprep.subr.mxu0 %v3435
          %4205 = vmatpush1.msra.mxu0 %v3434
          %4206 = vmatprep.subr.mxu0 %v3431
          %4207 = vmatpush1.msra.mxu0 %v3430
          %4208 = vmatprep.subr.mxu0 %v3555
          %4209 = vmatpush2.msra.mxu0 %v3554
          %4210 = vmatprep.subr.mxu0 %v3551
          %4211 = vmatpush2.msra.mxu0 %v3550
          %4212 = vmatprep.subr.mxu0 %v3547
          %4213 = vmatpush2.msra.mxu0 %v3546
          %4214 = vmatprep.subr.mxu0 %v3543
          %4215 = vmatpush2.msra.mxu0 %v3542
          %4216 = vmatprep.subr.mxu0 %v3539
          %4217 = vmatpush2.msra.mxu0 %v3538
          %4218 = vmatprep.subr.mxu0 %v3535
          %4219 = vmatpush2.msra.mxu0 %v3534
          %4220 = vmatprep.subr.mxu0 %v3531
          %4221 = vmatpush2.msra.mxu0 %v3530
          %4222 = vmatprep.subr.mxu0 %v3527
          %4223 = vmatpush2.msra.mxu0 %v3526
          %4224 = vmatprep.subr.mxu0 %v3523
          %4225 = vmatpush2.msra.mxu0 %v3522
          %4226 = vmatprep.subr.mxu0 %v3519
          %4227 = vmatpush2.msra.mxu0 %v3518
          %4228 = vmatprep.subr.mxu0 %v3515
          %4229 = vmatpush2.msra.mxu0 %v3514
          %4230 = vmatprep.subr.mxu0 %v3511
          %4231 = vmatpush2.msra.mxu0 %v3510
          %4232 = vmatprep.subr.mxu0 %v3507
          %4233 = vmatpush2.msra.mxu0 %v3506
          %4234 = vmatprep.subr.mxu0 %v3503
          %4235 = vmatpush2.msra.mxu0 %v3502
          %4236 = vmatprep.subr.mxu0 %v3499
          %4237 = vmatpush2.msra.mxu0 %v3498
          %4238 = vmatprep.subr.mxu0 %v3495
          %4239 = vmatpush2.msra.mxu0 %v3494
          %4240 = vmatprep.mubr.f32.mxu0 %v3740
          %4241 = vmatmul.mubr.f32.gmra.mxu0 %v3732
          %v4242 = vpop.f32.mrf.mxu0
          %v4243 = vadd.f32 %v4172, %v4242
          %v4244 = vpop.f32.mrf.mxu0
          %v4245 = vadd.f32 %v4174, %v4244
          %4246 = vdwg.mxu0
          %4247 = vmatprep.subr.mxu0 %v3619
          %4248 = vmatpush1.msra.mxu0 %v3618
          %4249 = vmatprep.subr.mxu0 %v3615
          %4250 = vmatpush1.msra.mxu0 %v3614
          %4251 = vmatprep.subr.mxu0 %v3611
          %4252 = vmatpush1.msra.mxu0 %v3610
          %4253 = vmatprep.subr.mxu0 %v3607
          %4254 = vmatpush1.msra.mxu0 %v3606
          %4255 = vmatprep.subr.mxu0 %v3603
          %4256 = vmatpush1.msra.mxu0 %v3602
          %4257 = vmatprep.subr.mxu0 %v3599
          %4258 = vmatpush1.msra.mxu0 %v3598
          %4259 = vmatprep.subr.mxu0 %v3595
          %4260 = vmatpush1.msra.mxu0 %v3594
          %4261 = vmatprep.subr.mxu0 %v3591
          %4262 = vmatpush1.msra.mxu0 %v3590
          %4263 = vmatprep.subr.mxu0 %v3587
          %4264 = vmatpush1.msra.mxu0 %v3586
          %4265 = vmatprep.subr.mxu0 %v3583
          %4266 = vmatpush1.msra.mxu0 %v3582
          %4267 = vmatprep.subr.mxu0 %v3579
          %4268 = vmatpush1.msra.mxu0 %v3578
          %4269 = vmatprep.subr.mxu0 %v3575
          %4270 = vmatpush1.msra.mxu0 %v3574
          %4271 = vmatprep.subr.mxu0 %v3571
          %4272 = vmatpush1.msra.mxu0 %v3570
          %4273 = vmatprep.subr.mxu0 %v3567
          %4274 = vmatpush1.msra.mxu0 %v3566
          %4275 = vmatprep.subr.mxu0 %v3563
          %4276 = vmatpush1.msra.mxu0 %v3562
          %4277 = vmatprep.subr.mxu0 %v3559
          %4278 = vmatpush1.msra.mxu0 %v3558
          %4279 = vmatprep.subr.mxu0 %v3683
          %4280 = vmatpush2.msra.mxu0 %v3682
          %4281 = vmatprep.subr.mxu0 %v3679
          %4282 = vmatpush2.msra.mxu0 %v3678
          %4283 = vmatprep.subr.mxu0 %v3675
          %4284 = vmatpush2.msra.mxu0 %v3674
          %4285 = vmatprep.subr.mxu0 %v3671
          %4286 = vmatpush2.msra.mxu0 %v3670
          %4287 = vmatprep.subr.mxu0 %v3667
          %4288 = vmatpush2.msra.mxu0 %v3666
          %4289 = vmatprep.subr.mxu0 %v3663
          %4290 = vmatpush2.msra.mxu0 %v3662
          %4291 = vmatprep.subr.mxu0 %v3659
          %4292 = vmatpush2.msra.mxu0 %v3658
          %4293 = vmatprep.subr.mxu0 %v3655
          %4294 = vmatpush2.msra.mxu0 %v3654
          %4295 = vmatprep.subr.mxu0 %v3651
          %4296 = vmatpush2.msra.mxu0 %v3650
          %4297 = vmatprep.subr.mxu0 %v3647
          %4298 = vmatpush2.msra.mxu0 %v3646
          %4299 = vmatprep.subr.mxu0 %v3643
          %4300 = vmatpush2.msra.mxu0 %v3642
          %4301 = vmatprep.subr.mxu0 %v3639
          %4302 = vmatpush2.msra.mxu0 %v3638
          %4303 = vmatprep.subr.mxu0 %v3635
          %4304 = vmatpush2.msra.mxu0 %v3634
          %4305 = vmatprep.subr.mxu0 %v3631
          %4306 = vmatpush2.msra.mxu0 %v3630
          %4307 = vmatprep.subr.mxu0 %v3627
          %4308 = vmatpush2.msra.mxu0 %v3626
          %4309 = vmatprep.subr.mxu0 %v3623
          %4310 = vmatpush2.msra.mxu0 %v3622
          %4311 = vmatprep.mubr.f32.mxu0 %v3741
          %4312 = vmatmul.mubr.f32.gmra.mxu0 %v3739
          %v4313 = vpop.f32.mrf.mxu0
          %v4314 = vadd.f32 %v4243, %v4313
          %v4315 = vpop.f32.mrf.mxu0
          %v4316 = vadd.f32 %v4245, %v4315
          %4317 = vdwg.mxu0
          %v4318 = vmax.f32 %v4030, 0.0
          %v4319 = vmax.f32 %v4032, 0.0
          %v4320 = vmax.f32 %v4314, 0.0
          %v4321 = vmax.f32 %v4316, 0.0
          %v4322 = vld [vmem:[#allocation18] sm:$0xff]
          %v4323 = vld [vmem:[#allocation18 + $0x8] sm:$0xff]
          %v4324 = vld [vmem:[#allocation18 + $0x10] sm:$0xff]
          %v4325 = vld [vmem:[#allocation18 + $0x18] sm:$0xff]
          %v4326 = vld [vmem:[#allocation18 + $0x20] sm:$0xff]
          %v4327 = vld [vmem:[#allocation18 + $0x28] sm:$0xff]
          %v4328 = vld [vmem:[#allocation18 + $0x30] sm:$0xff]
          %v4329 = vld [vmem:[#allocation18 + $0x38] sm:$0xff]
          %v4330 = vld [vmem:[#allocation18 + $0x40] sm:$0xff]
          %v4331 = vld [vmem:[#allocation18 + $0x48] sm:$0xff]
          %v4332 = vld [vmem:[#allocation18 + $0x50] sm:$0xff]
          %v4333 = vld [vmem:[#allocation18 + $0x58] sm:$0xff]
          %v4334 = vld [vmem:[#allocation18 + $0x60] sm:$0xff]
          %v4335 = vld [vmem:[#allocation18 + $0x68] sm:$0xff]
          %v4336 = vld [vmem:[#allocation18 + $0x70] sm:$0xff]
          %v4337 = vld [vmem:[#allocation18 + $0x78] sm:$0xff]
          %v4338 = vld [vmem:[#allocation18 + $0x80] sm:$0xff]
          %v4339 = vld [vmem:[#allocation18 + $0x88] sm:$0xff]
          %v4340 = vld [vmem:[#allocation18 + $0x90] sm:$0xff]
          %v4341 = vld [vmem:[#allocation18 + $0x98] sm:$0xff]
          %v4342 = vld [vmem:[#allocation18 + $0xa0] sm:$0xff]
          %v4343 = vld [vmem:[#allocation18 + $0xa8] sm:$0xff]
          %v4344 = vld [vmem:[#allocation18 + $0xb0] sm:$0xff]
          %v4345 = vld [vmem:[#allocation18 + $0xb8] sm:$0xff]
          %v4346 = vld [vmem:[#allocation18 + $0xc0] sm:$0xff]
          %v4347 = vld [vmem:[#allocation18 + $0xc8] sm:$0xff]
          %v4348 = vld [vmem:[#allocation18 + $0xd0] sm:$0xff]
          %v4349 = vld [vmem:[#allocation18 + $0xd8] sm:$0xff]
          %v4350 = vld [vmem:[#allocation18 + $0xe0] sm:$0xff]
          %v4351 = vld [vmem:[#allocation18 + $0xe8] sm:$0xff]
          %v4352 = vld [vmem:[#allocation18 + $0xf0] sm:$0xff]
          %v4353 = vld [vmem:[#allocation18 + $0xf8] sm:$0xff]
          %v4354 = vld [vmem:[#allocation18 + $0x100] sm:$0xff]
          %v4355 = vld [vmem:[#allocation18 + $0x108] sm:$0xff]
          %v4356 = vld [vmem:[#allocation18 + $0x110] sm:$0xff]
          %v4357 = vld [vmem:[#allocation18 + $0x118] sm:$0xff]
          %v4358 = vld [vmem:[#allocation18 + $0x120] sm:$0xff]
          %v4359 = vld [vmem:[#allocation18 + $0x128] sm:$0xff]
          %v4360 = vld [vmem:[#allocation18 + $0x130] sm:$0xff]
          %v4361 = vld [vmem:[#allocation18 + $0x138] sm:$0xff]
          %v4362 = vld [vmem:[#allocation18 + $0x140] sm:$0xff]
          %v4363 = vld [vmem:[#allocation18 + $0x148] sm:$0xff]
          %v4364 = vld [vmem:[#allocation18 + $0x150] sm:$0xff]
          %v4365 = vld [vmem:[#allocation18 + $0x158] sm:$0xff]
          %v4366 = vld [vmem:[#allocation18 + $0x160] sm:$0xff]
          %v4367 = vld [vmem:[#allocation18 + $0x168] sm:$0xff]
          %v4368 = vld [vmem:[#allocation18 + $0x170] sm:$0xff]
          %v4369 = vld [vmem:[#allocation18 + $0x178] sm:$0xff]
          %v4370 = vld [vmem:[#allocation18 + $0x180] sm:$0xff]
          %v4371 = vld [vmem:[#allocation18 + $0x188] sm:$0xff]
          %v4372 = vld [vmem:[#allocation18 + $0x190] sm:$0xff]
          %v4373 = vld [vmem:[#allocation18 + $0x198] sm:$0xff]
          %v4374 = vld [vmem:[#allocation18 + $0x1a0] sm:$0xff]
          %v4375 = vld [vmem:[#allocation18 + $0x1a8] sm:$0xff]
          %v4376 = vld [vmem:[#allocation18 + $0x1b0] sm:$0xff]
          %v4377 = vld [vmem:[#allocation18 + $0x1b8] sm:$0xff]
          %v4378 = vld [vmem:[#allocation18 + $0x1c0] sm:$0xff]
          %v4379 = vld [vmem:[#allocation18 + $0x1c8] sm:$0xff]
          %v4380 = vld [vmem:[#allocation18 + $0x1d0] sm:$0xff]
          %v4381 = vld [vmem:[#allocation18 + $0x1d8] sm:$0xff]
          %v4382 = vld [vmem:[#allocation18 + $0x1e0] sm:$0xff]
          %v4383 = vld [vmem:[#allocation18 + $0x1e8] sm:$0xff]
          %v4384 = vld [vmem:[#allocation18 + $0x1f0] sm:$0xff]
          %v4385 = vld [vmem:[#allocation18 + $0x1f8] sm:$0xff]
          %v4386 = vld [vmem:[#allocation18 + $0x200] sm:$0xff]
          %v4387 = vld [vmem:[#allocation18 + $0x208] sm:$0xff]
          %v4388 = vld [vmem:[#allocation18 + $0x210] sm:$0xff]
          %v4389 = vld [vmem:[#allocation18 + $0x218] sm:$0xff]
          %v4390 = vld [vmem:[#allocation18 + $0x220] sm:$0xff]
          %v4391 = vld [vmem:[#allocation18 + $0x228] sm:$0xff]
          %v4392 = vld [vmem:[#allocation18 + $0x230] sm:$0xff]
          %v4393 = vld [vmem:[#allocation18 + $0x238] sm:$0xff]
          %v4394 = vld [vmem:[#allocation18 + $0x240] sm:$0xff]
          %v4395 = vld [vmem:[#allocation18 + $0x248] sm:$0xff]
          %v4396 = vld [vmem:[#allocation18 + $0x250] sm:$0xff]
          %v4397 = vld [vmem:[#allocation18 + $0x258] sm:$0xff]
          %v4398 = vld [vmem:[#allocation18 + $0x260] sm:$0xff]
          %v4399 = vld [vmem:[#allocation18 + $0x268] sm:$0xff]
          %v4400 = vld [vmem:[#allocation18 + $0x270] sm:$0xff]
          %v4401 = vld [vmem:[#allocation18 + $0x278] sm:$0xff]
          %v4402 = vld [vmem:[#allocation18 + $0x280] sm:$0xff]
          %v4403 = vld [vmem:[#allocation18 + $0x288] sm:$0xff]
          %v4404 = vld [vmem:[#allocation18 + $0x290] sm:$0xff]
          %v4405 = vld [vmem:[#allocation18 + $0x298] sm:$0xff]
          %v4406 = vld [vmem:[#allocation18 + $0x2a0] sm:$0xff]
          %v4407 = vld [vmem:[#allocation18 + $0x2a8] sm:$0xff]
          %v4408 = vld [vmem:[#allocation18 + $0x2b0] sm:$0xff]
          %v4409 = vld [vmem:[#allocation18 + $0x2b8] sm:$0xff]
          %v4410 = vld [vmem:[#allocation18 + $0x2c0] sm:$0xff]
          %v4411 = vld [vmem:[#allocation18 + $0x2c8] sm:$0xff]
          %v4412 = vld [vmem:[#allocation18 + $0x2d0] sm:$0xff]
          %v4413 = vld [vmem:[#allocation18 + $0x2d8] sm:$0xff]
          %v4414 = vld [vmem:[#allocation18 + $0x2e0] sm:$0xff]
          %v4415 = vld [vmem:[#allocation18 + $0x2e8] sm:$0xff]
          %v4416 = vld [vmem:[#allocation18 + $0x2f0] sm:$0xff]
          %v4417 = vld [vmem:[#allocation18 + $0x2f8] sm:$0xff]
          %v4418 = vld [vmem:[#allocation18 + $0x300] sm:$0xff]
          %v4419 = vld [vmem:[#allocation18 + $0x308] sm:$0xff]
          %v4420 = vld [vmem:[#allocation18 + $0x310] sm:$0xff]
          %v4421 = vld [vmem:[#allocation18 + $0x318] sm:$0xff]
          %v4422 = vld [vmem:[#allocation18 + $0x320] sm:$0xff]
          %v4423 = vld [vmem:[#allocation18 + $0x328] sm:$0xff]
          %v4424 = vld [vmem:[#allocation18 + $0x330] sm:$0xff]
          %v4425 = vld [vmem:[#allocation18 + $0x338] sm:$0xff]
          %v4426 = vld [vmem:[#allocation18 + $0x340] sm:$0xff]
          %v4427 = vld [vmem:[#allocation18 + $0x348] sm:$0xff]
          %v4428 = vld [vmem:[#allocation18 + $0x350] sm:$0xff]
          %v4429 = vld [vmem:[#allocation18 + $0x358] sm:$0xff]
          %v4430 = vld [vmem:[#allocation18 + $0x360] sm:$0xff]
          %v4431 = vld [vmem:[#allocation18 + $0x368] sm:$0xff]
          %v4432 = vld [vmem:[#allocation18 + $0x370] sm:$0xff]
          %v4433 = vld [vmem:[#allocation18 + $0x378] sm:$0xff]
          %v4434 = vld [vmem:[#allocation18 + $0x380] sm:$0xff]
          %v4435 = vld [vmem:[#allocation18 + $0x388] sm:$0xff]
          %v4436 = vld [vmem:[#allocation18 + $0x390] sm:$0xff]
          %v4437 = vld [vmem:[#allocation18 + $0x398] sm:$0xff]
          %v4438 = vld [vmem:[#allocation18 + $0x3a0] sm:$0xff]
          %v4439 = vld [vmem:[#allocation18 + $0x3a8] sm:$0xff]
          %v4440 = vld [vmem:[#allocation18 + $0x3b0] sm:$0xff]
          %v4441 = vld [vmem:[#allocation18 + $0x3b8] sm:$0xff]
          %v4442 = vld [vmem:[#allocation18 + $0x3c0] sm:$0xff]
          %v4443 = vld [vmem:[#allocation18 + $0x3c8] sm:$0xff]
          %v4444 = vld [vmem:[#allocation18 + $0x3d0] sm:$0xff]
          %v4445 = vld [vmem:[#allocation18 + $0x3d8] sm:$0xff]
          %v4446 = vld [vmem:[#allocation18 + $0x3e0] sm:$0xff]
          %v4447 = vld [vmem:[#allocation18 + $0x3e8] sm:$0xff]
          %v4448 = vld [vmem:[#allocation18 + $0x3f0] sm:$0xff]
          %v4449 = vld [vmem:[#allocation18 + $0x3f8] sm:$0xff]
          %v4450 = vld [vmem:[#allocation19] sm:$0x3]
          %v4452 = vlaneseq
          %v4453 = vshrl.u32 %v4452, 7
          %v4454 = vsub.s32 0, %v4453
          %v4455 = vrot.slane %v4450, %v4454
          %v4456 = vlaneseq
          %v4457 = vshrl.u32 %v4456, 7
          %v4458 = vsub.s32 1, %v4457
          %v4459 = vrot.slane %v4450, %v4458
          %4462 = vmatprep.subr.mxu0 %v4353
          %4463 = vmatpush1.msra.mxu0 %v4352
          %4464 = vmatprep.subr.mxu0 %v4351
          %4465 = vmatpush1.msra.mxu0 %v4350
          %4466 = vmatprep.subr.mxu0 %v4349
          %4467 = vmatpush1.msra.mxu0 %v4348
          %4468 = vmatprep.subr.mxu0 %v4347
          %4469 = vmatpush1.msra.mxu0 %v4346
          %4470 = vmatprep.subr.mxu0 %v4345
          %4471 = vmatpush1.msra.mxu0 %v4344
          %4472 = vmatprep.subr.mxu0 %v4343
          %4473 = vmatpush1.msra.mxu0 %v4342
          %4474 = vmatprep.subr.mxu0 %v4341
          %4475 = vmatpush1.msra.mxu0 %v4340
          %4476 = vmatprep.subr.mxu0 %v4339
          %4477 = vmatpush1.msra.mxu0 %v4338
          %4478 = vmatprep.subr.mxu0 %v4337
          %4479 = vmatpush1.msra.mxu0 %v4336
          %4480 = vmatprep.subr.mxu0 %v4335
          %4481 = vmatpush1.msra.mxu0 %v4334
          %4482 = vmatprep.subr.mxu0 %v4333
          %4483 = vmatpush1.msra.mxu0 %v4332
          %4484 = vmatprep.subr.mxu0 %v4331
          %4485 = vmatpush1.msra.mxu0 %v4330
          %4486 = vmatprep.subr.mxu0 %v4329
          %4487 = vmatpush1.msra.mxu0 %v4328
          %4488 = vmatprep.subr.mxu0 %v4327
          %4489 = vmatpush1.msra.mxu0 %v4326
          %4490 = vmatprep.subr.mxu0 %v4325
          %4491 = vmatpush1.msra.mxu0 %v4324
          %4492 = vmatprep.subr.mxu0 %v4323
          %4493 = vmatpush1.msra.mxu0 %v4322
          %4494 = vmatprep.subr.mxu0 %v4385
          %4495 = vmatpush2.msra.mxu0 %v4384
          %4496 = vmatprep.subr.mxu0 %v4383
          %4497 = vmatpush2.msra.mxu0 %v4382
          %4498 = vmatprep.subr.mxu0 %v4381
          %4499 = vmatpush2.msra.mxu0 %v4380
          %4500 = vmatprep.subr.mxu0 %v4379
          %4501 = vmatpush2.msra.mxu0 %v4378
          %4502 = vmatprep.subr.mxu0 %v4377
          %4503 = vmatpush2.msra.mxu0 %v4376
          %4504 = vmatprep.subr.mxu0 %v4375
          %4505 = vmatpush2.msra.mxu0 %v4374
          %4506 = vmatprep.subr.mxu0 %v4373
          %4507 = vmatpush2.msra.mxu0 %v4372
          %4508 = vmatprep.subr.mxu0 %v4371
          %4509 = vmatpush2.msra.mxu0 %v4370
          %4510 = vmatprep.subr.mxu0 %v4369
          %4511 = vmatpush2.msra.mxu0 %v4368
          %4512 = vmatprep.subr.mxu0 %v4367
          %4513 = vmatpush2.msra.mxu0 %v4366
          %4514 = vmatprep.subr.mxu0 %v4365
          %4515 = vmatpush2.msra.mxu0 %v4364
          %4516 = vmatprep.subr.mxu0 %v4363
          %4517 = vmatpush2.msra.mxu0 %v4362
          %4518 = vmatprep.subr.mxu0 %v4361
          %4519 = vmatpush2.msra.mxu0 %v4360
          %4520 = vmatprep.subr.mxu0 %v4359
          %4521 = vmatpush2.msra.mxu0 %v4358
          %4522 = vmatprep.subr.mxu0 %v4357
          %4523 = vmatpush2.msra.mxu0 %v4356
          %4524 = vmatprep.subr.mxu0 %v4355
          %4525 = vmatpush2.msra.mxu0 %v4354
          %4526 = vmatprep.mubr.f32.mxu0 %v4319
          %4527 = vmatmul.mubr.f32.gmra.mxu0 %v4318
          %v4528 = vpop.f32.mrf.mxu0
          %v4529 = vadd.f32 %v4455, %v4528
          %v4530 = vpop.f32.mrf.mxu0
          %v4531 = vadd.f32 %v4459, %v4530
          %4532 = vdwg.mxu0
          %4533 = vmatprep.subr.mxu0 %v4417
          %4534 = vmatpush1.msra.mxu0 %v4416
          %4535 = vmatprep.subr.mxu0 %v4415
          %4536 = vmatpush1.msra.mxu0 %v4414
          %4537 = vmatprep.subr.mxu0 %v4413
          %4538 = vmatpush1.msra.mxu0 %v4412
          %4539 = vmatprep.subr.mxu0 %v4411
          %4540 = vmatpush1.msra.mxu0 %v4410
          %4541 = vmatprep.subr.mxu0 %v4409
          %4542 = vmatpush1.msra.mxu0 %v4408
          %4543 = vmatprep.subr.mxu0 %v4407
          %4544 = vmatpush1.msra.mxu0 %v4406
          %4545 = vmatprep.subr.mxu0 %v4405
          %4546 = vmatpush1.msra.mxu0 %v4404
          %4547 = vmatprep.subr.mxu0 %v4403
          %4548 = vmatpush1.msra.mxu0 %v4402
          %4549 = vmatprep.subr.mxu0 %v4401
          %4550 = vmatpush1.msra.mxu0 %v4400
          %4551 = vmatprep.subr.mxu0 %v4399
          %4552 = vmatpush1.msra.mxu0 %v4398
          %4553 = vmatprep.subr.mxu0 %v4397
          %4554 = vmatpush1.msra.mxu0 %v4396
          %4555 = vmatprep.subr.mxu0 %v4395
          %4556 = vmatpush1.msra.mxu0 %v4394
          %4557 = vmatprep.subr.mxu0 %v4393
          %4558 = vmatpush1.msra.mxu0 %v4392
          %4559 = vmatprep.subr.mxu0 %v4391
          %4560 = vmatpush1.msra.mxu0 %v4390
          %4561 = vmatprep.subr.mxu0 %v4389
          %4562 = vmatpush1.msra.mxu0 %v4388
          %4563 = vmatprep.subr.mxu0 %v4387
          %4564 = vmatpush1.msra.mxu0 %v4386
          %4565 = vmatprep.subr.mxu0 %v4449
          %4566 = vmatpush2.msra.mxu0 %v4448
          %4567 = vmatprep.subr.mxu0 %v4447
          %4568 = vmatpush2.msra.mxu0 %v4446
          %4569 = vmatprep.subr.mxu0 %v4445
          %4570 = vmatpush2.msra.mxu0 %v4444
          %4571 = vmatprep.subr.mxu0 %v4443
          %4572 = vmatpush2.msra.mxu0 %v4442
          %4573 = vmatprep.subr.mxu0 %v4441
          %4574 = vmatpush2.msra.mxu0 %v4440
          %4575 = vmatprep.subr.mxu0 %v4439
          %4576 = vmatpush2.msra.mxu0 %v4438
          %4577 = vmatprep.subr.mxu0 %v4437
          %4578 = vmatpush2.msra.mxu0 %v4436
          %4579 = vmatprep.subr.mxu0 %v4435
          %4580 = vmatpush2.msra.mxu0 %v4434
          %4581 = vmatprep.subr.mxu0 %v4433
          %4582 = vmatpush2.msra.mxu0 %v4432
          %4583 = vmatprep.subr.mxu0 %v4431
          %4584 = vmatpush2.msra.mxu0 %v4430
          %4585 = vmatprep.subr.mxu0 %v4429
          %4586 = vmatpush2.msra.mxu0 %v4428
          %4587 = vmatprep.subr.mxu0 %v4427
          %4588 = vmatpush2.msra.mxu0 %v4426
          %4589 = vmatprep.subr.mxu0 %v4425
          %4590 = vmatpush2.msra.mxu0 %v4424
          %4591 = vmatprep.subr.mxu0 %v4423
          %4592 = vmatpush2.msra.mxu0 %v4422
          %4593 = vmatprep.subr.mxu0 %v4421
          %4594 = vmatpush2.msra.mxu0 %v4420
          %4595 = vmatprep.subr.mxu0 %v4419
          %4596 = vmatpush2.msra.mxu0 %v4418
          %4597 = vmatprep.mubr.f32.mxu0 %v4321
          %4598 = vmatmul.mubr.f32.gmra.mxu0 %v4320
          %v4599 = vpop.f32.mrf.mxu0
          %v4600 = vadd.f32 %v4529, %v4599
          %v4601 = vpop.f32.mrf.mxu0
          %v4602 = vadd.f32 %v4531, %v4601
          %4603 = vdwg.mxu0
          %v4604 = vmax.f32 %v4600, 0.0
          %v4605 = vmax.f32 %v4602, 0.0
          %v4606 = vld [vmem:[#allocation21] sm:$0xff]
          %v4607 = vld [vmem:[#allocation21 + $0x8] sm:$0xff]
          %v4608 = vld [vmem:[#allocation21 + $0x10] sm:$0xff]
          %v4609 = vld [vmem:[#allocation21 + $0x18] sm:$0xff]
          %v4610 = vld [vmem:[#allocation21 + $0x20] sm:$0xff]
          %v4611 = vld [vmem:[#allocation21 + $0x28] sm:$0xff]
          %v4612 = vld [vmem:[#allocation21 + $0x30] sm:$0xff]
          %v4613 = vld [vmem:[#allocation21 + $0x38] sm:$0xff]
          %v4614 = vld [vmem:[#allocation21 + $0x40] sm:$0xff]
          %v4615 = vld [vmem:[#allocation21 + $0x48] sm:$0xff]
          %v4616 = vld [vmem:[#allocation21 + $0x50] sm:$0xff]
          %v4617 = vld [vmem:[#allocation21 + $0x58] sm:$0xff]
          %v4618 = vld [vmem:[#allocation21 + $0x60] sm:$0xff]
          %v4619 = vld [vmem:[#allocation21 + $0x68] sm:$0xff]
          %v4620 = vld [vmem:[#allocation21 + $0x70] sm:$0xff]
          %v4621 = vld [vmem:[#allocation21 + $0x78] sm:$0xff]
          %v4622 = vld [vmem:[#allocation21 + $0x80] sm:$0xff]
          %v4623 = vld [vmem:[#allocation21 + $0x88] sm:$0xff]
          %v4624 = vld [vmem:[#allocation21 + $0x90] sm:$0xff]
          %v4625 = vld [vmem:[#allocation21 + $0x98] sm:$0xff]
          %v4626 = vld [vmem:[#allocation21 + $0xa0] sm:$0xff]
          %v4627 = vld [vmem:[#allocation21 + $0xa8] sm:$0xff]
          %v4628 = vld [vmem:[#allocation21 + $0xb0] sm:$0xff]
          %v4629 = vld [vmem:[#allocation21 + $0xb8] sm:$0xff]
          %v4630 = vld [vmem:[#allocation21 + $0xc0] sm:$0xff]
          %v4631 = vld [vmem:[#allocation21 + $0xc8] sm:$0xff]
          %v4632 = vld [vmem:[#allocation21 + $0xd0] sm:$0xff]
          %v4633 = vld [vmem:[#allocation21 + $0xd8] sm:$0xff]
          %v4634 = vld [vmem:[#allocation21 + $0xe0] sm:$0xff]
          %v4635 = vld [vmem:[#allocation21 + $0xe8] sm:$0xff]
          %v4636 = vld [vmem:[#allocation21 + $0xf0] sm:$0xff]
          %v4637 = vld [vmem:[#allocation21 + $0xf8] sm:$0xff]
          %v4638 = vld [vmem:[#allocation22] sm:$0x1]
          %v4640 = vlaneseq
          %v4641 = vshrl.u32 %v4640, 7
          %v4642 = vsub.s32 0, %v4641
          %v4643 = vrot.slane %v4638, %v4642
          %4645 = vmatprep.subr.mxu0 0.0
          %4646 = vmatpush1.msra.mxu0 %v4621
          %4647 = vmatprep.subr.mxu0 0.0
          %4648 = vmatpush1.msra.mxu0 %v4620
          %4649 = vmatprep.subr.mxu0 0.0
          %4650 = vmatpush1.msra.mxu0 %v4619
          %4651 = vmatprep.subr.mxu0 0.0
          %4652 = vmatpush1.msra.mxu0 %v4618
          %4653 = vmatprep.subr.mxu0 0.0
          %4654 = vmatpush1.msra.mxu0 %v4617
          %4655 = vmatprep.subr.mxu0 0.0
          %4656 = vmatpush1.msra.mxu0 %v4616
          %4657 = vmatprep.subr.mxu0 0.0
          %4658 = vmatpush1.msra.mxu0 %v4615
          %4659 = vmatprep.subr.mxu0 0.0
          %4660 = vmatpush1.msra.mxu0 %v4614
          %4661 = vmatprep.subr.mxu0 0.0
          %4662 = vmatpush1.msra.mxu0 %v4613
          %4663 = vmatprep.subr.mxu0 0.0
          %4664 = vmatpush1.msra.mxu0 %v4612
          %4665 = vmatprep.subr.mxu0 0.0
          %4666 = vmatpush1.msra.mxu0 %v4611
          %4667 = vmatprep.subr.mxu0 0.0
          %4668 = vmatpush1.msra.mxu0 %v4610
          %4669 = vmatprep.subr.mxu0 0.0
          %4670 = vmatpush1.msra.mxu0 %v4609
          %4671 = vmatprep.subr.mxu0 0.0
          %4672 = vmatpush1.msra.mxu0 %v4608
          %4673 = vmatprep.subr.mxu0 0.0
          %4674 = vmatpush1.msra.mxu0 %v4607
          %4675 = vmatprep.subr.mxu0 0.0
          %4676 = vmatpush1.msra.mxu0 %v4606
          %4677 = vmatprep.subr.mxu0 0.0
          %4678 = vmatpush2.msra.mxu0 %v4637
          %4679 = vmatprep.subr.mxu0 0.0
          %4680 = vmatpush2.msra.mxu0 %v4636
          %4681 = vmatprep.subr.mxu0 0.0
          %4682 = vmatpush2.msra.mxu0 %v4635
          %4683 = vmatprep.subr.mxu0 0.0
          %4684 = vmatpush2.msra.mxu0 %v4634
          %4685 = vmatprep.subr.mxu0 0.0
          %4686 = vmatpush2.msra.mxu0 %v4633
          %4687 = vmatprep.subr.mxu0 0.0
          %4688 = vmatpush2.msra.mxu0 %v4632
          %4689 = vmatprep.subr.mxu0 0.0
          %4690 = vmatpush2.msra.mxu0 %v4631
          %4691 = vmatprep.subr.mxu0 0.0
          %4692 = vmatpush2.msra.mxu0 %v4630
          %4693 = vmatprep.subr.mxu0 0.0
          %4694 = vmatpush2.msra.mxu0 %v4629
          %4695 = vmatprep.subr.mxu0 0.0
          %4696 = vmatpush2.msra.mxu0 %v4628
          %4697 = vmatprep.subr.mxu0 0.0
          %4698 = vmatpush2.msra.mxu0 %v4627
          %4699 = vmatprep.subr.mxu0 0.0
          %4700 = vmatpush2.msra.mxu0 %v4626
          %4701 = vmatprep.subr.mxu0 0.0
          %4702 = vmatpush2.msra.mxu0 %v4625
          %4703 = vmatprep.subr.mxu0 0.0
          %4704 = vmatpush2.msra.mxu0 %v4624
          %4705 = vmatprep.subr.mxu0 0.0
          %4706 = vmatpush2.msra.mxu0 %v4623
          %4707 = vmatprep.subr.mxu0 0.0
          %4708 = vmatpush2.msra.mxu0 %v4622
          %4709 = vmatprep.mubr.f32.mxu0 %v4605
          %4710 = vmatmul.mubr.f32.gmra.mxu0 %v4604
          %v4711 = vpop.f32.mrf.mxu0
          %v4712 = vadd.f32 %v4643, %v4711
          %v4713 = vpop.f32.mrf.mxu0
          %4714 = vdwg.mxu0
          %4715 = vst [vmem:[#allocation24] sm:$0x3] %v4712
        $region166: #{tpu_custom_call.1} parent=105 // pred_fallthru
          _
        // Predicated region
        $region167: #{tpu_custom_call.1} parent=105 // pred_check
          %p4716 = pneg %p342
        $region168: #{tpu_custom_call.1} parent=105 // pred_check_branch
          %4718 = sbr.rel (%p4716) target = $region170
        $region169: #{tpu_custom_call.1} parent=105 // pred_region
          %s4720 = ssub.s32 32, 32
          %4721 = vsyncadd [#allocation6], %s4720
          %s4722 = smul.addr %s36, 32
          %s4723 = scalar_lea.hbm %s13, %s4722
          %s4725 = sshll.u32 [#allocation24], 4
          %s4726 = int_to_ptr.vmem [resolvable:$true] %s4725
          %4728 = dma.vmem_to_hbm [thread:$0]  %s4726, 32, %s4723, [#allocation6]
        $region170: #{tpu_custom_call.1} parent=105 // pred_fallthru
          _
        // Predicated region
        $region171: #{tpu_custom_call.1} parent=105 // pred_check
          %p4729 = pneg %p342
        $region172: #{tpu_custom_call.1} parent=105 // pred_check_branch
          %4731 = sbr.rel (%p4729) target = $region174
        $region173: #{tpu_custom_call.1} parent=105 // pred_region
          %4732 = dma.done [#allocation6], 32
        $region174: #{tpu_custom_call.1} parent=105 // pred_fallthru
          _
      $region106: #{tpu_custom_call.1} parent=5 // pred_fallthru
        _
      %p4733 = scmp.le.s32.totalorder 2, %s27
      // Predicated region
      $region175: #{tpu_custom_call.1} parent=5 // pred_check
        %p4734 = pneg %p4733
      $region176: #{tpu_custom_call.1} parent=5 // pred_check_branch
        %4736 = sbr.rel (%p4734) target = $region178
      $region177: #{tpu_custom_call.1} parent=5 // pred_region
        %s4737 = ssub.s32 %s27, 2
      $region178: #{tpu_custom_call.1} parent=5 // pred_fallthru
        _
    $region6: #{tpu_custom_call.1} parent=1 // loop_footer
      %s31 = sadd.s32 1, %s27
    $region7: #{tpu_custom_call.1} parent=1 // loop_footer_branch
      %26 = sbr.rel target = $region3
    $region8: #{tpu_custom_call.1} parent=1 // loop_exit
      _
    %4738 = vsyncpa [#allocation5], 1
    %s4739 = scalar_lea.sflag [#allocation5], 1
    %4740 = vsyncpa %s4739, 1
    %4741 = vsyncpa [#allocation8], 1
    %4742 = vsyncpa [#allocation11], 1
    %4743 = vsyncpa [#allocation14], 1
    %4744 = vsyncpa [#allocation17], 1
    %4745 = vsyncpa [#allocation20], 1
    %4746 = vsyncpa [#allocation23], 1
    %4747 = vsyncpa [#allocation6], 1
    %s4748 = scalar_lea.sflag [#allocation6], 1
    %4749 = vsyncpa %s4748, 1

</llo_original>
